<compile_context>
chip_gen: v7x
topology: tpu7x:2x2x1
jax: 0.10.0
libtpu: 0.0.40
codegen_flags: <defaults>
</compile_context>

<pallas_src>
import functools

import jax
import jax.numpy as jnp
from jax import lax
from jax.experimental import pallas as pl
from jax.experimental.pallas import tpu as pltpu

_VMEM_LIMIT = 64 * 1024 * 1024


def _round_up(x, m):
    return (x + m - 1) // m * m


# ----------------------------------------------------------------------------
# Kernel 1: fused 3x3 conv (stride 1, pad 1) + bias + ReLU, channels-last.
# The padded image is pre-flattened to (Lf, C); each tap (ky, kx) is a
# contiguous slice of that slab at offset ky*(W+2)+kx, so im2col never
# materializes and no per-tap 2-axis relayout happens.  The output M = H*(W+2)
# (padded-width layout, junk columns cropped in the wrapper) is tiled with a
# VMEM f32 scratch accumulator.
# ----------------------------------------------------------------------------
def _conv3x3_kernel(f_ref, w_ref, b_ref, o_ref, acc_ref, *, P, tm, n_tiles):
    bias = b_ref[...]                                  # (1, Cout) f32
    for j in range(n_tiles):                           # static unroll over M tiles
        base = j * tm
        for idx in range(9):                           # static unroll over taps
            ky, kx = idx // 3, idx % 3
            d = ky * P + kx
            patch = f_ref[0, base + d:base + d + tm, :]          # (tm, C) bf16
            contrib = jnp.dot(patch, w_ref[idx],
                              preferred_element_type=jnp.float32)
            if idx == 0:
                acc_ref[...] = contrib
            else:
                acc_ref[...] += contrib
        o_ref[0, base:base + tm, :] = jnp.maximum(
            acc_ref[...] + bias, 0.0).astype(o_ref.dtype)


def conv3x3_relu_nhwc(x, w, b, *, tm_target=512):
    """x: (B, H, W, Cin); w: (Cout, Cin, 3, 3) torch layout; -> (B, H, W, Cout) bf16."""
    B, H, W, C = x.shape
    Cout = w.shape[0]
    P = W + 2
    M = H * P                                   # output rows in padded-width layout
    tm = min(tm_target, _round_up(M, 16))
    Mp = _round_up(M, tm)
    Lf = Mp + 2 * P + 2                         # rows needed so every tap slice is in-bounds

    xp = jnp.pad(x, ((0, 0), (1, 1), (1, 1), (0, 0))).astype(jnp.bfloat16)
    xf = xp.reshape(B, (H + 2) * P, C)
    xf = jnp.pad(xf, ((0, 0), (0, Lf - (H + 2) * P), (0, 0)))

    # (Cout, Cin, 3, 3) -> (9, Cin, Cout), tap index k = ky*3 + kx
    w9 = jnp.transpose(w.reshape(Cout, C, 9), (2, 1, 0)).astype(jnp.bfloat16)
    b2 = b.reshape(1, Cout).astype(jnp.float32)

    out = pl.pallas_call(
        functools.partial(_conv3x3_kernel, P=P, tm=tm, n_tiles=Mp // tm),
        out_shape=jax.ShapeDtypeStruct((B, Mp, Cout), jnp.bfloat16),
        grid=(B,),
        in_specs=[
            pl.BlockSpec((1, Lf, C), lambda i: (i, 0, 0)),
            pl.BlockSpec((9, C, Cout), lambda i: (0, 0, 0)),
            pl.BlockSpec((1, Cout), lambda i: (0, 0)),
        ],
        out_specs=pl.BlockSpec((1, Mp, Cout), lambda i: (i, 0, 0)),
        scratch_shapes=[pltpu.VMEM((tm, Cout), jnp.float32)],
        compiler_params=pltpu.CompilerParams(
            dimension_semantics=("parallel",),
            vmem_limit_bytes=_VMEM_LIMIT),
    )(xf, w9, b2)
    # Crop padded-width junk columns; fuses with the downstream transpose copy.
    return out[:, :M, :].reshape(B, H, P, Cout)[:, :, :W, :]


# ----------------------------------------------------------------------------
# Kernel 2: row-tiled (M, K) @ (K, N) + bias (+ optional ReLU), bf16 in, f32 acc.
# Used for the hoisted bidirectional-LSTM input projection (gates stored bf16).
# ----------------------------------------------------------------------------
def _matmul_bias_kernel(x_ref, w_ref, b_ref, o_ref, *, relu):
    acc = jnp.dot(x_ref[...], w_ref[...], preferred_element_type=jnp.float32)
    acc = acc + b_ref[...]
    if relu:
        acc = jnp.maximum(acc, 0.0)
    o_ref[...] = acc.astype(o_ref.dtype)


def matmul_bias(x, w, b, *, relu=False, out_dtype=jnp.float32, tm=512):
    M, K = x.shape
    K2, N = w.shape
    assert K == K2
    tm = min(tm, _round_up(M, 16))
    Mp = _round_up(M, tm)
    xb = x.astype(jnp.bfloat16)
    if Mp != M:
        xb = jnp.pad(xb, ((0, Mp - M), (0, 0)))
    out = pl.pallas_call(
        functools.partial(_matmul_bias_kernel, relu=relu),
        out_shape=jax.ShapeDtypeStruct((Mp, N), out_dtype),
        grid=(Mp // tm,),
        in_specs=[
            pl.BlockSpec((tm, K), lambda i: (i, 0)),
            pl.BlockSpec((K, N), lambda i: (0, 0)),
            pl.BlockSpec((1, N), lambda i: (0, 0)),
        ],
        out_specs=pl.BlockSpec((tm, N), lambda i: (i, 0)),
        compiler_params=pltpu.CompilerParams(
            dimension_semantics=("parallel",),
            vmem_limit_bytes=_VMEM_LIMIT),
    )(xb, w.astype(jnp.bfloat16), b.reshape(1, N).astype(jnp.float32))
    return out[:M] if Mp != M else out


# ----------------------------------------------------------------------------
# Kernel 3: fused bidirectional LSTM recurrence, tiled over N = B*H (parallel).
# gx_ref holds the precomputed bf16 input projections for BOTH directions
# ([:, :, :4H] forward, [:, :, 4H:] backward, biases already added).
# The two recurrent matmuls are fused into one [h_f | h_b] @ blockdiag(Whh_f,
# Whh_b) matmul (K=2H fills the 256-wide MXU on v6e/v7x; on v5e keeping them
# split would be preferable).  h/c live in the fori_loop carry (vregs).
# ----------------------------------------------------------------------------
def _bilstm_kernel(gx_ref, whh_ref, o_ref, *, Hd):
    T, tn = gx_ref.shape[0], gx_ref.shape[1]
    G = 4 * Hd

    def cell(gates, c_prev):
        i_g = jax.nn.sigmoid(gates[:, 0 * Hd:1 * Hd])
        f_g = jax.nn.sigmoid(gates[:, 1 * Hd:2 * Hd])
        g_g = jnp.tanh(gates[:, 2 * Hd:3 * Hd])
        o_g = jax.nn.sigmoid(gates[:, 3 * Hd:4 * Hd])
        c_new = f_g * c_prev + i_g * g_g
        h_new = o_g * jnp.tanh(c_new)
        return h_new, c_new

    def step(t, carry):
        h_f, c_f, h_b, c_b = carry
        tb = T - 1 - t
        hcat = jnp.concatenate([h_f, h_b], axis=1).astype(jnp.bfloat16)   # (tn, 2H)
        gg = jnp.dot(hcat, whh_ref[...],
                     preferred_element_type=jnp.float32)                  # (tn, 8H)
        g_f = gx_ref[t][:, 0:G].astype(jnp.float32) + gg[:, 0:G]
        g_b = gx_ref[tb][:, G:2 * G].astype(jnp.float32) + gg[:, G:2 * G]
        h_f, c_f = cell(g_f, c_f)
        h_b, c_b = cell(g_b, c_b)
        o_ref[t, :, 0:Hd] = h_f.astype(o_ref.dtype)
        o_ref[tb, :, Hd:2 * Hd] = h_b.astype(o_ref.dtype)
        return (h_f, c_f, h_b, c_b)

    z = jnp.zeros((tn, Hd), jnp.float32)
    lax.fori_loop(0, T, step, (z, z, z, z))


def bilstm(gates_x, whh_blk, hidden, *, tn):
    # gates_x: (T, Np, 8H) bf16 with Np a multiple of tn; whh_blk: (2H, 8H) blockdiag.
    # NOTE: at very large T*N the (T, tn, 8H) block could instead be streamed
    # from HBM (memory_space=pl.ANY + make_async_copy double-buffering); the
    # bf16 storage + N tiling keeps it comfortably in VMEM for CTPN sizes.
    T, Np, _ = gates_x.shape
    return pl.pallas_call(
        functools.partial(_bilstm_kernel, Hd=hidden),
        out_shape=jax.ShapeDtypeStruct((T, Np, 2 * hidden), jnp.bfloat16),
        grid=(Np // tn,),
        in_specs=[
            pl.BlockSpec((T, tn, 8 * hidden), lambda i: (0, i, 0)),
            pl.BlockSpec((2 * hidden, 8 * hidden), lambda i: (0, 0)),
        ],
        out_specs=pl.BlockSpec((T, tn, 2 * hidden), lambda i: (0, i, 0)),
        compiler_params=pltpu.CompilerParams(
            dimension_semantics=("parallel",),
            vmem_limit_bytes=_VMEM_LIMIT),
    )(gates_x, whh_blk.astype(jnp.bfloat16))


# ----------------------------------------------------------------------------
# Kernel 4: fused rnn_fc (1x1 conv + ReLU) + rpn_reg/rpn_cls heads.
# Head weights are concatenated and zero-padded to a 128-lane-dense output
# slab; the fc activation never leaves VMEM.
# ----------------------------------------------------------------------------
def _fc_heads_kernel(x_ref, wfc_ref, bfc_ref, wh_ref, bh_ref, o_ref):
    y = jnp.dot(x_ref[...], wfc_ref[...], preferred_element_type=jnp.float32)
    y = jnp.maximum(y + bfc_ref[...], 0.0).astype(jnp.bfloat16)
    h = jnp.dot(y, wh_ref[...], preferred_element_type=jnp.float32) + bh_ref[...]
    o_ref[...] = h.astype(o_ref.dtype)


def fc_heads(x, wfc, bfc, wh, bh, *, tm=512):
    M, Cin = x.shape
    Cfc = wfc.shape[1]
    Nh = wh.shape[1]
    tm = min(tm, _round_up(M, 16))
    Mp = _round_up(M, tm)
    xb = x.astype(jnp.bfloat16)
    if Mp != M:
        xb = jnp.pad(xb, ((0, Mp - M), (0, 0)))
    out = pl.pallas_call(
        _fc_heads_kernel,
        out_shape=jax.ShapeDtypeStruct((Mp, Nh), jnp.float32),
        grid=(Mp // tm,),
        in_specs=[
            pl.BlockSpec((tm, Cin), lambda i: (i, 0)),
            pl.BlockSpec((Cin, Cfc), lambda i: (0, 0)),
            pl.BlockSpec((1, Cfc), lambda i: (0, 0)),
            pl.BlockSpec((Cfc, Nh), lambda i: (0, 0)),
            pl.BlockSpec((1, Nh), lambda i: (0, 0)),
        ],
        out_specs=pl.BlockSpec((tm, Nh), lambda i: (i, 0)),
        compiler_params=pltpu.CompilerParams(
            dimension_semantics=("parallel",),
            vmem_limit_bytes=_VMEM_LIMIT),
    )(xb, wfc.astype(jnp.bfloat16), bfc.reshape(1, Cfc).astype(jnp.float32),
      wh.astype(jnp.bfloat16), bh.reshape(1, Nh).astype(jnp.float32))
    return out[:M] if Mp != M else out


# ----------------------------------------------------------------------------
# CTPN forward (channels-last internally; NCHW only at the boundaries)
# ----------------------------------------------------------------------------
def ctpn_forward(feat, params):
    # TODO(synk): the backbone CNN (cfg.base_model: vgg/resnet/...) is not part
    # of the provided source; `feat` is taken as the backbone's feature map.
    B, C, H, W = feat.shape
    Hd = params["whh_f"].shape[0]

    x = jnp.transpose(feat, (0, 2, 3, 1)).astype(jnp.bfloat16)       # (B, H, W, C)

    # self.rpn: BasicConv(C, C, 3, 1, 1, bn=False) -> 3x3 conv + bias + ReLU
    x = conv3x3_relu_nhwc(x, params["rpn_w"], params["rpn_b"])       # (B, H, W, C)

    # x.permute(3, 0, 2, 1).reshape(w, b*h, c)  (channels-last equivalent)
    N = B * H
    tn = min(128, _round_up(N, 16))
    Np = _round_up(N, tn)
    seq = jnp.transpose(x, (2, 0, 1, 3)).reshape(W, N, C)            # (T, N, C)
    if Np != N:
        seq = jnp.pad(seq, ((0, 0), (0, Np - N), (0, 0)))

    # Hoisted bidirectional input projection: seq @ [Wih_f | Wih_b] + biases.
    # Gates stored in bf16 to halve the HBM round trip.
    wih = jnp.concatenate([params["wih_f"], params["wih_b"]], axis=1)   # (C, 8H)
    bih = jnp.concatenate([params["b_f"], params["b_b"]], axis=0)       # (8H,)
    gates_x = matmul_bias(seq.reshape(W * Np, C), wih, bih,
                          relu=False, out_dtype=jnp.bfloat16)
    gates_x = gates_x.reshape(W, Np, 8 * Hd)

    # Block-diagonal recurrent weight: [h_f | h_b] @ blockdiag(Whh_f, Whh_b).
    whh_blk = jnp.zeros((2 * Hd, 8 * Hd), jnp.float32)
    whh_blk = whh_blk.at[:Hd, :4 * Hd].set(params["whh_f"])
    whh_blk = whh_blk.at[Hd:, 4 * Hd:].set(params["whh_b"])

    rnn_out = bilstm(gates_x, whh_blk, Hd, tn=tn)[:, :N, :]          # (T, N, 2H)

    # reshape(w, b, h, c).permute(1, 3, 2, 0) -> channels-last (B, H, W, 2H)
    xh = jnp.transpose(rnn_out.reshape(W, B, H, 2 * Hd), (1, 2, 0, 3))
    xm = xh.reshape(B * H * W, 2 * Hd)

    # rnn_fc (1x1 + ReLU) fused with rpn_reg / rpn_cls heads (lane-padded to 128).
    n_reg = params["reg_w"].shape[0]
    n_cls = params["cls_w"].shape[0]
    nh_real = n_reg + n_cls
    nh_pad = _round_up(nh_real, 128)
    cfc = params["fc_w"].shape[0]
    wfc = params["fc_w"].reshape(cfc, 2 * Hd).T
    wh_cat = jnp.concatenate(
        [params["reg_w"].reshape(n_reg, cfc),
         params["cls_w"].reshape(n_cls, cfc)], axis=0)               # (nh_real, cfc)
    wh_cat = jnp.pad(wh_cat, ((0, nh_pad - nh_real), (0, 0))).T      # (cfc, nh_pad)
    bh_cat = jnp.pad(jnp.concatenate([params["reg_b"], params["cls_b"]], axis=0),
                     (0, nh_pad - nh_real))
    heads = fc_heads(xm, wfc, params["fc_b"], wh_cat, bh_cat)        # (BHW, nh_pad)

    heads = heads[:, :nh_real].reshape(B, H, W, nh_real)
    rpn_reg = jnp.transpose(heads[..., :n_reg], (0, 3, 1, 2))
    rpn_cls = jnp.transpose(heads[..., n_reg:], (0, 3, 1, 2))
    return rpn_cls, rpn_reg


# ----------------------------------------------------------------------------
# Deterministic parameter init (kaiming-style conv, uniform LSTM, zero bias)
# ----------------------------------------------------------------------------
def init_params(key, *, cfeat, hidden, cfc, num_anchors, num_classes):
    keys = jax.random.split(key, 20)

    def conv_w(k, cout, cin, ks):
        fan_out = cout * ks * ks
        std = (2.0 / fan_out) ** 0.5
        return std * jax.random.normal(k, (cout, cin, ks, ks), jnp.float32)

    def lstm_w(k, rows, cols, hd):
        bound = 1.0 / (hd ** 0.5)
        return jax.random.uniform(k, (rows, cols), jnp.float32, -bound, bound)

    p = {}
    p["rpn_w"] = conv_w(keys[0], cfeat, cfeat, 3)
    p["rpn_b"] = jnp.zeros((cfeat,), jnp.float32)

    # LSTM weights stored pre-transposed for (N, C) @ (C, 4H) matmuls;
    # bias is b_ih + b_hh (sum of two uniform draws). Gate order: i, f, g, o.
    p["wih_f"] = lstm_w(keys[1], cfeat, 4 * hidden, hidden)
    p["whh_f"] = lstm_w(keys[2], hidden, 4 * hidden, hidden)
    p["b_f"] = (lstm_w(keys[3], 1, 4 * hidden, hidden)
                + lstm_w(keys[4], 1, 4 * hidden, hidden)).reshape(-1)
    p["wih_b"] = lstm_w(keys[5], cfeat, 4 * hidden, hidden)
    p["whh_b"] = lstm_w(keys[6], hidden, 4 * hidden, hidden)
    p["b_b"] = (lstm_w(keys[7], 1, 4 * hidden, hidden)
                + lstm_w(keys[8], 1, 4 * hidden, hidden)).reshape(-1)

    p["fc_w"] = conv_w(keys[9], cfc, 2 * hidden, 1)
    p["fc_b"] = jnp.zeros((cfc,), jnp.float32)
    p["reg_w"] = conv_w(keys[10], 4 * num_anchors, cfc, 1)
    p["reg_b"] = jnp.zeros((4 * num_anchors,), jnp.float32)
    p["cls_w"] = conv_w(keys[11], num_classes * num_anchors, cfc, 1)
    p["cls_b"] = jnp.zeros((num_classes * num_anchors,), jnp.float32)
    return p


if __name__ == "__main__":
    # Scaled-down CTPN config (production: C=512, hidden=128, fc=512, A=10):
    # 128 feature channels, LSTM hidden 32 (so 4H=128 gate lanes), rnn_fc 128.
    B, Cfeat, H, W = 2, 128, 8, 8
    hidden, cfc, num_anchors, num_classes = 32, 128, 10, 2

    key = jax.random.PRNGKey(0)
    k_feat, k_params = jax.random.split(key)
    feat = jax.random.normal(k_feat, (B, Cfeat, H, W), jnp.float32)
    params = init_params(k_params, cfeat=Cfeat, hidden=hidden, cfc=cfc,
                         num_anchors=num_anchors, num_classes=num_classes)

    rpn_cls, rpn_reg = jax.jit(ctpn_forward)(feat, params)
    jax.block_until_ready((rpn_cls, rpn_reg))

    assert rpn_cls.shape == (B, num_classes * num_anchors, H, W)
    assert rpn_reg.shape == (B, 4 * num_anchors, H, W)
    print("KERNEL_OK")
</pallas_src>

<mosaic_0001>
module attributes {stable_mosaic.version = 11 : i64} {
  func.func @_conv3x3_kernel(%arg0: i32, %arg1: memref<1x102x128xbf16, #tpu.memory_space<vmem>>, %arg2: memref<9x128x128xbf16, #tpu.memory_space<vmem>>, %arg3: memref<1x128xf32, #tpu.memory_space<vmem>>, %arg4: memref<1x80x128xbf16, #tpu.memory_space<vmem>>, %arg5: memref<80x128xf32, #tpu.memory_space<vmem>>) attributes {dimension_semantics = [#tpu.dimension_semantics<parallel>], iteration_bounds = array<i64: 2>, scalar_prefetch = 0 : i64, scratch_operands = 1 : i64, tpu.core_type = #tpu.core_type<tc>, window_params = [{transform_indices = @transform_0, window_bounds = array<i64: 1, 102, 128>}, {pipeline_mode = #tpu.pipeline_mode<synchronous>, transform_indices = @transform_1, window_bounds = array<i64: 9, 128, 128>}, {pipeline_mode = #tpu.pipeline_mode<synchronous>, transform_indices = @transform_2, window_bounds = array<i64: 1, 128>}, {transform_indices = @transform_3, window_bounds = array<i64: 1, 80, 128>}]} {
    %c0 = arith.constant 0 : index
    %c0_0 = arith.constant 0 : index
    %0 = vector.load %arg3[%c0, %c0_0] : memref<1x128xf32, #tpu.memory_space<vmem>>, vector<1x128xf32>
    %c0_1 = arith.constant 0 : index
    %c0_2 = arith.constant 0 : index
    %c0_3 = arith.constant 0 : index
    %1 = vector.load %arg1[%c0_1, %c0_2, %c0_3] : memref<1x102x128xbf16, #tpu.memory_space<vmem>>, vector<1x80x128xbf16>
    %2 = vector.shape_cast %1 : vector<1x80x128xbf16> to vector<80x128xbf16>
    %c0_4 = arith.constant 0 : index
    %c0_5 = arith.constant 0 : index
    %c0_6 = arith.constant 0 : index
    %3 = vector.load %arg2[%c0_4, %c0_5, %c0_6] : memref<9x128x128xbf16, #tpu.memory_space<vmem>>, vector<1x128x128xbf16>
    %4 = vector.shape_cast %3 : vector<1x128x128xbf16> to vector<128x128xbf16>
    %cst = arith.constant dense<0.000000e+00> : vector<80x128xf32>
    %5 = tpu.matmul %2, %4, %cst {dimension_numbers = #tpu.dot_dimension_numbers<[1], [0], [0], [1], [0, 0, 1, 1], [], []>} : vector<80x128xbf16>, vector<128x128xbf16>, vector<80x128xf32> -> vector<80x128xf32>
    %c0_7 = arith.constant 0 : index
    %c0_8 = arith.constant 0 : index
    %6 = vector.load %arg5[%c0_7, %c0_8] : memref<80x128xf32, #tpu.memory_space<vmem>>, vector<80x128xf32>
    tpu.vector_store %arg5[%c0_7, %c0_8], %5 {strides = array<i32>} : memref<80x128xf32, #tpu.memory_space<vmem>>, vector<80x128xf32>,
    %c0_9 = arith.constant 0 : index
    %c1 = arith.constant 1 : index
    %c0_10 = arith.constant 0 : index
    %7 = vector.load %arg1[%c0_9, %c1, %c0_10] : memref<1x102x128xbf16, #tpu.memory_space<vmem>>, vector<1x80x128xbf16>
    %8 = vector.shape_cast %7 : vector<1x80x128xbf16> to vector<80x128xbf16>
    %c1_11 = arith.constant 1 : index
    %c0_12 = arith.constant 0 : index
    %c0_13 = arith.constant 0 : index
    %9 = vector.load %arg2[%c1_11, %c0_12, %c0_13] : memref<9x128x128xbf16, #tpu.memory_space<vmem>>, vector<1x128x128xbf16>
    %10 = vector.shape_cast %9 : vector<1x128x128xbf16> to vector<128x128xbf16>
    %cst_14 = arith.constant dense<0.000000e+00> : vector<80x128xf32>
    %11 = tpu.matmul %8, %10, %cst_14 {dimension_numbers = #tpu.dot_dimension_numbers<[1], [0], [0], [1], [0, 0, 1, 1], [], []>} : vector<80x128xbf16>, vector<128x128xbf16>, vector<80x128xf32> -> vector<80x128xf32>
    %c0_15 = arith.constant 0 : index
    %c0_16 = arith.constant 0 : index
    %12 = vector.load %arg5[%c0_15, %c0_16] : memref<80x128xf32, #tpu.memory_space<vmem>>, vector<80x128xf32>
    %13 = arith.addf %12, %11 : vector<80x128xf32>
    %c0_17 = arith.constant 0 : index
    %c0_18 = arith.constant 0 : index
    %14 = vector.load %arg5[%c0_17, %c0_18] : memref<80x128xf32, #tpu.memory_space<vmem>>, vector<80x128xf32>
    tpu.vector_store %arg5[%c0_17, %c0_18], %13 {strides = array<i32>} : memref<80x128xf32, #tpu.memory_space<vmem>>, vector<80x128xf32>,
    %c0_19 = arith.constant 0 : index
    %c2 = arith.constant 2 : index
    %c0_20 = arith.constant 0 : index
    %15 = vector.load %arg1[%c0_19, %c2, %c0_20] : memref<1x102x128xbf16, #tpu.memory_space<vmem>>, vector<1x80x128xbf16>
    %16 = vector.shape_cast %15 : vector<1x80x128xbf16> to vector<80x128xbf16>
    %c2_21 = arith.constant 2 : index
    %c0_22 = arith.constant 0 : index
    %c0_23 = arith.constant 0 : index
    %17 = vector.load %arg2[%c2_21, %c0_22, %c0_23] : memref<9x128x128xbf16, #tpu.memory_space<vmem>>, vector<1x128x128xbf16>
    %18 = vector.shape_cast %17 : vector<1x128x128xbf16> to vector<128x128xbf16>
    %cst_24 = arith.constant dense<0.000000e+00> : vector<80x128xf32>
    %19 = tpu.matmul %16, %18, %cst_24 {dimension_numbers = #tpu.dot_dimension_numbers<[1], [0], [0], [1], [0, 0, 1, 1], [], []>} : vector<80x128xbf16>, vector<128x128xbf16>, vector<80x128xf32> -> vector<80x128xf32>
    %c0_25 = arith.constant 0 : index
    %c0_26 = arith.constant 0 : index
    %20 = vector.load %arg5[%c0_25, %c0_26] : memref<80x128xf32, #tpu.memory_space<vmem>>, vector<80x128xf32>
    %21 = arith.addf %20, %19 : vector<80x128xf32>
    %c0_27 = arith.constant 0 : index
    %c0_28 = arith.constant 0 : index
    %22 = vector.load %arg5[%c0_27, %c0_28] : memref<80x128xf32, #tpu.memory_space<vmem>>, vector<80x128xf32>
    tpu.vector_store %arg5[%c0_27, %c0_28], %21 {strides = array<i32>} : memref<80x128xf32, #tpu.memory_space<vmem>>, vector<80x128xf32>,
    %c0_29 = arith.constant 0 : index
    %c10 = arith.constant 10 : index
    %c0_30 = arith.constant 0 : index
    %23 = vector.load %arg1[%c0_29, %c10, %c0_30] : memref<1x102x128xbf16, #tpu.memory_space<vmem>>, vector<1x80x128xbf16>
    %24 = vector.shape_cast %23 : vector<1x80x128xbf16> to vector<80x128xbf16>
    %c3 = arith.constant 3 : index
    %c0_31 = arith.constant 0 : index
    %c0_32 = arith.constant 0 : index
    %25 = vector.load %arg2[%c3, %c0_31, %c0_32] : memref<9x128x128xbf16, #tpu.memory_space<vmem>>, vector<1x128x128xbf16>
    %26 = vector.shape_cast %25 : vector<1x128x128xbf16> to vector<128x128xbf16>
    %cst_33 = arith.constant dense<0.000000e+00> : vector<80x128xf32>
    %27 = tpu.matmul %24, %26, %cst_33 {dimension_numbers = #tpu.dot_dimension_numbers<[1], [0], [0], [1], [0, 0, 1, 1], [], []>} : vector<80x128xbf16>, vector<128x128xbf16>, vector<80x128xf32> -> vector<80x128xf32>
    %c0_34 = arith.constant 0 : index
    %c0_35 = arith.constant 0 : index
    %28 = vector.load %arg5[%c0_34, %c0_35] : memref<80x128xf32, #tpu.memory_space<vmem>>, vector<80x128xf32>
    %29 = arith.addf %28, %27 : vector<80x128xf32>
    %c0_36 = arith.constant 0 : index
    %c0_37 = arith.constant 0 : index
    %30 = vector.load %arg5[%c0_36, %c0_37] : memref<80x128xf32, #tpu.memory_space<vmem>>, vector<80x128xf32>
    tpu.vector_store %arg5[%c0_36, %c0_37], %29 {strides = array<i32>} : memref<80x128xf32, #tpu.memory_space<vmem>>, vector<80x128xf32>,
    %c0_38 = arith.constant 0 : index
    %c11 = arith.constant 11 : index
    %c0_39 = arith.constant 0 : index
    %31 = vector.load %arg1[%c0_38, %c11, %c0_39] : memref<1x102x128xbf16, #tpu.memory_space<vmem>>, vector<1x80x128xbf16>
    %32 = vector.shape_cast %31 : vector<1x80x128xbf16> to vector<80x128xbf16>
    %c4 = arith.constant 4 : index
    %c0_40 = arith.constant 0 : index
    %c0_41 = arith.constant 0 : index
    %33 = vector.load %arg2[%c4, %c0_40, %c0_41] : memref<9x128x128xbf16, #tpu.memory_space<vmem>>, vector<1x128x128xbf16>
    %34 = vector.shape_cast %33 : vector<1x128x128xbf16> to vector<128x128xbf16>
    %cst_42 = arith.constant dense<0.000000e+00> : vector<80x128xf32>
    %35 = tpu.matmul %32, %34, %cst_42 {dimension_numbers = #tpu.dot_dimension_numbers<[1], [0], [0], [1], [0, 0, 1, 1], [], []>} : vector<80x128xbf16>, vector<128x128xbf16>, vector<80x128xf32> -> vector<80x128xf32>
    %c0_43 = arith.constant 0 : index
    %c0_44 = arith.constant 0 : index
    %36 = vector.load %arg5[%c0_43, %c0_44] : memref<80x128xf32, #tpu.memory_space<vmem>>, vector<80x128xf32>
    %37 = arith.addf %36, %35 : vector<80x128xf32>
    %c0_45 = arith.constant 0 : index
    %c0_46 = arith.constant 0 : index
    %38 = vector.load %arg5[%c0_45, %c0_46] : memref<80x128xf32, #tpu.memory_space<vmem>>, vector<80x128xf32>
    tpu.vector_store %arg5[%c0_45, %c0_46], %37 {strides = array<i32>} : memref<80x128xf32, #tpu.memory_space<vmem>>, vector<80x128xf32>,
    %c0_47 = arith.constant 0 : index
    %c12 = arith.constant 12 : index
    %c0_48 = arith.constant 0 : index
    %39 = vector.load %arg1[%c0_47, %c12, %c0_48] : memref<1x102x128xbf16, #tpu.memory_space<vmem>>, vector<1x80x128xbf16>
    %40 = vector.shape_cast %39 : vector<1x80x128xbf16> to vector<80x128xbf16>
    %c5 = arith.constant 5 : index
    %c0_49 = arith.constant 0 : index
    %c0_50 = arith.constant 0 : index
    %41 = vector.load %arg2[%c5, %c0_49, %c0_50] : memref<9x128x128xbf16, #tpu.memory_space<vmem>>, vector<1x128x128xbf16>
    %42 = vector.shape_cast %41 : vector<1x128x128xbf16> to vector<128x128xbf16>
    %cst_51 = arith.constant dense<0.000000e+00> : vector<80x128xf32>
    %43 = tpu.matmul %40, %42, %cst_51 {dimension_numbers = #tpu.dot_dimension_numbers<[1], [0], [0], [1], [0, 0, 1, 1], [], []>} : vector<80x128xbf16>, vector<128x128xbf16>, vector<80x128xf32> -> vector<80x128xf32>
    %c0_52 = arith.constant 0 : index
    %c0_53 = arith.constant 0 : index
    %44 = vector.load %arg5[%c0_52, %c0_53] : memref<80x128xf32, #tpu.memory_space<vmem>>, vector<80x128xf32>
    %45 = arith.addf %44, %43 : vector<80x128xf32>
    %c0_54 = arith.constant 0 : index
    %c0_55 = arith.constant 0 : index
    %46 = vector.load %arg5[%c0_54, %c0_55] : memref<80x128xf32, #tpu.memory_space<vmem>>, vector<80x128xf32>
    tpu.vector_store %arg5[%c0_54, %c0_55], %45 {strides = array<i32>} : memref<80x128xf32, #tpu.memory_space<vmem>>, vector<80x128xf32>,
    %c0_56 = arith.constant 0 : index
    %c20 = arith.constant 20 : index
    %c0_57 = arith.constant 0 : index
    %47 = vector.load %arg1[%c0_56, %c20, %c0_57] : memref<1x102x128xbf16, #tpu.memory_space<vmem>>, vector<1x80x128xbf16>
    %48 = vector.shape_cast %47 : vector<1x80x128xbf16> to vector<80x128xbf16>
    %c6 = arith.constant 6 : index
    %c0_58 = arith.constant 0 : index
    %c0_59 = arith.constant 0 : index
    %49 = vector.load %arg2[%c6, %c0_58, %c0_59] : memref<9x128x128xbf16, #tpu.memory_space<vmem>>, vector<1x128x128xbf16>
    %50 = vector.shape_cast %49 : vector<1x128x128xbf16> to vector<128x128xbf16>
    %cst_60 = arith.constant dense<0.000000e+00> : vector<80x128xf32>
    %51 = tpu.matmul %48, %50, %cst_60 {dimension_numbers = #tpu.dot_dimension_numbers<[1], [0], [0], [1], [0, 0, 1, 1], [], []>} : vector<80x128xbf16>, vector<128x128xbf16>, vector<80x128xf32> -> vector<80x128xf32>
    %c0_61 = arith.constant 0 : index
    %c0_62 = arith.constant 0 : index
    %52 = vector.load %arg5[%c0_61, %c0_62] : memref<80x128xf32, #tpu.memory_space<vmem>>, vector<80x128xf32>
    %53 = arith.addf %52, %51 : vector<80x128xf32>
    %c0_63 = arith.constant 0 : index
    %c0_64 = arith.constant 0 : index
    %54 = vector.load %arg5[%c0_63, %c0_64] : memref<80x128xf32, #tpu.memory_space<vmem>>, vector<80x128xf32>
    tpu.vector_store %arg5[%c0_63, %c0_64], %53 {strides = array<i32>} : memref<80x128xf32, #tpu.memory_space<vmem>>, vector<80x128xf32>,
    %c0_65 = arith.constant 0 : index
    %c21 = arith.constant 21 : index
    %c0_66 = arith.constant 0 : index
    %55 = vector.load %arg1[%c0_65, %c21, %c0_66] : memref<1x102x128xbf16, #tpu.memory_space<vmem>>, vector<1x80x128xbf16>
    %56 = vector.shape_cast %55 : vector<1x80x128xbf16> to vector<80x128xbf16>
    %c7 = arith.constant 7 : index
    %c0_67 = arith.constant 0 : index
    %c0_68 = arith.constant 0 : index
    %57 = vector.load %arg2[%c7, %c0_67, %c0_68] : memref<9x128x128xbf16, #tpu.memory_space<vmem>>, vector<1x128x128xbf16>
    %58 = vector.shape_cast %57 : vector<1x128x128xbf16> to vector<128x128xbf16>
    %cst_69 = arith.constant dense<0.000000e+00> : vector<80x128xf32>
    %59 = tpu.matmul %56, %58, %cst_69 {dimension_numbers = #tpu.dot_dimension_numbers<[1], [0], [0], [1], [0, 0, 1, 1], [], []>} : vector<80x128xbf16>, vector<128x128xbf16>, vector<80x128xf32> -> vector<80x128xf32>
    %c0_70 = arith.constant 0 : index
    %c0_71 = arith.constant 0 : index
    %60 = vector.load %arg5[%c0_70, %c0_71] : memref<80x128xf32, #tpu.memory_space<vmem>>, vector<80x128xf32>
    %61 = arith.addf %60, %59 : vector<80x128xf32>
    %c0_72 = arith.constant 0 : index
    %c0_73 = arith.constant 0 : index
    %62 = vector.load %arg5[%c0_72, %c0_73] : memref<80x128xf32, #tpu.memory_space<vmem>>, vector<80x128xf32>
    tpu.vector_store %arg5[%c0_72, %c0_73], %61 {strides = array<i32>} : memref<80x128xf32, #tpu.memory_space<vmem>>, vector<80x128xf32>,
    %c0_74 = arith.constant 0 : index
    %c22 = arith.constant 22 : index
    %c0_75 = arith.constant 0 : index
    %63 = vector.load %arg1[%c0_74, %c22, %c0_75] : memref<1x102x128xbf16, #tpu.memory_space<vmem>>, vector<1x80x128xbf16>
    %64 = vector.shape_cast %63 : vector<1x80x128xbf16> to vector<80x128xbf16>
    %c8 = arith.constant 8 : index
    %c0_76 = arith.constant 0 : index
    %c0_77 = arith.constant 0 : index
    %65 = vector.load %arg2[%c8, %c0_76, %c0_77] : memref<9x128x128xbf16, #tpu.memory_space<vmem>>, vector<1x128x128xbf16>
    %66 = vector.shape_cast %65 : vector<1x128x128xbf16> to vector<128x128xbf16>
    %cst_78 = arith.constant dense<0.000000e+00> : vector<80x128xf32>
    %67 = tpu.matmul %64, %66, %cst_78 {dimension_numbers = #tpu.dot_dimension_numbers<[1], [0], [0], [1], [0, 0, 1, 1], [], []>} : vector<80x128xbf16>, vector<128x128xbf16>, vector<80x128xf32> -> vector<80x128xf32>
    %c0_79 = arith.constant 0 : index
    %c0_80 = arith.constant 0 : index
    %68 = vector.load %arg5[%c0_79, %c0_80] : memref<80x128xf32, #tpu.memory_space<vmem>>, vector<80x128xf32>
    %69 = arith.addf %68, %67 : vector<80x128xf32>
    %c0_81 = arith.constant 0 : index
    %c0_82 = arith.constant 0 : index
    %70 = vector.load %arg5[%c0_81, %c0_82] : memref<80x128xf32, #tpu.memory_space<vmem>>, vector<80x128xf32>
    tpu.vector_store %arg5[%c0_81, %c0_82], %69 {strides = array<i32>} : memref<80x128xf32, #tpu.memory_space<vmem>>, vector<80x128xf32>,
    %c0_83 = arith.constant 0 : index
    %c0_84 = arith.constant 0 : index
    %71 = vector.load %arg5[%c0_83, %c0_84] : memref<80x128xf32, #tpu.memory_space<vmem>>, vector<80x128xf32>
    %72 = vector.broadcast %0 : vector<1x128xf32> to vector<80x128xf32>
    %73 = arith.addf %71, %72 : vector<80x128xf32>
    %cst_85 = arith.constant 0.000000e+00 : f32
    %74 = vector.broadcast %cst_85 : f32 to vector<80x128xf32>
    %75 = arith.maximumf %73, %74 : vector<80x128xf32>
    %76 = arith.truncf %75 : vector<80x128xf32> to vector<80x128xbf16>
    %c0_86 = arith.constant 0 : index
    %c0_87 = arith.constant 0 : index
    %c0_88 = arith.constant 0 : index
    %77 = vector.load %arg4[%c0_86, %c0_87, %c0_88] : memref<1x80x128xbf16, #tpu.memory_space<vmem>>, vector<1x80x128xbf16>
    %78 = vector.shape_cast %77 : vector<1x80x128xbf16> to vector<80x128xbf16>
    %79 = vector.shape_cast %76 : vector<80x128xbf16> to vector<1x80x128xbf16>
    tpu.vector_store %arg4[%c0_86, %c0_87, %c0_88], %79 {strides = array<i32>} : memref<1x80x128xbf16, #tpu.memory_space<vmem>>, vector<1x80x128xbf16>,
    return
  }
  func.func @transform_0(%arg0: i32) -> (i32, i32, i32) {
    %c0_i32 = arith.constant 0 : i32
    %c0_i32_0 = arith.constant 0 : i32
    %c0_i32_1 = arith.constant 0 : i32
    return %arg0, %c0_i32, %c0_i32_0 : i32, i32, i32
  }
  func.func @transform_1(%arg0: i32) -> (i32, i32, i32) {
    %c0_i32 = arith.constant 0 : i32
    %c0_i32_0 = arith.constant 0 : i32
    %c0_i32_1 = arith.constant 0 : i32
    %c0_i32_2 = arith.constant 0 : i32
    return %c0_i32, %c0_i32_0, %c0_i32_1 : i32, i32, i32
  }
  func.func @transform_2(%arg0: i32) -> (i32, i32) {
    %c0_i32 = arith.constant 0 : i32
    %c0_i32_0 = arith.constant 0 : i32
    %c0_i32_1 = arith.constant 0 : i32
    return %c0_i32, %c0_i32_0 : i32, i32
  }
  func.func @transform_3(%arg0: i32) -> (i32, i32, i32) {
    %c0_i32 = arith.constant 0 : i32
    %c0_i32_0 = arith.constant 0 : i32
    %c0_i32_1 = arith.constant 0 : i32
    return %arg0, %c0_i32, %c0_i32_0 : i32, i32, i32
  }
}

module attributes {stable_mosaic.version = 11 : i64} {
  func.func @_matmul_bias_kernel(%arg0: i32, %arg1: memref<128x128xbf16, #tpu.memory_space<vmem>>, %arg2: memref<128x256xbf16, #tpu.memory_space<vmem>>, %arg3: memref<1x256xf32, #tpu.memory_space<vmem>>, %arg4: memref<128x256xbf16, #tpu.memory_space<vmem>>) attributes {dimension_semantics = [#tpu.dimension_semantics<parallel>], iteration_bounds = array<i64: 1>, scalar_prefetch = 0 : i64, scratch_operands = 0 : i64, tpu.core_type = #tpu.core_type<tc>, window_params = [{transform_indices = @transform_0, window_bounds = array<i64: 128, 128>}, {pipeline_mode = #tpu.pipeline_mode<synchronous>, transform_indices = @transform_1, window_bounds = array<i64: 128, 256>}, {pipeline_mode = #tpu.pipeline_mode<synchronous>, transform_indices = @transform_2, window_bounds = array<i64: 1, 256>}, {transform_indices = @transform_3, window_bounds = array<i64: 128, 256>}]} {
    %c0 = arith.constant 0 : index
    %c0_0 = arith.constant 0 : index
    %0 = vector.load %arg1[%c0, %c0_0] : memref<128x128xbf16, #tpu.memory_space<vmem>>, vector<128x128xbf16>
    %c0_1 = arith.constant 0 : index
    %c0_2 = arith.constant 0 : index
    %1 = vector.load %arg2[%c0_1, %c0_2] : memref<128x256xbf16, #tpu.memory_space<vmem>>, vector<128x256xbf16>
    %cst = arith.constant dense<0.000000e+00> : vector<128x256xf32>
    %2 = tpu.matmul %0, %1, %cst {dimension_numbers = #tpu.dot_dimension_numbers<[1], [0], [0], [1], [0, 0, 1, 1], [], []>} : vector<128x128xbf16>, vector<128x256xbf16>, vector<128x256xf32> -> vector<128x256xf32>
    %c0_3 = arith.constant 0 : index
    %c0_4 = arith.constant 0 : index
    %3 = vector.load %arg3[%c0_3, %c0_4] : memref<1x256xf32, #tpu.memory_space<vmem>>, vector<1x256xf32>
    %4 = vector.broadcast %3 : vector<1x256xf32> to vector<128x256xf32>
    %5 = arith.addf %2, %4 : vector<128x256xf32>
    %6 = arith.truncf %5 : vector<128x256xf32> to vector<128x256xbf16>
    %c0_5 = arith.constant 0 : index
    %c0_6 = arith.constant 0 : index
    %7 = vector.load %arg4[%c0_5, %c0_6] : memref<128x256xbf16, #tpu.memory_space<vmem>>, vector<128x256xbf16>
    tpu.vector_store %arg4[%c0_5, %c0_6], %6 {strides = array<i32>} : memref<128x256xbf16, #tpu.memory_space<vmem>>, vector<128x256xbf16>,
    return
  }
  func.func @transform_0(%arg0: i32) -> (i32, i32) {
    %c0_i32 = arith.constant 0 : i32
    %c0_i32_0 = arith.constant 0 : i32
    return %arg0, %c0_i32 : i32, i32
  }
  func.func @transform_1(%arg0: i32) -> (i32, i32) {
    %c0_i32 = arith.constant 0 : i32
    %c0_i32_0 = arith.constant 0 : i32
    %c0_i32_1 = arith.constant 0 : i32
    return %c0_i32, %c0_i32_0 : i32, i32
  }
  func.func @transform_2(%arg0: i32) -> (i32, i32) {
    %c0_i32 = arith.constant 0 : i32
    %c0_i32_0 = arith.constant 0 : i32
    %c0_i32_1 = arith.constant 0 : i32
    return %c0_i32, %c0_i32_0 : i32, i32
  }
  func.func @transform_3(%arg0: i32) -> (i32, i32) {
    %c0_i32 = arith.constant 0 : i32
    %c0_i32_0 = arith.constant 0 : i32
    return %arg0, %c0_i32 : i32, i32
  }
}

module attributes {stable_mosaic.version = 11 : i64} {
  func.func @_bilstm_kernel(%arg0: i32, %arg1: memref<8x16x256xbf16, #tpu.memory_space<vmem>>, %arg2: memref<64x256xbf16, #tpu.memory_space<vmem>>, %arg3: memref<8x16x64xbf16, #tpu.memory_space<vmem>>) attributes {dimension_semantics = [#tpu.dimension_semantics<parallel>], iteration_bounds = array<i64: 1>, scalar_prefetch = 0 : i64, scratch_operands = 0 : i64, tpu.core_type = #tpu.core_type<tc>, window_params = [{transform_indices = @transform_0, window_bounds = array<i64: 8, 16, 256>}, {pipeline_mode = #tpu.pipeline_mode<synchronous>, transform_indices = @transform_1, window_bounds = array<i64: 64, 256>}, {transform_indices = @transform_2, window_bounds = array<i64: 8, 16, 64>}]} {
    %cst = arith.constant 0.000000e+00 : f32
    %0 = vector.broadcast %cst : f32 to vector<16x32xf32>
    %c0_i32 = arith.constant 0 : i32
    %c8_i32 = arith.constant 8 : i32
    %1 = arith.addi %c0_i32, %c8_i32 : i32
    %c1_i32 = arith.constant 1 : i32
    %2:4 = scf.for %arg4 = %c0_i32 to %1 step %c1_i32 iter_args(%arg5 = %0, %arg6 = %0, %arg7 = %0, %arg8 = %0) -> (vector<16x32xf32>, vector<16x32xf32>, vector<16x32xf32>, vector<16x32xf32>)  : i32 {
      %c7_i32 = arith.constant 7 : i32
      %3 = arith.subi %c7_i32, %arg4 : i32
      %4 = tpu.concatenate %arg5, %arg7 in 1 : vector<16x32xf32>, vector<16x32xf32> -> vector<16x64xf32>
      %5 = arith.truncf %4 : vector<16x64xf32> to vector<16x64xbf16>
      %c0 = arith.constant 0 : index
      %c0_1 = arith.constant 0 : index
      %6 = vector.load %arg2[%c0, %c0_1] : memref<64x256xbf16, #tpu.memory_space<vmem>>, vector<64x256xbf16>
      %cst_2 = arith.constant dense<0.000000e+00> : vector<16x256xf32>
      %7 = tpu.matmul %5, %6, %cst_2 {dimension_numbers = #tpu.dot_dimension_numbers<[1], [0], [0], [1], [0, 0, 1, 1], [], []>} : vector<16x64xbf16>, vector<64x256xbf16>, vector<16x256xf32> -> vector<16x256xf32>
      %8 = arith.index_cast %arg4 : i32 to index
      %c0_3 = arith.constant 0 : index
      %c0_4 = arith.constant 0 : index
      %9 = vector.load %arg1[%8, %c0_3, %c0_4] : memref<8x16x256xbf16, #tpu.memory_space<vmem>>, vector<1x16x256xbf16>
      %10 = vector.shape_cast %9 : vector<1x16x256xbf16> to vector<16x256xbf16>
      %11 = vector.extract_strided_slice %10 {offsets = [0, 0], sizes = [16, 128], strides = [1, 1]} : vector<16x256xbf16> to vector<16x128xbf16>
      %12 = arith.extf %11 : vector<16x128xbf16> to vector<16x128xf32>
      %13 = vector.extract_strided_slice %7 {offsets = [0, 0], sizes = [16, 128], strides = [1, 1]} : vector<16x256xf32> to vector<16x128xf32>
      %14 = arith.addf %12, %13 : vector<16x128xf32>
      %15 = arith.index_cast %3 : i32 to index
      %c0_5 = arith.constant 0 : index
      %c0_6 = arith.constant 0 : index
      %16 = vector.load %arg1[%15, %c0_5, %c0_6] : memref<8x16x256xbf16, #tpu.memory_space<vmem>>, vector<1x16x256xbf16>
      %17 = vector.shape_cast %16 : vector<1x16x256xbf16> to vector<16x256xbf16>
      %18 = vector.extract_strided_slice %17 {offsets = [0, 128], sizes = [16, 128], strides = [1, 1]} : vector<16x256xbf16> to vector<16x128xbf16>
      %19 = arith.extf %18 : vector<16x128xbf16> to vector<16x128xf32>
      %20 = vector.extract_strided_slice %7 {offsets = [0, 128], sizes = [16, 128], strides = [1, 1]} : vector<16x256xf32> to vector<16x128xf32>
      %21 = arith.addf %19, %20 : vector<16x128xf32>
      %22 = vector.extract_strided_slice %14 {offsets = [0, 0], sizes = [16, 32], strides = [1, 1]} : vector<16x128xf32> to vector<16x32xf32>
      %23 = arith.negf %22 : vector<16x32xf32>
      %24 = math.exp %23 : vector<16x32xf32>
      %cst_7 = arith.constant 1.000000e+00 : f32
      %25 = vector.broadcast %cst_7 : f32 to vector<16x32xf32>
      %26 = arith.addf %25, %24 : vector<16x32xf32>
      %27 = arith.divf %25, %26 : vector<16x32xf32>
      %28 = vector.extract_strided_slice %14 {offsets = [0, 32], sizes = [16, 32], strides = [1, 1]} : vector<16x128xf32> to vector<16x32xf32>
      %29 = arith.negf %28 : vector<16x32xf32>
      %30 = math.exp %29 : vector<16x32xf32>
      %cst_8 = arith.constant 1.000000e+00 : f32
      %31 = vector.broadcast %cst_8 : f32 to vector<16x32xf32>
      %32 = arith.addf %31, %30 : vector<16x32xf32>
      %33 = arith.divf %31, %32 : vector<16x32xf32>
      %34 = vector.extract_strided_slice %14 {offsets = [0, 64], sizes = [16, 32], strides = [1, 1]} : vector<16x128xf32> to vector<16x32xf32>
      %35 = math.tanh %34 : vector<16x32xf32>
      %36 = vector.extract_strided_slice %14 {offsets = [0, 96], sizes = [16, 32], strides = [1, 1]} : vector<16x128xf32> to vector<16x32xf32>
      %37 = arith.negf %36 : vector<16x32xf32>
      %38 = math.exp %37 : vector<16x32xf32>
      %cst_9 = arith.constant 1.000000e+00 : f32
      %39 = vector.broadcast %cst_9 : f32 to vector<16x32xf32>
      %40 = arith.addf %39, %38 : vector<16x32xf32>
      %41 = arith.divf %39, %40 : vector<16x32xf32>
      %42 = arith.mulf %33, %arg6 : vector<16x32xf32>
      %43 = arith.mulf %27, %35 : vector<16x32xf32>
      %44 = arith.addf %42, %43 : vector<16x32xf32>
      %45 = math.tanh %44 : vector<16x32xf32>
      %46 = arith.mulf %41, %45 : vector<16x32xf32>
      %47 = vector.extract_strided_slice %21 {offsets = [0, 0], sizes = [16, 32], strides = [1, 1]} : vector<16x128xf32> to vector<16x32xf32>
      %48 = arith.negf %47 : vector<16x32xf32>
      %49 = math.exp %48 : vector<16x32xf32>
      %cst_10 = arith.constant 1.000000e+00 : f32
      %50 = vector.broadcast %cst_10 : f32 to vector<16x32xf32>
      %51 = arith.addf %50, %49 : vector<16x32xf32>
      %52 = arith.divf %50, %51 : vector<16x32xf32>
      %53 = vector.extract_strided_slice %21 {offsets = [0, 32], sizes = [16, 32], strides = [1, 1]} : vector<16x128xf32> to vector<16x32xf32>
      %54 = arith.negf %53 : vector<16x32xf32>
      %55 = math.exp %54 : vector<16x32xf32>
      %cst_11 = arith.constant 1.000000e+00 : f32
      %56 = vector.broadcast %cst_11 : f32 to vector<16x32xf32>
      %57 = arith.addf %56, %55 : vector<16x32xf32>
      %58 = arith.divf %56, %57 : vector<16x32xf32>
      %59 = vector.extract_strided_slice %21 {offsets = [0, 64], sizes = [16, 32], strides = [1, 1]} : vector<16x128xf32> to vector<16x32xf32>
      %60 = math.tanh %59 : vector<16x32xf32>
      %61 = vector.extract_strided_slice %21 {offsets = [0, 96], sizes = [16, 32], strides = [1, 1]} : vector<16x128xf32> to vector<16x32xf32>
      %62 = arith.negf %61 : vector<16x32xf32>
      %63 = math.exp %62 : vector<16x32xf32>
      %cst_12 = arith.constant 1.000000e+00 : f32
      %64 = vector.broadcast %cst_12 : f32 to vector<16x32xf32>
      %65 = arith.addf %64, %63 : vector<16x32xf32>
      %66 = arith.divf %64, %65 : vector<16x32xf32>
      %67 = arith.mulf %58, %arg8 : vector<16x32xf32>
      %68 = arith.mulf %52, %60 : vector<16x32xf32>
      %69 = arith.addf %67, %68 : vector<16x32xf32>
      %70 = math.tanh %69 : vector<16x32xf32>
      %71 = arith.mulf %66, %70 : vector<16x32xf32>
      %72 = arith.truncf %46 : vector<16x32xf32> to vector<16x32xbf16>
      %73 = arith.index_cast %arg4 : i32 to index
      %c0_13 = arith.constant 0 : index
      %c0_14 = arith.constant 0 : index
      %74 = vector.load %arg3[%73, %c0_13, %c0_14] : memref<8x16x64xbf16, #tpu.memory_space<vmem>>, vector<1x16x32xbf16>
      %75 = vector.shape_cast %74 : vector<1x16x32xbf16> to vector<16x32xbf16>
      %76 = vector.shape_cast %72 : vector<16x32xbf16> to vector<1x16x32xbf16>
      tpu.vector_store %arg3[%73, %c0_13, %c0_14], %76 {strides = array<i32>} : memref<8x16x64xbf16, #tpu.memory_space<vmem>>, vector<1x16x32xbf16>,
      %77 = arith.truncf %71 : vector<16x32xf32> to vector<16x32xbf16>
      %78 = arith.index_cast %3 : i32 to index
      %c0_15 = arith.constant 0 : index
      %c32 = arith.constant 32 : index
      %79 = vector.load %arg3[%78, %c0_15, %c32] : memref<8x16x64xbf16, #tpu.memory_space<vmem>>, vector<1x16x32xbf16>
      %80 = vector.shape_cast %79 : vector<1x16x32xbf16> to vector<16x32xbf16>
      %81 = vector.shape_cast %77 : vector<16x32xbf16> to vector<1x16x32xbf16>
      tpu.vector_store %arg3[%78, %c0_15, %c32], %81 {strides = array<i32>} : memref<8x16x64xbf16, #tpu.memory_space<vmem>>, vector<1x16x32xbf16>,
      scf.yield %46, %44, %71, %69 : vector<16x32xf32>, vector<16x32xf32>, vector<16x32xf32>, vector<16x32xf32>
    }
    %c8_i32_0 = arith.constant 8 : i32
    return
  }
  func.func @transform_0(%arg0: i32) -> (i32, i32, i32) {
    %c0_i32 = arith.constant 0 : i32
    %c0_i32_0 = arith.constant 0 : i32
    %c0_i32_1 = arith.constant 0 : i32
    return %c0_i32, %arg0, %c0_i32_0 : i32, i32, i32
  }
  func.func @transform_1(%arg0: i32) -> (i32, i32) {
    %c0_i32 = arith.constant 0 : i32
    %c0_i32_0 = arith.constant 0 : i32
    %c0_i32_1 = arith.constant 0 : i32
    return %c0_i32, %c0_i32_0 : i32, i32
  }
  func.func @transform_2(%arg0: i32) -> (i32, i32, i32) {
    %c0_i32 = arith.constant 0 : i32
    %c0_i32_0 = arith.constant 0 : i32
    %c0_i32_1 = arith.constant 0 : i32
    return %c0_i32, %arg0, %c0_i32_0 : i32, i32, i32
  }
}

module attributes {stable_mosaic.version = 11 : i64} {
  func.func @_fc_heads_kernel(%arg0: i32, %arg1: memref<128x64xbf16, #tpu.memory_space<vmem>>, %arg2: memref<64x128xbf16, #tpu.memory_space<vmem>>, %arg3: memref<1x128xf32, #tpu.memory_space<vmem>>, %arg4: memref<128x128xbf16, #tpu.memory_space<vmem>>, %arg5: memref<1x128xf32, #tpu.memory_space<vmem>>, %arg6: memref<128x128xf32, #tpu.memory_space<vmem>>) attributes {dimension_semantics = [#tpu.dimension_semantics<parallel>], iteration_bounds = array<i64: 1>, scalar_prefetch = 0 : i64, scratch_operands = 0 : i64, tpu.core_type = #tpu.core_type<tc>, window_params = [{transform_indices = @transform_0, window_bounds = array<i64: 128, 64>}, {pipeline_mode = #tpu.pipeline_mode<synchronous>, transform_indices = @transform_1, window_bounds = array<i64: 64, 128>}, {pipeline_mode = #tpu.pipeline_mode<synchronous>, transform_indices = @transform_2, window_bounds = array<i64: 1, 128>}, {pipeline_mode = #tpu.pipeline_mode<synchronous>, transform_indices = @transform_3, window_bounds = array<i64: 128, 128>}, {pipeline_mode = #tpu.pipeline_mode<synchronous>, transform_indices = @transform_4, window_bounds = array<i64: 1, 128>}, {transform_indices = @transform_5, window_bounds = array<i64: 128, 128>}]} {
    %c0 = arith.constant 0 : index
    %c0_0 = arith.constant 0 : index
    %0 = vector.load %arg1[%c0, %c0_0] : memref<128x64xbf16, #tpu.memory_space<vmem>>, vector<128x64xbf16>
    %c0_1 = arith.constant 0 : index
    %c0_2 = arith.constant 0 : index
    %1 = vector.load %arg2[%c0_1, %c0_2] : memref<64x128xbf16, #tpu.memory_space<vmem>>, vector<64x128xbf16>
    %cst = arith.constant dense<0.000000e+00> : vector<128x128xf32>
    %2 = tpu.matmul %0, %1, %cst {dimension_numbers = #tpu.dot_dimension_numbers<[1], [0], [0], [1], [0, 0, 1, 1], [], []>} : vector<128x64xbf16>, vector<64x128xbf16>, vector<128x128xf32> -> vector<128x128xf32>
    %c0_3 = arith.constant 0 : index
    %c0_4 = arith.constant 0 : index
    %3 = vector.load %arg3[%c0_3, %c0_4] : memref<1x128xf32, #tpu.memory_space<vmem>>, vector<1x128xf32>
    %4 = vector.broadcast %3 : vector<1x128xf32> to vector<128x128xf32>
    %5 = arith.addf %2, %4 : vector<128x128xf32>
    %cst_5 = arith.constant 0.000000e+00 : f32
    %6 = vector.broadcast %cst_5 : f32 to vector<128x128xf32>
    %7 = arith.maximumf %5, %6 : vector<128x128xf32>
    %8 = arith.truncf %7 : vector<128x128xf32> to vector<128x128xbf16>
    %c0_6 = arith.constant 0 : index
    %c0_7 = arith.constant 0 : index
    %9 = vector.load %arg4[%c0_6, %c0_7] : memref<128x128xbf16, #tpu.memory_space<vmem>>, vector<128x128xbf16>
    %cst_8 = arith.constant dense<0.000000e+00> : vector<128x128xf32>
    %10 = tpu.matmul %8, %9, %cst_8 {dimension_numbers = #tpu.dot_dimension_numbers<[1], [0], [0], [1], [0, 0, 1, 1], [], []>} : vector<128x128xbf16>, vector<128x128xbf16>, vector<128x128xf32> -> vector<128x128xf32>
    %c0_9 = arith.constant 0 : index
    %c0_10 = arith.constant 0 : index
    %11 = vector.load %arg5[%c0_9, %c0_10] : memref<1x128xf32, #tpu.memory_space<vmem>>, vector<1x128xf32>
    %12 = vector.broadcast %11 : vector<1x128xf32> to vector<128x128xf32>
    %13 = arith.addf %10, %12 : vector<128x128xf32>
    %c0_11 = arith.constant 0 : index
    %c0_12 = arith.constant 0 : index
    %14 = vector.load %arg6[%c0_11, %c0_12] : memref<128x128xf32, #tpu.memory_space<vmem>>, vector<128x128xf32>
    tpu.vector_store %arg6[%c0_11, %c0_12], %13 {strides = array<i32>} : memref<128x128xf32, #tpu.memory_space<vmem>>, vector<128x128xf32>,
    return
  }
  func.func @transform_0(%arg0: i32) -> (i32, i32) {
    %c0_i32 = arith.constant 0 : i32
    %c0_i32_0 = arith.constant 0 : i32
    return %arg0, %c0_i32 : i32, i32
  }
  func.func @transform_1(%arg0: i32) -> (i32, i32) {
    %c0_i32 = arith.constant 0 : i32
    %c0_i32_0 = arith.constant 0 : i32
    %c0_i32_1 = arith.constant 0 : i32
    return %c0_i32, %c0_i32_0 : i32, i32
  }
  func.func @transform_2(%arg0: i32) -> (i32, i32) {
    %c0_i32 = arith.constant 0 : i32
    %c0_i32_0 = arith.constant 0 : i32
    %c0_i32_1 = arith.constant 0 : i32
    return %c0_i32, %c0_i32_0 : i32, i32
  }
  func.func @transform_3(%arg0: i32) -> (i32, i32) {
    %c0_i32 = arith.constant 0 : i32
    %c0_i32_0 = arith.constant 0 : i32
    %c0_i32_1 = arith.constant 0 : i32
    return %c0_i32, %c0_i32_0 : i32, i32
  }
  func.func @transform_4(%arg0: i32) -> (i32, i32) {
    %c0_i32 = arith.constant 0 : i32
    %c0_i32_0 = arith.constant 0 : i32
    %c0_i32_1 = arith.constant 0 : i32
    return %c0_i32, %c0_i32_0 : i32, i32
  }
  func.func @transform_5(%arg0: i32) -> (i32, i32) {
    %c0_i32 = arith.constant 0 : i32
    %c0_i32_0 = arith.constant 0 : i32
    return %arg0, %c0_i32 : i32, i32
  }
}

</mosaic_0001>

<llo_original>
// kernel: ctpn_forward.5
$region0: #{ctpn_forward.5}
  #allocation0 [shape = 'u32[]', space=smem, size = 0x4, offset = 0x4, fixed_abs, tag = 'smem constant byte address 0x4 - core index']
  #allocation1 [shape = 'u32[144,128]{1,0:T(1,128)}', space=vmem, size = 0x12000, scoped, tag = 'internal scratch']
  %s0 = inlined_call_operand.hbm [shape: bf16[128,128], index: 0, kind: input, shape index: {}]
  %s1 = inlined_call_operand.hbm [shape: bf16[128,256], index: 1, kind: input, shape index: {}]
  %s2 = inlined_call_operand.hbm [shape: f32[1,256], index: 2, kind: input, shape index: {}]
  %s3 = inlined_call_operand.hbm [shape: bf16[128,256], index: 3, kind: output, shape index: {}]
  %s4 = sld [smem:[#allocation0]]
  $region34: #{ctpn_forward.5} parent=0
    _
  %s6 = ssub.s32 1, %s4
  %s7 = scalar_select 0, %s6, %s4
  $region1: #{ctpn_forward.5} parent=0
    #allocation2 [shape = 'u8[32768]{0}', space=vmem, size = 0x8000, scoped, tag = 'input window, operand 0, single buffered']
    #allocation3 [shape = 's32[1]{0}', space=sflag, size = 0x4, scoped, tag = 'scoped memory for ctpn_forward.5']
    #allocation4 [shape = 's32[1]{0}', space=sflag, size = 0x4, scoped, tag = 'scoped memory for ctpn_forward.5']
    #allocation5 [shape = 'u8[65536]{0}', space=vmem, size = 0x10000, scoped, tag = 'input window, operand 1, single buffered']
    #allocation6 [shape = 's32[1]{0}', space=sflag, size = 0x4, scoped, tag = 'scoped memory for ctpn_forward.5']
    #allocation7 [shape = 'u8[1024]{0}', space=vmem, size = 0x400, scoped, tag = 'input window, operand 2, single buffered']
    #allocation8 [shape = 'u8[65536]{0}', space=vmem, size = 0x10000, scoped, tag = 'output window, operand 0, single buffered']
    %8 = vsyncpa [#allocation3], 0
    %9 = vsyncpa [#allocation6], 0
    %10 = vsyncpa [#allocation4], 0
    // Predicated region
    $region2: #{ctpn_forward.5} parent=1 // pred_check
      _
    $region3: #{ctpn_forward.5} parent=1 // pred_check_branch
      %12 = sbr.rel (0) target = $region5
    $region4: #{ctpn_forward.5} parent=1 // pred_region
      %s14 = ssub.s32 1024, 1024
      %15 = vsyncadd [#allocation3], %s14
      %s16 = sshll.u32 [#allocation2], 4
      %s17 = int_to_ptr.vmem [resolvable:$true] %s16
      %22 = dma.hbm_to_vmem [thread:$0]  %s0, 1024, %s17, [#allocation3], 64, 64, 4
    $region5: #{ctpn_forward.5} parent=1 // pred_fallthru
      _
    // Predicated region
    $region6: #{ctpn_forward.5} parent=1 // pred_check
      _
    $region7: #{ctpn_forward.5} parent=1 // pred_check_branch
      %24 = sbr.rel (0) target = $region9
    $region8: #{ctpn_forward.5} parent=1 // pred_region
      %s26 = ssub.s32 2048, 2048
      %27 = vsyncadd [#allocation6], %s26
      %s28 = sshll.u32 [#allocation5], 4
      %s29 = int_to_ptr.vmem [resolvable:$true] %s28
      %34 = dma.hbm_to_vmem [thread:$0]  %s1, 2048, %s29, [#allocation6], 128, 128, 8
    $region9: #{ctpn_forward.5} parent=1 // pred_fallthru
      _
    // Predicated region
    $region10: #{ctpn_forward.5} parent=1 // pred_check
      _
    $region11: #{ctpn_forward.5} parent=1 // pred_check_branch
      %36 = sbr.rel (0) target = $region13
    $region12: #{ctpn_forward.5} parent=1 // pred_region
      %s38 = ssub.s32 32, 32
      %39 = vsyncadd [#allocation6], %s38
      %s41 = sshll.u32 [#allocation7], 4
      %s42 = int_to_ptr.vmem [resolvable:$true] %s41
      %44 = dma.hbm_to_vmem [thread:$0]  %s2, 32, %s42, [#allocation6]
    $region13: #{ctpn_forward.5} parent=1 // pred_fallthru
      _
    // Predicated region
    $region14: #{ctpn_forward.5} parent=1 // pred_check
      _
    $region15: #{ctpn_forward.5} parent=1 // pred_check_branch
      %46 = sbr.rel (0) target = $region17
    $region16: #{ctpn_forward.5} parent=1 // pred_region
      %47 = dma.done [#allocation3], 1024
    $region17: #{ctpn_forward.5} parent=1 // pred_fallthru
      _
    // Predicated region
    $region18: #{ctpn_forward.5} parent=1 // pred_check
      _
    $region19: #{ctpn_forward.5} parent=1 // pred_check_branch
      %49 = sbr.rel (0) target = $region21
    $region20: #{ctpn_forward.5} parent=1 // pred_region
      %50 = dma.done [#allocation6], 2048
    $region21: #{ctpn_forward.5} parent=1 // pred_fallthru
      _
    // Predicated region
    $region22: #{ctpn_forward.5} parent=1 // pred_check
      _
    $region23: #{ctpn_forward.5} parent=1 // pred_check_branch
      %52 = sbr.rel (0) target = $region25
    $region24: #{ctpn_forward.5} parent=1 // pred_region
      %53 = dma.done [#allocation6], 32
    $region25: #{ctpn_forward.5} parent=1 // pred_fallthru
      _
    %v55 = vld [vmem:[#allocation2] sm:$0xf]
    %v56 = vld [vmem:[#allocation2 + $0x4] sm:$0xf]
    %v57 = vld [vmem:[#allocation2 + $0x8] sm:$0xf]
    %v58 = vld [vmem:[#allocation2 + $0xc] sm:$0xf]
    %v59 = vld [vmem:[#allocation2 + $0x10] sm:$0xf]
    %v60 = vld [vmem:[#allocation2 + $0x14] sm:$0xf]
    %v61 = vld [vmem:[#allocation2 + $0x18] sm:$0xf]
    %v62 = vld [vmem:[#allocation2 + $0x1c] sm:$0xf]
    %v63 = vld [vmem:[#allocation2 + $0x20] sm:$0xf]
    %v64 = vld [vmem:[#allocation2 + $0x24] sm:$0xf]
    %v65 = vld [vmem:[#allocation2 + $0x28] sm:$0xf]
    %v66 = vld [vmem:[#allocation2 + $0x2c] sm:$0xf]
    %v67 = vld [vmem:[#allocation2 + $0x30] sm:$0xf]
    %v68 = vld [vmem:[#allocation2 + $0x34] sm:$0xf]
    %v69 = vld [vmem:[#allocation2 + $0x38] sm:$0xf]
    %v70 = vld [vmem:[#allocation2 + $0x3c] sm:$0xf]
    %v71 = vld [vmem:[#allocation5] sm:$0xff]
    %v72 = vld [vmem:[#allocation5 + $0x8] sm:$0xff]
    %v73 = vld [vmem:[#allocation5 + $0x10] sm:$0xff]
    %v74 = vld [vmem:[#allocation5 + $0x18] sm:$0xff]
    %v75 = vld [vmem:[#allocation5 + $0x20] sm:$0xff]
    %v76 = vld [vmem:[#allocation5 + $0x28] sm:$0xff]
    %v77 = vld [vmem:[#allocation5 + $0x30] sm:$0xff]
    %v78 = vld [vmem:[#allocation5 + $0x38] sm:$0xff]
    %v79 = vld [vmem:[#allocation5 + $0x40] sm:$0xff]
    %v80 = vld [vmem:[#allocation5 + $0x48] sm:$0xff]
    %v81 = vld [vmem:[#allocation5 + $0x50] sm:$0xff]
    %v82 = vld [vmem:[#allocation5 + $0x58] sm:$0xff]
    %v83 = vld [vmem:[#allocation5 + $0x60] sm:$0xff]
    %v84 = vld [vmem:[#allocation5 + $0x68] sm:$0xff]
    %v85 = vld [vmem:[#allocation5 + $0x70] sm:$0xff]
    %v86 = vld [vmem:[#allocation5 + $0x78] sm:$0xff]
    %v87 = vld [vmem:[#allocation7] sm:$0x3]
    %v89 = vlaneseq
    %v90 = vshrl.u32 %v89, 7
    %v91 = vsub.s32 0, %v90
    %v92 = vrot.slane %v87, %v91
    %v93 = vlaneseq
    %v94 = vshrl.u32 %v93, 7
    %v95 = vsub.s32 1, %v94
    %v96 = vrot.slane %v87, %v95
    %v115 = vunpack.c.l.b16 %v55
    %v116 = vunpack.c.l.b16 %v56
    %v117 = vunpack.c.l.b16 %v57
    %v118 = vunpack.c.l.b16 %v58
    %v119 = vunpack.c.l.b16 %v59
    %v120 = vunpack.c.l.b16 %v60
    %v121 = vunpack.c.l.b16 %v61
    %v122 = vunpack.c.l.b16 %v62
    %v123 = vunpack.c.l.b16 %v63
    %v124 = vunpack.c.l.b16 %v64
    %v125 = vunpack.c.l.b16 %v65
    %v126 = vunpack.c.l.b16 %v66
    %v127 = vunpack.c.l.b16 %v67
    %v128 = vunpack.c.l.b16 %v68
    %v129 = vunpack.c.l.b16 %v69
    %v130 = vunpack.c.l.b16 %v70
    %v131 = vpack.c.b16 %v116, %v115
    %v132 = vpack.c.b16 %v118, %v117
    %v133 = vpack.c.b16 %v120, %v119
    %v134 = vpack.c.b16 %v122, %v121
    %v135 = vpack.c.b16 %v124, %v123
    %v136 = vpack.c.b16 %v126, %v125
    %v137 = vpack.c.b16 %v128, %v127
    %v138 = vpack.c.b16 %v130, %v129
    %v163 = vunpack.c.l.b16 %v71
    %v164 = vunpack.c.h.b16 %v71
    %v165 = vunpack.c.l.b16 %v72
    %v166 = vunpack.c.h.b16 %v72
    %v167 = vunpack.c.l.b16 %v73
    %v168 = vunpack.c.h.b16 %v73
    %v169 = vunpack.c.l.b16 %v74
    %v170 = vunpack.c.h.b16 %v74
    %v171 = vunpack.c.l.b16 %v75
    %v172 = vunpack.c.h.b16 %v75
    %v173 = vunpack.c.l.b16 %v76
    %v174 = vunpack.c.h.b16 %v76
    %v175 = vunpack.c.l.b16 %v77
    %v176 = vunpack.c.h.b16 %v77
    %v177 = vunpack.c.l.b16 %v78
    %v178 = vunpack.c.h.b16 %v78
    %v179 = vunpack.c.l.b16 %v79
    %v180 = vunpack.c.h.b16 %v79
    %v181 = vunpack.c.l.b16 %v80
    %v182 = vunpack.c.h.b16 %v80
    %v183 = vunpack.c.l.b16 %v81
    %v184 = vunpack.c.h.b16 %v81
    %v185 = vunpack.c.l.b16 %v82
    %v186 = vunpack.c.h.b16 %v82
    %v187 = vunpack.c.l.b16 %v83
    %v188 = vunpack.c.h.b16 %v83
    %v189 = vunpack.c.l.b16 %v84
    %v190 = vunpack.c.h.b16 %v84
    %v191 = vunpack.c.l.b16 %v85
    %v192 = vunpack.c.h.b16 %v85
    %v193 = vunpack.c.l.b16 %v86
    %v194 = vunpack.c.h.b16 %v86
    %v195 = vpack.c.b16 %v165, %v163
    %v196 = vpack.c.b16 %v166, %v164
    %v197 = vpack.c.b16 %v169, %v167
    %v198 = vpack.c.b16 %v170, %v168
    %v199 = vpack.c.b16 %v173, %v171
    %v200 = vpack.c.b16 %v174, %v172
    %v201 = vpack.c.b16 %v177, %v175
    %v202 = vpack.c.b16 %v178, %v176
    %v203 = vpack.c.b16 %v181, %v179
    %v204 = vpack.c.b16 %v182, %v180
    %v205 = vpack.c.b16 %v185, %v183
    %v206 = vpack.c.b16 %v186, %v184
    %v207 = vpack.c.b16 %v189, %v187
    %v208 = vpack.c.b16 %v190, %v188
    %v209 = vpack.c.b16 %v193, %v191
    %v210 = vpack.c.b16 %v194, %v192
    %227 = vmatprep.subr.bf16.mxu0 %v196
    %228 = vmatpush1.bf16.msra.mxu0 %v195
    %229 = vmatprep.subr.bf16.mxu0 %v198
    %230 = vmatpush1.bf16.msra.mxu0 %v197
    %231 = vmatprep.subr.bf16.mxu0 %v200
    %232 = vmatpush1.bf16.msra.mxu0 %v199
    %233 = vmatprep.subr.bf16.mxu0 %v202
    %234 = vmatpush1.bf16.msra.mxu0 %v201
    %235 = vmatprep.subr.bf16.mxu0 %v204
    %236 = vmatpush1.bf16.msra.mxu0 %v203
    %237 = vmatprep.subr.bf16.mxu0 %v206
    %238 = vmatpush1.bf16.msra.mxu0 %v205
    %239 = vmatprep.subr.bf16.mxu0 %v208
    %240 = vmatpush1.bf16.msra.mxu0 %v207
    %241 = vmatprep.subr.bf16.mxu0 %v210
    %242 = vmatpush1.bf16.msra.mxu0 %v209
    %243 = vmatprep.subr.bf16.mxu0 0
    %244 = vmatpush1.bf16.msra.mxu0 0
    %245 = vmatprep.subr.bf16.mxu0 0
    %246 = vmatpush1.bf16.msra.mxu0 0
    %247 = vmatprep.subr.bf16.mxu0 0
    %248 = vmatpush1.bf16.msra.mxu0 0
    %249 = vmatprep.subr.bf16.mxu0 0
    %250 = vmatpush1.bf16.msra.mxu0 0
    %251 = vmatprep.subr.bf16.mxu0 0
    %252 = vmatpush1.bf16.msra.mxu0 0
    %253 = vmatprep.subr.bf16.mxu0 0
    %254 = vmatpush1.bf16.msra.mxu0 0
    %255 = vmatprep.subr.bf16.mxu0 0
    %256 = vmatpush1.bf16.msra.mxu0 0
    %257 = vmatprep.subr.bf16.mxu0 0
    %258 = vmatpush1.bf16.msra.mxu0 0
    %259 = vmatprep.mubr.bf16.mxu0 0
    %260 = vmatmul.mubr.bf16.gmra.mrb[0].mxu0 %v131
    %v261 = vpop.f32.mrb[0].mxu0
    %v262 = vadd.f32 %v92, %v261
    %v263 = vpop.f32.mrb[0].mxu0
    %v264 = vadd.f32 %v96, %v263
    %v265 = vpop.f32.mrb[0].mxu0
    %v266 = vadd.f32 %v92, %v265
    %v267 = vpop.f32.mrb[0].mxu0
    %v268 = vadd.f32 %v96, %v267
    %269 = vmatprep.mubr.bf16.mxu0 0
    %270 = vmatmul.mubr.bf16.gmra.mrb[0].mxu0 %v132
    %v271 = vpop.f32.mrb[0].mxu0
    %v272 = vadd.f32 %v92, %v271
    %v273 = vpop.f32.mrb[0].mxu0
    %v274 = vadd.f32 %v96, %v273
    %v275 = vpop.f32.mrb[0].mxu0
    %v276 = vadd.f32 %v92, %v275
    %v277 = vpop.f32.mrb[0].mxu0
    %v278 = vadd.f32 %v96, %v277
    %279 = vmatprep.mubr.bf16.mxu0 0
    %280 = vmatmul.mubr.bf16.gmra.mrb[0].mxu0 %v133
    %v281 = vpop.f32.mrb[0].mxu0
    %v282 = vadd.f32 %v92, %v281
    %v283 = vpop.f32.mrb[0].mxu0
    %v284 = vadd.f32 %v96, %v283
    %v285 = vpop.f32.mrb[0].mxu0
    %v286 = vadd.f32 %v92, %v285
    %v287 = vpop.f32.mrb[0].mxu0
    %v288 = vadd.f32 %v96, %v287
    %289 = vmatprep.mubr.bf16.mxu0 0
    %290 = vmatmul.mubr.bf16.gmra.mrb[0].mxu0 %v134
    %v291 = vpop.f32.mrb[0].mxu0
    %v292 = vadd.f32 %v92, %v291
    %v293 = vpop.f32.mrb[0].mxu0
    %v294 = vadd.f32 %v96, %v293
    %v295 = vpop.f32.mrb[0].mxu0
    %v296 = vadd.f32 %v92, %v295
    %v297 = vpop.f32.mrb[0].mxu0
    %v298 = vadd.f32 %v96, %v297
    %299 = vmatprep.mubr.bf16.mxu0 0
    %300 = vmatmul.mubr.bf16.gmra.mrb[0].mxu0 %v135
    %v301 = vpop.f32.mrb[0].mxu0
    %v302 = vadd.f32 %v92, %v301
    %v303 = vpop.f32.mrb[0].mxu0
    %v304 = vadd.f32 %v96, %v303
    %v305 = vpop.f32.mrb[0].mxu0
    %v306 = vadd.f32 %v92, %v305
    %v307 = vpop.f32.mrb[0].mxu0
    %v308 = vadd.f32 %v96, %v307
    %309 = vmatprep.mubr.bf16.mxu0 0
    %310 = vmatmul.mubr.bf16.gmra.mrb[0].mxu0 %v136
    %v311 = vpop.f32.mrb[0].mxu0
    %v312 = vadd.f32 %v92, %v311
    %v313 = vpop.f32.mrb[0].mxu0
    %v314 = vadd.f32 %v96, %v313
    %v315 = vpop.f32.mrb[0].mxu0
    %v316 = vadd.f32 %v92, %v315
    %v317 = vpop.f32.mrb[0].mxu0
    %v318 = vadd.f32 %v96, %v317
    %319 = vmatprep.mubr.bf16.mxu0 0
    %320 = vmatmul.mubr.bf16.gmra.mrb[0].mxu0 %v137
    %v321 = vpop.f32.mrb[0].mxu0
    %v322 = vadd.f32 %v92, %v321
    %v323 = vpop.f32.mrb[0].mxu0
    %v324 = vadd.f32 %v96, %v323
    %v325 = vpop.f32.mrb[0].mxu0
    %v326 = vadd.f32 %v92, %v325
    %v327 = vpop.f32.mrb[0].mxu0
    %v328 = vadd.f32 %v96, %v327
    %329 = vmatprep.mubr.bf16.mxu0 0
    %330 = vmatmul.mubr.bf16.gmra.mrb[0].mxu0 %v138
    %v331 = vpop.f32.mrb[0].mxu0
    %v332 = vadd.f32 %v92, %v331
    %v333 = vpop.f32.mrb[0].mxu0
    %v334 = vadd.f32 %v96, %v333
    %v335 = vpop.f32.mrb[0].mxu0
    %v336 = vadd.f32 %v92, %v335
    %v337 = vpop.f32.mrb[0].mxu0
    %v338 = vadd.f32 %v96, %v337
    %339 = vdwg.mxu0
    %v340 = vpack.c.bf16 %v266, %v262
    %v341 = vpack.c.bf16 %v268, %v264
    %v342 = vpack.c.bf16 %v276, %v272
    %v343 = vpack.c.bf16 %v278, %v274
    %v344 = vpack.c.bf16 %v286, %v282
    %v345 = vpack.c.bf16 %v288, %v284
    %v346 = vpack.c.bf16 %v296, %v292
    %v347 = vpack.c.bf16 %v298, %v294
    %v348 = vpack.c.bf16 %v306, %v302
    %v349 = vpack.c.bf16 %v308, %v304
    %v350 = vpack.c.bf16 %v316, %v312
    %v351 = vpack.c.bf16 %v318, %v314
    %v352 = vpack.c.bf16 %v326, %v322
    %v353 = vpack.c.bf16 %v328, %v324
    %v354 = vpack.c.bf16 %v336, %v332
    %v355 = vpack.c.bf16 %v338, %v334
    %v372 = vunpack.c.l.b16 %v340
    %v373 = vunpack.c.l.b16 %v341
    %v374 = vunpack.c.h.b16 %v340
    %v375 = vunpack.c.h.b16 %v341
    %v376 = vunpack.c.l.b16 %v342
    %v377 = vunpack.c.l.b16 %v343
    %v378 = vunpack.c.h.b16 %v342
    %v379 = vunpack.c.h.b16 %v343
    %v380 = vunpack.c.l.b16 %v344
    %v381 = vunpack.c.l.b16 %v345
    %v382 = vunpack.c.h.b16 %v344
    %v383 = vunpack.c.h.b16 %v345
    %v384 = vunpack.c.l.b16 %v346
    %v385 = vunpack.c.l.b16 %v347
    %v386 = vunpack.c.h.b16 %v346
    %v387 = vunpack.c.h.b16 %v347
    %v388 = vunpack.c.l.b16 %v348
    %v389 = vunpack.c.l.b16 %v349
    %v390 = vunpack.c.h.b16 %v348
    %v391 = vunpack.c.h.b16 %v349
    %v392 = vunpack.c.l.b16 %v350
    %v393 = vunpack.c.l.b16 %v351
    %v394 = vunpack.c.h.b16 %v350
    %v395 = vunpack.c.h.b16 %v351
    %v396 = vunpack.c.l.b16 %v352
    %v397 = vunpack.c.l.b16 %v353
    %v398 = vunpack.c.h.b16 %v352
    %v399 = vunpack.c.h.b16 %v353
    %v400 = vunpack.c.l.b16 %v354
    %v401 = vunpack.c.l.b16 %v355
    %v402 = vunpack.c.h.b16 %v354
    %v403 = vunpack.c.h.b16 %v355
    %v404 = vpack.c.b16 %v373, %v372
    %v405 = vpack.c.b16 %v375, %v374
    %v406 = vpack.c.b16 %v377, %v376
    %v407 = vpack.c.b16 %v379, %v378
    %v408 = vpack.c.b16 %v381, %v380
    %v409 = vpack.c.b16 %v383, %v382
    %v410 = vpack.c.b16 %v385, %v384
    %v411 = vpack.c.b16 %v387, %v386
    %v412 = vpack.c.b16 %v389, %v388
    %v413 = vpack.c.b16 %v391, %v390
    %v414 = vpack.c.b16 %v393, %v392
    %v415 = vpack.c.b16 %v395, %v394
    %v416 = vpack.c.b16 %v397, %v396
    %v417 = vpack.c.b16 %v399, %v398
    %v418 = vpack.c.b16 %v401, %v400
    %v419 = vpack.c.b16 %v403, %v402
    %436 = vst [vmem:[#allocation8] sm:$0xff] %v404
    %437 = vst [vmem:[#allocation8 + $0x8] sm:$0xff] %v405
    %438 = vst [vmem:[#allocation8 + $0x10] sm:$0xff] %v406
    %439 = vst [vmem:[#allocation8 + $0x18] sm:$0xff] %v407
    %440 = vst [vmem:[#allocation8 + $0x20] sm:$0xff] %v408
    %441 = vst [vmem:[#allocation8 + $0x28] sm:$0xff] %v409
    %442 = vst [vmem:[#allocation8 + $0x30] sm:$0xff] %v410
    %443 = vst [vmem:[#allocation8 + $0x38] sm:$0xff] %v411
    %444 = vst [vmem:[#allocation8 + $0x40] sm:$0xff] %v412
    %445 = vst [vmem:[#allocation8 + $0x48] sm:$0xff] %v413
    %446 = vst [vmem:[#allocation8 + $0x50] sm:$0xff] %v414
    %447 = vst [vmem:[#allocation8 + $0x58] sm:$0xff] %v415
    %448 = vst [vmem:[#allocation8 + $0x60] sm:$0xff] %v416
    %449 = vst [vmem:[#allocation8 + $0x68] sm:$0xff] %v417
    %450 = vst [vmem:[#allocation8 + $0x70] sm:$0xff] %v418
    %451 = vst [vmem:[#allocation8 + $0x78] sm:$0xff] %v419
    // Predicated region
    $region26: #{ctpn_forward.5} parent=1 // pred_check
      _
    $region27: #{ctpn_forward.5} parent=1 // pred_check_branch
      %453 = sbr.rel (0) target = $region29
    $region28: #{ctpn_forward.5} parent=1 // pred_region
      %s455 = ssub.s32 2048, 2048
      %456 = vsyncadd [#allocation4], %s455
      %s457 = sshll.u32 [#allocation8], 4
      %s458 = int_to_ptr.vmem [resolvable:$true] %s457
      %463 = dma.vmem_to_hbm [thread:$0]  %s458, 2048, %s3, [#allocation4], 128, 128, 8
    $region29: #{ctpn_forward.5} parent=1 // pred_fallthru
      _
    // Predicated region
    $region30: #{ctpn_forward.5} parent=1 // pred_check
      _
    $region31: #{ctpn_forward.5} parent=1 // pred_check_branch
      %465 = sbr.rel (0) target = $region33
    $region32: #{ctpn_forward.5} parent=1 // pred_region
      %466 = dma.done [#allocation4], 2048
    $region33: #{ctpn_forward.5} parent=1 // pred_fallthru
      _
    %467 = vsyncpa [#allocation3], 1
    %468 = vsyncpa [#allocation6], 1
    %469 = vsyncpa [#allocation4], 1

// kernel: ctpn_forward.6
$region0: #{ctpn_forward.6}
  #allocation0 [shape = 'u32[]', space=smem, size = 0x4, offset = 0x4, fixed_abs, tag = 'smem constant byte address 0x4 - core index']
  #allocation1 [shape = 'u32[144,128]{1,0:T(1,128)}', space=vmem, size = 0x12000, scoped, tag = 'internal scratch']
  %s0 = inlined_call_operand.hbm [shape: bf16[8,16,256], index: 0, kind: input, shape index: {}]
  %s1 = inlined_call_operand.hbm [shape: bf16[64,256], index: 1, kind: input, shape index: {}]
  %s2 = inlined_call_operand.hbm [shape: bf16[8,16,64], index: 2, kind: output, shape index: {}]
  %s3 = sld [smem:[#allocation0]]
  $region33: #{ctpn_forward.6} parent=0
    _
  %s5 = ssub.s32 1, %s3
  %s6 = scalar_select 0, %s5, %s3
  $region1: #{ctpn_forward.6} parent=0
    #allocation2 [shape = 'u8[65536]{0}', space=vmem, size = 0x10000, scoped, tag = 'input window, operand 0, single buffered']
    #allocation3 [shape = 's32[1]{0}', space=sflag, size = 0x4, scoped, tag = 'scoped memory for ctpn_forward.6']
    #allocation4 [shape = 's32[1]{0}', space=sflag, size = 0x4, scoped, tag = 'scoped memory for ctpn_forward.6']
    #allocation5 [shape = 'u8[32768]{0}', space=vmem, size = 0x8000, scoped, tag = 'input window, operand 1, single buffered']
    #allocation6 [shape = 's32[1]{0}', space=sflag, size = 0x4, scoped, tag = 'scoped memory for ctpn_forward.6']
    #allocation7 [shape = 'u8[32768]{0}', space=vmem, size = 0x8000, scoped, tag = 'output window, operand 0, single buffered']
    %7 = vsyncpa [#allocation3], 0
    %8 = vsyncpa [#allocation6], 0
    %9 = vsyncpa [#allocation4], 0
    // Predicated region
    $region2: #{ctpn_forward.6} parent=1 // pred_check
      _
    $region3: #{ctpn_forward.6} parent=1 // pred_check_branch
      %11 = sbr.rel (0) target = $region5
    $region4: #{ctpn_forward.6} parent=1 // pred_region
      %s13 = ssub.s32 2048, 2048
      %14 = vsyncadd [#allocation3], %s13
      %s15 = sshll.u32 [#allocation2], 4
      %s16 = int_to_ptr.vmem [resolvable:$true] %s15
      %21 = dma.hbm_to_vmem [thread:$0]  %s0, 2048, %s16, [#allocation3], 128, 128, 8
    $region5: #{ctpn_forward.6} parent=1 // pred_fallthru
      _
    // Predicated region
    $region6: #{ctpn_forward.6} parent=1 // pred_check
      _
    $region7: #{ctpn_forward.6} parent=1 // pred_check_branch
      %23 = sbr.rel (0) target = $region9
    $region8: #{ctpn_forward.6} parent=1 // pred_region
      %s25 = ssub.s32 1024, 1024
      %26 = vsyncadd [#allocation6], %s25
      %s27 = sshll.u32 [#allocation5], 4
      %s28 = int_to_ptr.vmem [resolvable:$true] %s27
      %33 = dma.hbm_to_vmem [thread:$0]  %s1, 1024, %s28, [#allocation6], 128, 128, 8
    $region9: #{ctpn_forward.6} parent=1 // pred_fallthru
      _
    // Predicated region
    $region10: #{ctpn_forward.6} parent=1 // pred_check
      _
    $region11: #{ctpn_forward.6} parent=1 // pred_check_branch
      %35 = sbr.rel (0) target = $region13
    $region12: #{ctpn_forward.6} parent=1 // pred_region
      %36 = dma.done [#allocation3], 2048
    $region13: #{ctpn_forward.6} parent=1 // pred_fallthru
      _
    // Predicated region
    $region14: #{ctpn_forward.6} parent=1 // pred_check
      _
    $region15: #{ctpn_forward.6} parent=1 // pred_check_branch
      %38 = sbr.rel (0) target = $region17
    $region16: #{ctpn_forward.6} parent=1 // pred_region
      %39 = dma.done [#allocation6], 1024
    $region17: #{ctpn_forward.6} parent=1 // pred_fallthru
      _
    loop: start=0, step=1, limit=8
    $region18: #{ctpn_forward.6} parent=1 // loop_pre_header
      _
    $region19: #{ctpn_forward.6} parent=1 // loop_header
      %s42 = sphi 0, %s46
      %p43 = scmp.ge.s32.totalorder %s42, 8
      %v47 = vphi 0.0, %v241
      %v48 = vphi 0.0, %v242
      %v49 = vphi 0.0, %v229
      %v50 = vphi 0.0, %v230
      %v51 = vphi 0.0, %v289
      %v52 = vphi 0.0, %v290
      %v53 = vphi 0.0, %v277
      %v54 = vphi 0.0, %v278
    $region20: #{ctpn_forward.6} parent=1 // loop_header_branch
      %45 = sbr.rel (%p43) target = $region24
    $region21: #{ctpn_forward.6} parent=1 // loop_body
      %s55 = ssub.s32 7, %s42
      %58 = vrot.lane.b32.xlu0 %v47, 32
      %v59 = vpop.permute.xlu0 %58
      %60 = vrot.lane.b32.xlu0 %v48, 32
      %v61 = vpop.permute.xlu0 %60
      %66 = vrot.lane.b32.xlu0 %v51, 64
      %v67 = vpop.permute.xlu0 %66
      %68 = vrot.lane.b32.xlu0 %v52, 64
      %v69 = vpop.permute.xlu0 %68
      %vm72 = vcmask 261120
      %v73 = vsel %vm72, %v59, %v67
      %v74 = vsel %vm72, %v61, %v69
      %v75 = vpack.c.bf16 %v74, %v73
      %v76 = vld [vmem:[#allocation5] sm:$0xff]
      %v77 = vld [vmem:[#allocation5 + $0x8] sm:$0xff]
      %v78 = vld [vmem:[#allocation5 + $0x10] sm:$0xff]
      %v79 = vld [vmem:[#allocation5 + $0x18] sm:$0xff]
      %v80 = vld [vmem:[#allocation5 + $0x20] sm:$0xff]
      %v81 = vld [vmem:[#allocation5 + $0x28] sm:$0xff]
      %v82 = vld [vmem:[#allocation5 + $0x30] sm:$0xff]
      %v83 = vld [vmem:[#allocation5 + $0x38] sm:$0xff]
      %v92 = vunpack.c.l.b16 %v76
      %v93 = vunpack.c.h.b16 %v76
      %v94 = vunpack.c.l.b16 %v77
      %v95 = vunpack.c.h.b16 %v77
      %v96 = vunpack.c.l.b16 %v78
      %v97 = vunpack.c.h.b16 %v78
      %v98 = vunpack.c.l.b16 %v79
      %v99 = vunpack.c.h.b16 %v79
      %v100 = vunpack.c.l.b16 %v80
      %v101 = vunpack.c.h.b16 %v80
      %v102 = vunpack.c.l.b16 %v81
      %v103 = vunpack.c.h.b16 %v81
      %v104 = vunpack.c.l.b16 %v82
      %v105 = vunpack.c.h.b16 %v82
      %v106 = vunpack.c.l.b16 %v83
      %v107 = vunpack.c.h.b16 %v83
      %v108 = vpack.c.b16 %v94, %v92
      %v109 = vpack.c.b16 %v95, %v93
      %v110 = vpack.c.b16 %v98, %v96
      %v111 = vpack.c.b16 %v99, %v97
      %v112 = vpack.c.b16 %v102, %v100
      %v113 = vpack.c.b16 %v103, %v101
      %v114 = vpack.c.b16 %v106, %v104
      %v115 = vpack.c.b16 %v107, %v105
      %vm124 = vcmask 523264
      %v126 = vsel %vm124, %v75, 0
      %128 = vmatprep.subr.bf16.mxu0 %v109
      %129 = vmatpush1.bf16.msra.mxu0 %v108
      %130 = vmatprep.subr.bf16.mxu0 %v111
      %131 = vmatpush1.bf16.msra.mxu0 %v110
      %132 = vmatprep.subr.bf16.mxu0 %v113
      %133 = vmatpush1.bf16.msra.mxu0 %v112
      %134 = vmatprep.subr.bf16.mxu0 %v115
      %135 = vmatpush1.bf16.msra.mxu0 %v114
      %136 = vmatprep.subr.bf16.mxu0 0
      %137 = vmatpush1.bf16.msra.mxu0 0
      %138 = vmatprep.subr.bf16.mxu0 0
      %139 = vmatpush1.bf16.msra.mxu0 0
      %140 = vmatprep.subr.bf16.mxu0 0
      %141 = vmatpush1.bf16.msra.mxu0 0
      %142 = vmatprep.subr.bf16.mxu0 0
      %143 = vmatpush1.bf16.msra.mxu0 0
      %144 = vmatprep.subr.bf16.mxu0 0
      %145 = vmatpush1.bf16.msra.mxu0 0
      %146 = vmatprep.subr.bf16.mxu0 0
      %147 = vmatpush1.bf16.msra.mxu0 0
      %148 = vmatprep.subr.bf16.mxu0 0
      %149 = vmatpush1.bf16.msra.mxu0 0
      %150 = vmatprep.subr.bf16.mxu0 0
      %151 = vmatpush1.bf16.msra.mxu0 0
      %152 = vmatprep.subr.bf16.mxu0 0
      %153 = vmatpush1.bf16.msra.mxu0 0
      %154 = vmatprep.subr.bf16.mxu0 0
      %155 = vmatpush1.bf16.msra.mxu0 0
      %156 = vmatprep.subr.bf16.mxu0 0
      %157 = vmatpush1.bf16.msra.mxu0 0
      %158 = vmatprep.subr.bf16.mxu0 0
      %159 = vmatpush1.bf16.msra.mxu0 0
      %160 = vmatprep.mubr.bf16.mxu0 0
      %161 = vmatmul.mubr.bf16.gmra.mrb[0].mxu0 %v126
      %v162 = vpop.f32.mrb[0].mxu0
      %v163 = vadd.f32 0.0, %v162
      %v164 = vpop.f32.mrb[0].mxu0
      %v165 = vadd.f32 0.0, %v164
      %v166 = vpop.f32.mrb[0].mxu0
      %v167 = vadd.f32 0.0, %v166
      %v168 = vpop.f32.mrb[0].mxu0
      %v169 = vadd.f32 0.0, %v168
      %170 = vdwg.mxu0
      %s171 = smul.u32 %s42, 4
      %s172 = smul.addr %s171, 4
      %s173 = scalar_lea.vmem [#allocation2], %s172
      %v174 = vld [vmem:[%s173] sm:$0xff]
      %v175 = vld [vmem:[%s173 + $0x8] sm:$0xff]
      %v176 = vunpack.c.l.bf16 %v174
      %v177 = vunpack.c.l.bf16 %v175
      %v178 = vadd.f32 %v176, %v163
      %v179 = vadd.f32 %v177, %v167
      %s180 = smul.u32 %s55, 4
      %s181 = smul.addr %s180, 4
      %s182 = scalar_lea.vmem [#allocation2], %s181
      %v183 = vld [vmem:[%s182] sm:$0xff]
      %v184 = vld [vmem:[%s182 + $0x8] sm:$0xff]
      %v187 = vrot.slane %v183, 4
      %v188 = vrot.slane %v184, 4
      %v191 = vunpack.c.l.bf16 %v187
      %v192 = vunpack.c.l.bf16 %v188
      %v193 = vadd.f32 %v191, %v165
      %v194 = vadd.f32 %v192, %v169
      %v195 = vxor.u32 %v178, 2147483648
      %v196 = vxor.u32 %v179, 2147483648
      %v197 = vmul.f32 %v195, 1.442695
      %v198 = vpow.pop %v197
      %v199 = vmul.f32 %v196, 1.442695
      %v200 = vpow.pop %v199
      %v201 = vadd.f32 %v198, 1.0
      %v202 = vadd.f32 %v200, 1.0
      %v203 = vrcp.pop %v201
      %v204 = vmul.f32 1.0, %v203
      %v205 = vrcp.pop %v202
      %v206 = vmul.f32 1.0, %v205
      %v207 = vtanh.pop %v178
      %v208 = vtanh.pop %v179
      %v209 = vmul.f32 %v204, %v49
      %v210 = vmul.f32 %v206, %v50
      %213 = vrot.lane.b32.xlu0 %v207, 64
      %v214 = vpop.permute.xlu0 %213
      %215 = vrot.lane.b32.xlu0 %v208, 64
      %v216 = vpop.permute.xlu0 %215
      %v219 = vmul.f32 %v204, %v214
      %v220 = vmul.f32 %v206, %v216
      %223 = vrot.lane.b32.xlu0 %v219, 32
      %v224 = vpop.permute.xlu0 %223
      %225 = vrot.lane.b32.xlu0 %v220, 32
      %v226 = vpop.permute.xlu0 %225
      %v229 = vadd.f32 %v209, %v224
      %v230 = vadd.f32 %v210, %v226
      %v231 = vtanh.pop %v229
      %v232 = vtanh.pop %v230
      %235 = vrot.lane.b32.xlu0 %v231, 64
      %v236 = vpop.permute.xlu0 %235
      %237 = vrot.lane.b32.xlu0 %v232, 64
      %v238 = vpop.permute.xlu0 %237
      %v241 = vmul.f32 %v204, %v236
      %v242 = vmul.f32 %v206, %v238
      %v243 = vxor.u32 %v193, 2147483648
      %v244 = vxor.u32 %v194, 2147483648
      %v245 = vmul.f32 %v243, 1.442695
      %v246 = vpow.pop %v245
      %v247 = vmul.f32 %v244, 1.442695
      %v248 = vpow.pop %v247
      %v249 = vadd.f32 %v246, 1.0
      %v250 = vadd.f32 %v248, 1.0
      %v251 = vrcp.pop %v249
      %v252 = vmul.f32 1.0, %v251
      %v253 = vrcp.pop %v250
      %v254 = vmul.f32 1.0, %v253
      %v255 = vtanh.pop %v193
      %v256 = vtanh.pop %v194
      %v257 = vmul.f32 %v252, %v53
      %v258 = vmul.f32 %v254, %v54
      %261 = vrot.lane.b32.xlu0 %v255, 64
      %v262 = vpop.permute.xlu0 %261
      %263 = vrot.lane.b32.xlu0 %v256, 64
      %v264 = vpop.permute.xlu0 %263
      %v267 = vmul.f32 %v252, %v262
      %v268 = vmul.f32 %v254, %v264
      %271 = vrot.lane.b32.xlu0 %v267, 32
      %v272 = vpop.permute.xlu0 %271
      %273 = vrot.lane.b32.xlu0 %v268, 32
      %v274 = vpop.permute.xlu0 %273
      %v277 = vadd.f32 %v257, %v272
      %v278 = vadd.f32 %v258, %v274
      %v279 = vtanh.pop %v277
      %v280 = vtanh.pop %v278
      %283 = vrot.lane.b32.xlu0 %v279, 64
      %v284 = vpop.permute.xlu0 %283
      %285 = vrot.lane.b32.xlu0 %v280, 64
      %v286 = vpop.permute.xlu0 %285
      %v289 = vmul.f32 %v252, %v284
      %v290 = vmul.f32 %v254, %v286
      %v291 = vpack.c.bf16 %v242, %v241
      %v293 = vunpack.c.l.b16 %v291
      %v294 = vunpack.c.h.b16 %v291
      %v295 = vpack.c.b16 %v293, %v293
      %v296 = vpack.c.b16 %v294, %v294
      %297 = vrot.lane.b32.xlu0 %v295, 32
      %v298 = vpop.permute.xlu0 %297
      %299 = vrot.lane.b32.xlu0 %v296, 32
      %v300 = vpop.permute.xlu0 %299
      %s303 = smul.u32 %s42, 2
      %s304 = smul.addr %s303, 4
      %s305 = scalar_lea.vmem [#allocation7], %s304
      %vm306 = vcmask 257024
      %307 = vst.msk [vmem:[%s305] sm:$0xf] %vm306, %v298
      %308 = vst.msk [vmem:[%s305 + $0x4] sm:$0xf] %vm306, %v300
      %v309 = vpack.c.bf16 %v290, %v289
      %v311 = vunpack.c.l.b16 %v309
      %v312 = vunpack.c.h.b16 %v309
      %v313 = vpack.c.b16 %v311, %v311
      %v314 = vpack.c.b16 %v312, %v312
      %315 = vrot.lane.b32.xlu0 %v313, 64
      %v316 = vpop.permute.xlu0 %315
      %317 = vrot.lane.b32.xlu0 %v314, 64
      %v318 = vpop.permute.xlu0 %317
      %s321 = smul.u32 %s55, 2
      %s322 = smul.addr %s321, 4
      %s323 = scalar_lea.vmem [#allocation7], %s322
      %vm324 = vcmask 519424
      %325 = vst.msk [vmem:[%s323] sm:$0xf] %vm324, %v316
      %326 = vst.msk [vmem:[%s323 + $0x4] sm:$0xf] %vm324, %v318
    $region22: #{ctpn_forward.6} parent=1 // loop_footer
      %s46 = sadd.s32 1, %s42
    $region23: #{ctpn_forward.6} parent=1 // loop_footer_branch
      %41 = sbr.rel target = $region19
    $region24: #{ctpn_forward.6} parent=1 // loop_exit
      _
    // Predicated region
    $region25: #{ctpn_forward.6} parent=1 // pred_check
      _
    $region26: #{ctpn_forward.6} parent=1 // pred_check_branch
      %328 = sbr.rel (0) target = $region28
    $region27: #{ctpn_forward.6} parent=1 // pred_region
      %s330 = ssub.s32 1024, 1024
      %331 = vsyncadd [#allocation4], %s330
      %s332 = sshll.u32 [#allocation7], 4
      %s333 = int_to_ptr.vmem [resolvable:$true] %s332
      %338 = dma.vmem_to_hbm [thread:$0]  %s333, 1024, %s2, [#allocation4], 64, 64, 4
    $region28: #{ctpn_forward.6} parent=1 // pred_fallthru
      _
    // Predicated region
    $region29: #{ctpn_forward.6} parent=1 // pred_check
      _
    $region30: #{ctpn_forward.6} parent=1 // pred_check_branch
      %340 = sbr.rel (0) target = $region32
    $region31: #{ctpn_forward.6} parent=1 // pred_region
      %341 = dma.done [#allocation4], 1024
    $region32: #{ctpn_forward.6} parent=1 // pred_fallthru
      _
    %342 = vsyncpa [#allocation3], 1
    %343 = vsyncpa [#allocation6], 1
    %344 = vsyncpa [#allocation4], 1

// kernel: ctpn_forward.7
$region0: #{ctpn_forward.7}
  #allocation0 [shape = 'u32[]', space=smem, size = 0x4, offset = 0x4, fixed_abs, tag = 'smem constant byte address 0x4 - core index']
  #allocation1 [shape = 'u32[144,128]{1,0:T(1,128)}', space=vmem, size = 0x12000, scoped, tag = 'internal scratch']
  %s0 = inlined_call_operand.hbm [shape: bf16[128,64], index: 0, kind: input, shape index: {}]
  %s1 = inlined_call_operand.hbm [shape: bf16[64,128], index: 1, kind: input, shape index: {}]
  %s2 = inlined_call_operand.hbm [shape: f32[1,128], index: 2, kind: input, shape index: {}]
  %s3 = inlined_call_operand.hbm [shape: bf16[128,128], index: 3, kind: input, shape index: {}]
  %s4 = inlined_call_operand.hbm [shape: f32[1,128], index: 4, kind: input, shape index: {}]
  %s5 = inlined_call_operand.hbm [shape: f32[128,128], index: 5, kind: output, shape index: {}]
  %s6 = sld [smem:[#allocation0]]
  $region50: #{ctpn_forward.7} parent=0
    _
  %s8 = ssub.s32 1, %s6
  %s9 = scalar_select 0, %s8, %s6
  $region1: #{ctpn_forward.7} parent=0
    #allocation2 [shape = 'u8[32768]{0}', space=vmem, size = 0x8000, scoped, tag = 'input window, operand 0, single buffered']
    #allocation3 [shape = 's32[1]{0}', space=sflag, size = 0x4, scoped, tag = 'scoped memory for ctpn_forward.7']
    #allocation4 [shape = 's32[1]{0}', space=sflag, size = 0x4, scoped, tag = 'scoped memory for ctpn_forward.7']
    #allocation5 [shape = 'u8[16384]{0}', space=vmem, size = 0x4000, scoped, tag = 'input window, operand 1, single buffered']
    #allocation6 [shape = 's32[1]{0}', space=sflag, size = 0x4, scoped, tag = 'scoped memory for ctpn_forward.7']
    #allocation7 [shape = 'u8[512]{0}', space=vmem, size = 0x400, scoped, tag = 'input window, operand 2, single buffered']
    #allocation8 [shape = 'u8[32768]{0}', space=vmem, size = 0x8000, scoped, tag = 'input window, operand 3, single buffered']
    #allocation9 [shape = 's32[1]{0}', space=sflag, size = 0x4, scoped, tag = 'scoped memory for ctpn_forward.7']
    #allocation10 [shape = 'u8[512]{0}', space=vmem, size = 0x400, scoped, tag = 'input window, operand 4, single buffered']
    #allocation11 [shape = 'u8[65536]{0}', space=vmem, size = 0x10000, scoped, tag = 'output window, operand 0, single buffered']
    %10 = vsyncpa [#allocation3], 0
    %11 = vsyncpa [#allocation6], 0
    %12 = vsyncpa [#allocation9], 0
    %13 = vsyncpa [#allocation4], 0
    // Predicated region
    $region2: #{ctpn_forward.7} parent=1 // pred_check
      _
    $region3: #{ctpn_forward.7} parent=1 // pred_check_branch
      %15 = sbr.rel (0) target = $region5
    $region4: #{ctpn_forward.7} parent=1 // pred_region
      %s17 = ssub.s32 1024, 1024
      %18 = vsyncadd [#allocation3], %s17
      %s19 = sshll.u32 [#allocation2], 4
      %s20 = int_to_ptr.vmem [resolvable:$true] %s19
      %25 = dma.hbm_to_vmem [thread:$0]  %s0, 1024, %s20, [#allocation3], 64, 64, 4
    $region5: #{ctpn_forward.7} parent=1 // pred_fallthru
      _
    // Predicated region
    $region6: #{ctpn_forward.7} parent=1 // pred_check
      _
    $region7: #{ctpn_forward.7} parent=1 // pred_check_branch
      %27 = sbr.rel (0) target = $region9
    $region8: #{ctpn_forward.7} parent=1 // pred_region
      %s29 = ssub.s32 512, 512
      %30 = vsyncadd [#allocation6], %s29
      %s31 = sshll.u32 [#allocation5], 4
      %s32 = int_to_ptr.vmem [resolvable:$true] %s31
      %37 = dma.hbm_to_vmem [thread:$0]  %s1, 512, %s32, [#allocation6], 64, 64, 4
    $region9: #{ctpn_forward.7} parent=1 // pred_fallthru
      _
    // Predicated region
    $region10: #{ctpn_forward.7} parent=1 // pred_check
      _
    $region11: #{ctpn_forward.7} parent=1 // pred_check_branch
      %39 = sbr.rel (0) target = $region13
    $region12: #{ctpn_forward.7} parent=1 // pred_region
      %s41 = ssub.s32 16, 16
      %42 = vsyncadd [#allocation6], %s41
      %s44 = sshll.u32 [#allocation7], 4
      %s45 = int_to_ptr.vmem [resolvable:$true] %s44
      %47 = dma.hbm_to_vmem [thread:$0]  %s2, 16, %s45, [#allocation6]
    $region13: #{ctpn_forward.7} parent=1 // pred_fallthru
      _
    // Predicated region
    $region14: #{ctpn_forward.7} parent=1 // pred_check
      _
    $region15: #{ctpn_forward.7} parent=1 // pred_check_branch
      %49 = sbr.rel (0) target = $region17
    $region16: #{ctpn_forward.7} parent=1 // pred_region
      %s51 = ssub.s32 1024, 1024
      %52 = vsyncadd [#allocation9], %s51
      %s53 = sshll.u32 [#allocation8], 4
      %s54 = int_to_ptr.vmem [resolvable:$true] %s53
      %59 = dma.hbm_to_vmem [thread:$0]  %s3, 1024, %s54, [#allocation9], 64, 64, 4
    $region17: #{ctpn_forward.7} parent=1 // pred_fallthru
      _
    // Predicated region
    $region18: #{ctpn_forward.7} parent=1 // pred_check
      _
    $region19: #{ctpn_forward.7} parent=1 // pred_check_branch
      %61 = sbr.rel (0) target = $region21
    $region20: #{ctpn_forward.7} parent=1 // pred_region
      %s63 = ssub.s32 16, 16
      %64 = vsyncadd [#allocation9], %s63
      %s66 = sshll.u32 [#allocation10], 4
      %s67 = int_to_ptr.vmem [resolvable:$true] %s66
      %69 = dma.hbm_to_vmem [thread:$0]  %s4, 16, %s67, [#allocation9]
    $region21: #{ctpn_forward.7} parent=1 // pred_fallthru
      _
    // Predicated region
    $region22: #{ctpn_forward.7} parent=1 // pred_check
      _
    $region23: #{ctpn_forward.7} parent=1 // pred_check_branch
      %71 = sbr.rel (0) target = $region25
    $region24: #{ctpn_forward.7} parent=1 // pred_region
      %72 = dma.done [#allocation3], 1024
    $region25: #{ctpn_forward.7} parent=1 // pred_fallthru
      _
    // Predicated region
    $region26: #{ctpn_forward.7} parent=1 // pred_check
      _
    $region27: #{ctpn_forward.7} parent=1 // pred_check_branch
      %74 = sbr.rel (0) target = $region29
    $region28: #{ctpn_forward.7} parent=1 // pred_region
      %75 = dma.done [#allocation6], 512
    $region29: #{ctpn_forward.7} parent=1 // pred_fallthru
      _
    // Predicated region
    $region30: #{ctpn_forward.7} parent=1 // pred_check
      _
    $region31: #{ctpn_forward.7} parent=1 // pred_check_branch
      %77 = sbr.rel (0) target = $region33
    $region32: #{ctpn_forward.7} parent=1 // pred_region
      %78 = dma.done [#allocation6], 16
    $region33: #{ctpn_forward.7} parent=1 // pred_fallthru
      _
    // Predicated region
    $region34: #{ctpn_forward.7} parent=1 // pred_check
      _
    $region35: #{ctpn_forward.7} parent=1 // pred_check_branch
      %80 = sbr.rel (0) target = $region37
    $region36: #{ctpn_forward.7} parent=1 // pred_region
      %81 = dma.done [#allocation9], 1024
    $region37: #{ctpn_forward.7} parent=1 // pred_fallthru
      _
    // Predicated region
    $region38: #{ctpn_forward.7} parent=1 // pred_check
      _
    $region39: #{ctpn_forward.7} parent=1 // pred_check_branch
      %83 = sbr.rel (0) target = $region41
    $region40: #{ctpn_forward.7} parent=1 // pred_region
      %84 = dma.done [#allocation9], 16
    $region41: #{ctpn_forward.7} parent=1 // pred_fallthru
      _
    %v86 = vld [vmem:[#allocation2] sm:$0xf]
    %v87 = vld [vmem:[#allocation2 + $0x4] sm:$0xf]
    %v88 = vld [vmem:[#allocation2 + $0x8] sm:$0xf]
    %v89 = vld [vmem:[#allocation2 + $0xc] sm:$0xf]
    %v90 = vld [vmem:[#allocation2 + $0x10] sm:$0xf]
    %v91 = vld [vmem:[#allocation2 + $0x14] sm:$0xf]
    %v92 = vld [vmem:[#allocation2 + $0x18] sm:$0xf]
    %v93 = vld [vmem:[#allocation2 + $0x1c] sm:$0xf]
    %v94 = vld [vmem:[#allocation2 + $0x20] sm:$0xf]
    %v95 = vld [vmem:[#allocation2 + $0x24] sm:$0xf]
    %v96 = vld [vmem:[#allocation2 + $0x28] sm:$0xf]
    %v97 = vld [vmem:[#allocation2 + $0x2c] sm:$0xf]
    %v98 = vld [vmem:[#allocation2 + $0x30] sm:$0xf]
    %v99 = vld [vmem:[#allocation2 + $0x34] sm:$0xf]
    %v100 = vld [vmem:[#allocation2 + $0x38] sm:$0xf]
    %v101 = vld [vmem:[#allocation2 + $0x3c] sm:$0xf]
    %v102 = vld [vmem:[#allocation5] sm:$0xf]
    %v103 = vld [vmem:[#allocation5 + $0x4] sm:$0xf]
    %v104 = vld [vmem:[#allocation5 + $0x8] sm:$0xf]
    %v105 = vld [vmem:[#allocation5 + $0xc] sm:$0xf]
    %v106 = vld [vmem:[#allocation5 + $0x10] sm:$0xf]
    %v107 = vld [vmem:[#allocation5 + $0x14] sm:$0xf]
    %v108 = vld [vmem:[#allocation5 + $0x18] sm:$0xf]
    %v109 = vld [vmem:[#allocation5 + $0x1c] sm:$0xf]
    %v110 = vld [vmem:[#allocation7] sm:$0x1]
    %v112 = vlaneseq
    %v113 = vshrl.u32 %v112, 7
    %v114 = vsub.s32 0, %v113
    %v115 = vrot.slane %v110, %v114
    %v133 = vunpack.c.l.b16 %v86
    %v134 = vunpack.c.l.b16 %v87
    %v135 = vunpack.c.l.b16 %v88
    %v136 = vunpack.c.l.b16 %v89
    %v137 = vunpack.c.l.b16 %v90
    %v138 = vunpack.c.l.b16 %v91
    %v139 = vunpack.c.l.b16 %v92
    %v140 = vunpack.c.l.b16 %v93
    %v141 = vunpack.c.l.b16 %v94
    %v142 = vunpack.c.l.b16 %v95
    %v143 = vunpack.c.l.b16 %v96
    %v144 = vunpack.c.l.b16 %v97
    %v145 = vunpack.c.l.b16 %v98
    %v146 = vunpack.c.l.b16 %v99
    %v147 = vunpack.c.l.b16 %v100
    %v148 = vunpack.c.l.b16 %v101
    %v149 = vpack.c.b16 %v134, %v133
    %v150 = vpack.c.b16 %v136, %v135
    %v151 = vpack.c.b16 %v138, %v137
    %v152 = vpack.c.b16 %v140, %v139
    %v153 = vpack.c.b16 %v142, %v141
    %v154 = vpack.c.b16 %v144, %v143
    %v155 = vpack.c.b16 %v146, %v145
    %v156 = vpack.c.b16 %v148, %v147
    %v165 = vunpack.c.l.b16 %v102
    %v166 = vunpack.c.l.b16 %v103
    %v167 = vunpack.c.l.b16 %v104
    %v168 = vunpack.c.l.b16 %v105
    %v169 = vunpack.c.l.b16 %v106
    %v170 = vunpack.c.l.b16 %v107
    %v171 = vunpack.c.l.b16 %v108
    %v172 = vunpack.c.l.b16 %v109
    %v173 = vpack.c.b16 %v166, %v165
    %v174 = vpack.c.b16 %v168, %v167
    %v175 = vpack.c.b16 %v170, %v169
    %v176 = vpack.c.b16 %v172, %v171
    %vm181 = vcmask 523264
    %v183 = vsel %vm181, %v149, 0
    %v186 = vsel %vm181, %v150, 0
    %v189 = vsel %vm181, %v151, 0
    %v192 = vsel %vm181, %v152, 0
    %v195 = vsel %vm181, %v153, 0
    %v198 = vsel %vm181, %v154, 0
    %v201 = vsel %vm181, %v155, 0
    %v204 = vsel %vm181, %v156, 0
    %206 = vmatprep.subr.bf16.mxu0 0
    %207 = vmatpush1.bf16.msra.mxu0 %v173
    %208 = vmatprep.subr.bf16.mxu0 0
    %209 = vmatpush1.bf16.msra.mxu0 %v174
    %210 = vmatprep.subr.bf16.mxu0 0
    %211 = vmatpush1.bf16.msra.mxu0 %v175
    %212 = vmatprep.subr.bf16.mxu0 0
    %213 = vmatpush1.bf16.msra.mxu0 %v176
    %214 = vmatprep.subr.bf16.mxu0 0
    %215 = vmatpush1.bf16.msra.mxu0 0
    %216 = vmatprep.subr.bf16.mxu0 0
    %217 = vmatpush1.bf16.msra.mxu0 0
    %218 = vmatprep.subr.bf16.mxu0 0
    %219 = vmatpush1.bf16.msra.mxu0 0
    %220 = vmatprep.subr.bf16.mxu0 0
    %221 = vmatpush1.bf16.msra.mxu0 0
    %222 = vmatprep.subr.bf16.mxu0 0
    %223 = vmatpush1.bf16.msra.mxu0 0
    %224 = vmatprep.subr.bf16.mxu0 0
    %225 = vmatpush1.bf16.msra.mxu0 0
    %226 = vmatprep.subr.bf16.mxu0 0
    %227 = vmatpush1.bf16.msra.mxu0 0
    %228 = vmatprep.subr.bf16.mxu0 0
    %229 = vmatpush1.bf16.msra.mxu0 0
    %230 = vmatprep.subr.bf16.mxu0 0
    %231 = vmatpush1.bf16.msra.mxu0 0
    %232 = vmatprep.subr.bf16.mxu0 0
    %233 = vmatpush1.bf16.msra.mxu0 0
    %234 = vmatprep.subr.bf16.mxu0 0
    %235 = vmatpush1.bf16.msra.mxu0 0
    %236 = vmatprep.subr.bf16.mxu0 0
    %237 = vmatpush1.bf16.msra.mxu0 0
    %238 = vmatprep.mubr.bf16.mxu0 0
    %239 = vmatmul.mubr.bf16.gmra.mrb[0].mxu0 %v183
    %v240 = vpop.f32.mrb[0].mxu0
    %v241 = vadd.f32 %v115, %v240
    %v242 = vpop.f32.mrb[0].mxu0
    %v243 = vpop.f32.mrb[0].mxu0
    %v244 = vadd.f32 %v115, %v243
    %v245 = vpop.f32.mrb[0].mxu0
    %246 = vmatprep.mubr.bf16.mxu0 0
    %247 = vmatmul.mubr.bf16.gmra.mrb[0].mxu0 %v186
    %v248 = vpop.f32.mrb[0].mxu0
    %v249 = vadd.f32 %v115, %v248
    %v250 = vpop.f32.mrb[0].mxu0
    %v251 = vpop.f32.mrb[0].mxu0
    %v252 = vadd.f32 %v115, %v251
    %v253 = vpop.f32.mrb[0].mxu0
    %254 = vmatprep.mubr.bf16.mxu0 0
    %255 = vmatmul.mubr.bf16.gmra.mrb[0].mxu0 %v189
    %v256 = vpop.f32.mrb[0].mxu0
    %v257 = vadd.f32 %v115, %v256
    %v258 = vpop.f32.mrb[0].mxu0
    %v259 = vpop.f32.mrb[0].mxu0
    %v260 = vadd.f32 %v115, %v259
    %v261 = vpop.f32.mrb[0].mxu0
    %262 = vmatprep.mubr.bf16.mxu0 0
    %263 = vmatmul.mubr.bf16.gmra.mrb[0].mxu0 %v192
    %v264 = vpop.f32.mrb[0].mxu0
    %v265 = vadd.f32 %v115, %v264
    %v266 = vpop.f32.mrb[0].mxu0
    %v267 = vpop.f32.mrb[0].mxu0
    %v268 = vadd.f32 %v115, %v267
    %v269 = vpop.f32.mrb[0].mxu0
    %270 = vmatprep.mubr.bf16.mxu0 0
    %271 = vmatmul.mubr.bf16.gmra.mrb[0].mxu0 %v195
    %v272 = vpop.f32.mrb[0].mxu0
    %v273 = vadd.f32 %v115, %v272
    %v274 = vpop.f32.mrb[0].mxu0
    %v275 = vpop.f32.mrb[0].mxu0
    %v276 = vadd.f32 %v115, %v275
    %v277 = vpop.f32.mrb[0].mxu0
    %278 = vmatprep.mubr.bf16.mxu0 0
    %279 = vmatmul.mubr.bf16.gmra.mrb[0].mxu0 %v198
    %v280 = vpop.f32.mrb[0].mxu0
    %v281 = vadd.f32 %v115, %v280
    %v282 = vpop.f32.mrb[0].mxu0
    %v283 = vpop.f32.mrb[0].mxu0
    %v284 = vadd.f32 %v115, %v283
    %v285 = vpop.f32.mrb[0].mxu0
    %286 = vmatprep.mubr.bf16.mxu0 0
    %287 = vmatmul.mubr.bf16.gmra.mrb[0].mxu0 %v201
    %v288 = vpop.f32.mrb[0].mxu0
    %v289 = vadd.f32 %v115, %v288
    %v290 = vpop.f32.mrb[0].mxu0
    %v291 = vpop.f32.mrb[0].mxu0
    %v292 = vadd.f32 %v115, %v291
    %v293 = vpop.f32.mrb[0].mxu0
    %294 = vmatprep.mubr.bf16.mxu0 0
    %295 = vmatmul.mubr.bf16.gmra.mrb[0].mxu0 %v204
    %v296 = vpop.f32.mrb[0].mxu0
    %v297 = vadd.f32 %v115, %v296
    %v298 = vpop.f32.mrb[0].mxu0
    %v299 = vpop.f32.mrb[0].mxu0
    %v300 = vadd.f32 %v115, %v299
    %v301 = vpop.f32.mrb[0].mxu0
    %302 = vdwg.mxu0
    %v303 = vmax.f32 %v241, 0.0
    %v304 = vmax.f32 %v244, 0.0
    %v305 = vmax.f32 %v249, 0.0
    %v306 = vmax.f32 %v252, 0.0
    %v307 = vmax.f32 %v257, 0.0
    %v308 = vmax.f32 %v260, 0.0
    %v309 = vmax.f32 %v265, 0.0
    %v310 = vmax.f32 %v268, 0.0
    %v311 = vmax.f32 %v273, 0.0
    %v312 = vmax.f32 %v276, 0.0
    %v313 = vmax.f32 %v281, 0.0
    %v314 = vmax.f32 %v284, 0.0
    %v315 = vmax.f32 %v289, 0.0
    %v316 = vmax.f32 %v292, 0.0
    %v317 = vmax.f32 %v297, 0.0
    %v318 = vmax.f32 %v300, 0.0
    %v319 = vpack.c.bf16 %v304, %v303
    %v320 = vpack.c.bf16 %v306, %v305
    %v321 = vpack.c.bf16 %v308, %v307
    %v322 = vpack.c.bf16 %v310, %v309
    %v323 = vpack.c.bf16 %v312, %v311
    %v324 = vpack.c.bf16 %v314, %v313
    %v325 = vpack.c.bf16 %v316, %v315
    %v326 = vpack.c.bf16 %v318, %v317
    %v327 = vld [vmem:[#allocation8] sm:$0xf]
    %v328 = vld [vmem:[#allocation8 + $0x4] sm:$0xf]
    %v329 = vld [vmem:[#allocation8 + $0x8] sm:$0xf]
    %v330 = vld [vmem:[#allocation8 + $0xc] sm:$0xf]
    %v331 = vld [vmem:[#allocation8 + $0x10] sm:$0xf]
    %v332 = vld [vmem:[#allocation8 + $0x14] sm:$0xf]
    %v333 = vld [vmem:[#allocation8 + $0x18] sm:$0xf]
    %v334 = vld [vmem:[#allocation8 + $0x1c] sm:$0xf]
    %v335 = vld [vmem:[#allocation8 + $0x20] sm:$0xf]
    %v336 = vld [vmem:[#allocation8 + $0x24] sm:$0xf]
    %v337 = vld [vmem:[#allocation8 + $0x28] sm:$0xf]
    %v338 = vld [vmem:[#allocation8 + $0x2c] sm:$0xf]
    %v339 = vld [vmem:[#allocation8 + $0x30] sm:$0xf]
    %v340 = vld [vmem:[#allocation8 + $0x34] sm:$0xf]
    %v341 = vld [vmem:[#allocation8 + $0x38] sm:$0xf]
    %v342 = vld [vmem:[#allocation8 + $0x3c] sm:$0xf]
    %v343 = vld [vmem:[#allocation10] sm:$0x1]
    %v345 = vlaneseq
    %v346 = vshrl.u32 %v345, 7
    %v347 = vsub.s32 0, %v346
    %v348 = vrot.slane %v343, %v347
    %v366 = vunpack.c.l.b16 %v327
    %v367 = vunpack.c.l.b16 %v328
    %v368 = vunpack.c.l.b16 %v329
    %v369 = vunpack.c.l.b16 %v330
    %v370 = vunpack.c.l.b16 %v331
    %v371 = vunpack.c.l.b16 %v332
    %v372 = vunpack.c.l.b16 %v333
    %v373 = vunpack.c.l.b16 %v334
    %v374 = vunpack.c.l.b16 %v335
    %v375 = vunpack.c.l.b16 %v336
    %v376 = vunpack.c.l.b16 %v337
    %v377 = vunpack.c.l.b16 %v338
    %v378 = vunpack.c.l.b16 %v339
    %v379 = vunpack.c.l.b16 %v340
    %v380 = vunpack.c.l.b16 %v341
    %v381 = vunpack.c.l.b16 %v342
    %v382 = vpack.c.b16 %v367, %v366
    %v383 = vpack.c.b16 %v369, %v368
    %v384 = vpack.c.b16 %v371, %v370
    %v385 = vpack.c.b16 %v373, %v372
    %v386 = vpack.c.b16 %v375, %v374
    %v387 = vpack.c.b16 %v377, %v376
    %v388 = vpack.c.b16 %v379, %v378
    %v389 = vpack.c.b16 %v381, %v380
    %398 = vmatprep.subr.bf16.mxu0 0
    %399 = vmatpush1.bf16.msra.mxu0 %v382
    %400 = vmatprep.subr.bf16.mxu0 0
    %401 = vmatpush1.bf16.msra.mxu0 %v383
    %402 = vmatprep.subr.bf16.mxu0 0
    %403 = vmatpush1.bf16.msra.mxu0 %v384
    %404 = vmatprep.subr.bf16.mxu0 0
    %405 = vmatpush1.bf16.msra.mxu0 %v385
    %406 = vmatprep.subr.bf16.mxu0 0
    %407 = vmatpush1.bf16.msra.mxu0 %v386
    %408 = vmatprep.subr.bf16.mxu0 0
    %409 = vmatpush1.bf16.msra.mxu0 %v387
    %410 = vmatprep.subr.bf16.mxu0 0
    %411 = vmatpush1.bf16.msra.mxu0 %v388
    %412 = vmatprep.subr.bf16.mxu0 0
    %413 = vmatpush1.bf16.msra.mxu0 %v389
    %414 = vmatprep.subr.bf16.mxu0 0
    %415 = vmatpush1.bf16.msra.mxu0 0
    %416 = vmatprep.subr.bf16.mxu0 0
    %417 = vmatpush1.bf16.msra.mxu0 0
    %418 = vmatprep.subr.bf16.mxu0 0
    %419 = vmatpush1.bf16.msra.mxu0 0
    %420 = vmatprep.subr.bf16.mxu0 0
    %421 = vmatpush1.bf16.msra.mxu0 0
    %422 = vmatprep.subr.bf16.mxu0 0
    %423 = vmatpush1.bf16.msra.mxu0 0
    %424 = vmatprep.subr.bf16.mxu0 0
    %425 = vmatpush1.bf16.msra.mxu0 0
    %426 = vmatprep.subr.bf16.mxu0 0
    %427 = vmatpush1.bf16.msra.mxu0 0
    %428 = vmatprep.subr.bf16.mxu0 0
    %429 = vmatpush1.bf16.msra.mxu0 0
    %430 = vmatprep.mubr.bf16.mxu0 0
    %431 = vmatmul.mubr.bf16.gmra.mrb[0].mxu0 %v319
    %v432 = vpop.f32.mrb[0].mxu0
    %v433 = vadd.f32 %v348, %v432
    %v434 = vpop.f32.mrb[0].mxu0
    %v435 = vpop.f32.mrb[0].mxu0
    %v436 = vadd.f32 %v348, %v435
    %v437 = vpop.f32.mrb[0].mxu0
    %438 = vmatprep.mubr.bf16.mxu0 0
    %439 = vmatmul.mubr.bf16.gmra.mrb[0].mxu0 %v320
    %v440 = vpop.f32.mrb[0].mxu0
    %v441 = vadd.f32 %v348, %v440
    %v442 = vpop.f32.mrb[0].mxu0
    %v443 = vpop.f32.mrb[0].mxu0
    %v444 = vadd.f32 %v348, %v443
    %v445 = vpop.f32.mrb[0].mxu0
    %446 = vmatprep.mubr.bf16.mxu0 0
    %447 = vmatmul.mubr.bf16.gmra.mrb[0].mxu0 %v321
    %v448 = vpop.f32.mrb[0].mxu0
    %v449 = vadd.f32 %v348, %v448
    %v450 = vpop.f32.mrb[0].mxu0
    %v451 = vpop.f32.mrb[0].mxu0
    %v452 = vadd.f32 %v348, %v451
    %v453 = vpop.f32.mrb[0].mxu0
    %454 = vmatprep.mubr.bf16.mxu0 0
    %455 = vmatmul.mubr.bf16.gmra.mrb[0].mxu0 %v322
    %v456 = vpop.f32.mrb[0].mxu0
    %v457 = vadd.f32 %v348, %v456
    %v458 = vpop.f32.mrb[0].mxu0
    %v459 = vpop.f32.mrb[0].mxu0
    %v460 = vadd.f32 %v348, %v459
    %v461 = vpop.f32.mrb[0].mxu0
    %462 = vmatprep.mubr.bf16.mxu0 0
    %463 = vmatmul.mubr.bf16.gmra.mrb[0].mxu0 %v323
    %v464 = vpop.f32.mrb[0].mxu0
    %v465 = vadd.f32 %v348, %v464
    %v466 = vpop.f32.mrb[0].mxu0
    %v467 = vpop.f32.mrb[0].mxu0
    %v468 = vadd.f32 %v348, %v467
    %v469 = vpop.f32.mrb[0].mxu0
    %470 = vmatprep.mubr.bf16.mxu0 0
    %471 = vmatmul.mubr.bf16.gmra.mrb[0].mxu0 %v324
    %v472 = vpop.f32.mrb[0].mxu0
    %v473 = vadd.f32 %v348, %v472
    %v474 = vpop.f32.mrb[0].mxu0
    %v475 = vpop.f32.mrb[0].mxu0
    %v476 = vadd.f32 %v348, %v475
    %v477 = vpop.f32.mrb[0].mxu0
    %478 = vmatprep.mubr.bf16.mxu0 0
    %479 = vmatmul.mubr.bf16.gmra.mrb[0].mxu0 %v325
    %v480 = vpop.f32.mrb[0].mxu0
    %v481 = vadd.f32 %v348, %v480
    %v482 = vpop.f32.mrb[0].mxu0
    %v483 = vpop.f32.mrb[0].mxu0
    %v484 = vadd.f32 %v348, %v483
    %v485 = vpop.f32.mrb[0].mxu0
    %486 = vmatprep.mubr.bf16.mxu0 0
    %487 = vmatmul.mubr.bf16.gmra.mrb[0].mxu0 %v326
    %v488 = vpop.f32.mrb[0].mxu0
    %v489 = vadd.f32 %v348, %v488
    %v490 = vpop.f32.mrb[0].mxu0
    %v491 = vpop.f32.mrb[0].mxu0
    %v492 = vadd.f32 %v348, %v491
    %v493 = vpop.f32.mrb[0].mxu0
    %494 = vdwg.mxu0
    %495 = vst [vmem:[#allocation11] sm:$0xff] %v433
    %496 = vst [vmem:[#allocation11 + $0x8] sm:$0xff] %v436
    %497 = vst [vmem:[#allocation11 + $0x10] sm:$0xff] %v441
    %498 = vst [vmem:[#allocation11 + $0x18] sm:$0xff] %v444
    %499 = vst [vmem:[#allocation11 + $0x20] sm:$0xff] %v449
    %500 = vst [vmem:[#allocation11 + $0x28] sm:$0xff] %v452
    %501 = vst [vmem:[#allocation11 + $0x30] sm:$0xff] %v457
    %502 = vst [vmem:[#allocation11 + $0x38] sm:$0xff] %v460
    %503 = vst [vmem:[#allocation11 + $0x40] sm:$0xff] %v465
    %504 = vst [vmem:[#allocation11 + $0x48] sm:$0xff] %v468
    %505 = vst [vmem:[#allocation11 + $0x50] sm:$0xff] %v473
    %506 = vst [vmem:[#allocation11 + $0x58] sm:$0xff] %v476
    %507 = vst [vmem:[#allocation11 + $0x60] sm:$0xff] %v481
    %508 = vst [vmem:[#allocation11 + $0x68] sm:$0xff] %v484
    %509 = vst [vmem:[#allocation11 + $0x70] sm:$0xff] %v489
    %510 = vst [vmem:[#allocation11 + $0x78] sm:$0xff] %v492
    // Predicated region
    $region42: #{ctpn_forward.7} parent=1 // pred_check
      _
    $region43: #{ctpn_forward.7} parent=1 // pred_check_branch
      %512 = sbr.rel (0) target = $region45
    $region44: #{ctpn_forward.7} parent=1 // pred_region
      %s514 = ssub.s32 2048, 2048
      %515 = vsyncadd [#allocation4], %s514
      %s516 = sshll.u32 [#allocation11], 4
      %s517 = int_to_ptr.vmem [resolvable:$true] %s516
      %522 = dma.vmem_to_hbm [thread:$0]  %s517, 2048, %s5, [#allocation4], 128, 128, 8
    $region45: #{ctpn_forward.7} parent=1 // pred_fallthru
      _
    // Predicated region
    $region46: #{ctpn_forward.7} parent=1 // pred_check
      _
    $region47: #{ctpn_forward.7} parent=1 // pred_check_branch
      %524 = sbr.rel (0) target = $region49
    $region48: #{ctpn_forward.7} parent=1 // pred_region
      %525 = dma.done [#allocation4], 2048
    $region49: #{ctpn_forward.7} parent=1 // pred_fallthru
      _
    %526 = vsyncpa [#allocation3], 1
    %527 = vsyncpa [#allocation6], 1
    %528 = vsyncpa [#allocation9], 1
    %529 = vsyncpa [#allocation4], 1

// kernel: ctpn_forward.4
$region0: #{ctpn_forward.4}
  #allocation0 [shape = 'u32[]', space=smem, size = 0x4, offset = 0x4, fixed_abs, tag = 'smem constant byte address 0x4 - core index']
  #allocation1 [shape = 'u32[144,128]{1,0:T(1,128)}', space=vmem, size = 0x12000, scoped, tag = 'internal scratch']
  #allocation2 [shape = 'f32[80,128]{1,0:T(8,128)}', space=vmem, size = 0xa000, scoped, tag = 'scratch operand']
  %s0 = inlined_call_operand.hbm [shape: bf16[2,102,128], index: 0, kind: input, shape index: {}]
  %s1 = inlined_call_operand.hbm [shape: bf16[9,128,128], index: 1, kind: input, shape index: {}]
  %s2 = inlined_call_operand.hbm [shape: f32[1,128], index: 2, kind: input, shape index: {}]
  %s3 = inlined_call_operand.hbm [shape: bf16[2,80,128], index: 3, kind: output, shape index: {}]
  %s4 = sld [smem:[#allocation0]]
  $region57: #{ctpn_forward.4} parent=0
    _
  %s6 = ssub.s32 1, %s4
  %s7 = scalar_select 0, %s6, %s4
  $region1: #{ctpn_forward.4} parent=0
    #allocation3 [shape = 'u8[53248]{0}', space=vmem, size = 0xd000, scoped, tag = 'input window, operand 0']
    #allocation4 [shape = 's32[2]{0}', space=sflag, size = 0x8, scoped, tag = 'scoped memory for ctpn_forward.4']
    #allocation5 [shape = 's32[2]{0}', space=sflag, size = 0x8, scoped, tag = 'scoped memory for ctpn_forward.4']
    #allocation6 [shape = 'u8[294912]{0}', space=vmem, size = 0x48000, scoped, tag = 'input window, operand 1, single buffered']
    #allocation7 [shape = 's32[1]{0}', space=sflag, size = 0x4, scoped, tag = 'scoped memory for ctpn_forward.4']
    #allocation8 [shape = 'u8[512]{0}', space=vmem, size = 0x400, scoped, tag = 'input window, operand 2, single buffered']
    #allocation9 [shape = 'u8[40960]{0}', space=vmem, size = 0xa000, scoped, tag = 'output window, operand 0']
    %8 = vsyncpa [#allocation4], 0
    %s9 = scalar_lea.sflag [#allocation4], 1
    %10 = vsyncpa %s9, 0
    %11 = vsyncpa [#allocation7], 0
    %12 = vsyncpa [#allocation5], 0
    %s13 = scalar_lea.sflag [#allocation5], 1
    %14 = vsyncpa %s13, 0
    loop: start=0, step=1, limit=4
    $region2: #{ctpn_forward.4} parent=1 // loop_pre_header
      _
    $region3: #{ctpn_forward.4} parent=1 // loop_header
      %s16 = sphi 0, %s20
      %p17 = scmp.ge.s32.totalorder %s16, 4
      %s26 = sphi 0, %s28
      %s29 = sphi 0, %s26
      %s30 = sphi 0, %s29
      %s46 = sphi 0, %s30
      %s50 = sphi 0, %s50
      %s52 = sphi 0, %s50
      %s53 = sphi 0, %s52
      %s67 = sphi 0, %s53
      %s71 = sphi 0, %s71
      %s73 = sphi 0, %s71
      %s74 = sphi 0, %s73
      %s88 = sphi 0, %s74
      %s94 = sphi 0, %s96
      %s97 = sphi 0, %s94
      %s98 = sphi 0, %s97
      %s114 = sphi 0, %s98
    $region4: #{ctpn_forward.4} parent=1 // loop_header_branch
      %19 = sbr.rel (%p17) target = $region8
    $region5: #{ctpn_forward.4} parent=1 // loop_body
      %s21 = ssub.s32 %s16, 1
      %s22 = ssub.s32 %s16, 2
      %s23 = sadd.s32 %s16, 1
      %s24 = ssub.s32 %s16, %s23
      %p25 = scmp.eq.s32.totalorder %s24, 0
      %s27 = sadd.s32 %s26, 1
      %s28 = scalar_select %p25, %s26, %s27
      %p31 = pneg %p25
      %p32 = scmp.eq.s32.totalorder %s16, 1
      %p33 = por %p31, %p32
      %p34 = scmp.ne.s32.totalorder %s26, %s29
      %p35 = scmp.eq.s32.totalorder %s16, 0
      %p36 = por %p34, %p35
      %p37 = scmp.ne.s32.totalorder %s26, %s29
      %p38 = scmp.eq.s32.totalorder %s21, 1
      %p39 = por %p37, %p38
      %p40 = scmp.ne.s32.totalorder %s29, %s30
      %p41 = scmp.eq.s32.totalorder %s21, 0
      %p42 = por %p40, %p41
      %p43 = scmp.ne.s32.totalorder %s29, %s30
      %p44 = scmp.eq.s32.totalorder %s22, 1
      %p45 = por %p43, %p44
      %p47 = scmp.ne.s32.totalorder %s30, %s46
      %p48 = scmp.eq.s32.totalorder %s22, 0
      %p49 = por %p47, %p48
      %s51 = sadd.s32 %s50, 1
      %p54 = scmp.eq.s32.totalorder %s16, 1
      %p55 = scmp.ne.s32.totalorder %s50, %s52
      %p56 = scmp.eq.s32.totalorder %s16, 0
      %p57 = por %p55, %p56
      %p58 = scmp.ne.s32.totalorder %s50, %s52
      %p59 = scmp.eq.s32.totalorder %s21, 1
      %p60 = por %p58, %p59
      %p61 = scmp.ne.s32.totalorder %s52, %s53
      %p62 = scmp.eq.s32.totalorder %s21, 0
      %p63 = por %p61, %p62
      %p64 = scmp.ne.s32.totalorder %s52, %s53
      %p65 = scmp.eq.s32.totalorder %s22, 1
      %p66 = por %p64, %p65
      %p68 = scmp.ne.s32.totalorder %s53, %s67
      %p69 = scmp.eq.s32.totalorder %s22, 0
      %p70 = por %p68, %p69
      %s72 = sadd.s32 %s71, 1
      %p75 = scmp.eq.s32.totalorder %s16, 1
      %p76 = scmp.ne.s32.totalorder %s71, %s73
      %p77 = scmp.eq.s32.totalorder %s16, 0
      %p78 = por %p76, %p77
      %p79 = scmp.ne.s32.totalorder %s71, %s73
      %p80 = scmp.eq.s32.totalorder %s21, 1
      %p81 = por %p79, %p80
      %p82 = scmp.ne.s32.totalorder %s73, %s74
      %p83 = scmp.eq.s32.totalorder %s21, 0
      %p84 = por %p82, %p83
      %p85 = scmp.ne.s32.totalorder %s73, %s74
      %p86 = scmp.eq.s32.totalorder %s22, 1
      %p87 = por %p85, %p86
      %p89 = scmp.ne.s32.totalorder %s74, %s88
      %p90 = scmp.eq.s32.totalorder %s22, 0
      %p91 = por %p89, %p90
      %s92 = ssub.s32 %s16, %s23
      %p93 = scmp.eq.s32.totalorder %s92, 0
      %s95 = sadd.s32 %s94, 1
      %s96 = scalar_select %p93, %s94, %s95
      %p99 = pneg %p93
      %p100 = scmp.eq.s32.totalorder %s16, 1
      %p101 = por %p99, %p100
      %p102 = scmp.ne.s32.totalorder %s94, %s97
      %p103 = scmp.eq.s32.totalorder %s16, 0
      %p104 = por %p102, %p103
      %p105 = scmp.ne.s32.totalorder %s94, %s97
      %p106 = scmp.eq.s32.totalorder %s21, 1
      %p107 = por %p105, %p106
      %p108 = scmp.ne.s32.totalorder %s97, %s98
      %p109 = scmp.eq.s32.totalorder %s21, 0
      %p110 = por %p108, %p109
      %p111 = scmp.ne.s32.totalorder %s97, %s98
      %p112 = scmp.eq.s32.totalorder %s22, 1
      %p113 = por %p111, %p112
      %p115 = scmp.ne.s32.totalorder %s98, %s114
      %p116 = scmp.eq.s32.totalorder %s22, 0
      %p117 = por %p115, %p116
      %p118 = scmp.le.s32.totalorder 1, %s16
      %p119 = scmp.lt.s32.totalorder %s16, 3
      %p120 = pnand %p118, %p119
      %p121 = pneg %p120
      // Predicated region
      $region9: #{ctpn_forward.4} parent=5 // pred_check
        _
      $region10: #{ctpn_forward.4} parent=5 // pred_check_branch
        %123 = sbr.rel (%p120) target = $region12
      $region11: #{ctpn_forward.4} parent=5 // pred_region
        %s124 = ssub.s32 %s16, 1
        // Predicated region
        $region13: #{ctpn_forward.4} parent=11 // pred_check
          %p125 = pneg %p63
        $region14: #{ctpn_forward.4} parent=11 // pred_check_branch
          %127 = sbr.rel (%p125) target = $region16
        $region15: #{ctpn_forward.4} parent=11 // pred_region
          %s129 = ssub.s32 9216, 9216
          %130 = vsyncadd [#allocation7], %s129
          %s131 = sshll.u32 [#allocation6], 4
          %s132 = int_to_ptr.vmem [resolvable:$true] %s131
          %137 = dma.hbm_to_vmem [thread:$0]  %s1, 9216, %s132, [#allocation7], 64, 64, 4
        $region16: #{ctpn_forward.4} parent=11 // pred_fallthru
          _
        // Predicated region
        $region17: #{ctpn_forward.4} parent=11 // pred_check
          %p138 = pneg %p84
        $region18: #{ctpn_forward.4} parent=11 // pred_check_branch
          %140 = sbr.rel (%p138) target = $region20
        $region19: #{ctpn_forward.4} parent=11 // pred_region
          %s142 = ssub.s32 16, 16
          %143 = vsyncadd [#allocation7], %s142
          %s145 = sshll.u32 [#allocation8], 4
          %s146 = int_to_ptr.vmem [resolvable:$true] %s145
          %148 = dma.hbm_to_vmem [thread:$0]  %s2, 16, %s146, [#allocation7]
        $region20: #{ctpn_forward.4} parent=11 // pred_fallthru
          _
      $region12: #{ctpn_forward.4} parent=5 // pred_fallthru
        _
      %p149 = scmp.lt.s32.totalorder %s16, 2
      // Predicated region
      $region21: #{ctpn_forward.4} parent=5 // pred_check
        %p150 = pneg %p149
      $region22: #{ctpn_forward.4} parent=5 // pred_check_branch
        %152 = sbr.rel (%p150) target = $region24
      $region23: #{ctpn_forward.4} parent=5 // pred_region
        // Predicated region
        $region25: #{ctpn_forward.4} parent=23 // pred_check
          %p153 = pneg %p36
        $region26: #{ctpn_forward.4} parent=23 // pred_check_branch
          %155 = sbr.rel (%p153) target = $region28
        $region27: #{ctpn_forward.4} parent=23 // pred_region
          %s156 = sand.u32 %s26, 1
          %s157 = scalar_lea.sflag [#allocation4], %s156
          %s158 = sand.u32 %s26, 1
          %s159 = smul.addr %s158, 52
          %s160 = scalar_lea.vmem [#allocation3], %s159
          %s162 = ssub.s32 832, 832
          %163 = vsyncadd %s157, %s162
          %s164 = smul.addr %s16, 13
          %s165 = smul.addr %s164, 64
          %s166 = scalar_lea.hbm %s0, %s165
          %s167 = sshll.u32 %s160, 4
          %s168 = int_to_ptr.vmem [resolvable:$true] %s167
          %173 = dma.hbm_to_vmem [thread:$0]  %s166, 832, %s168, %s157, 64, 64, 4
        $region28: #{ctpn_forward.4} parent=23 // pred_fallthru
          _
      $region24: #{ctpn_forward.4} parent=5 // pred_fallthru
        _
      %p174 = scmp.le.s32.totalorder 1, %s16
      %p175 = scmp.lt.s32.totalorder %s16, 3
      %p176 = pnand %p174, %p175
      %p177 = pneg %p176
      // Predicated region
      $region29: #{ctpn_forward.4} parent=5 // pred_check
        _
      $region30: #{ctpn_forward.4} parent=5 // pred_check_branch
        %179 = sbr.rel (%p176) target = $region32
      $region31: #{ctpn_forward.4} parent=5 // pred_region
        %s180 = ssub.s32 %s16, 1
        %s181 = sand.u32 %s29, 1
        %s182 = scalar_lea.sflag [#allocation4], %s181
        %s183 = sand.u32 %s29, 1
        %s184 = smul.addr %s183, 52
        %s185 = scalar_lea.vmem [#allocation3], %s184
        // Predicated region
        $region33: #{ctpn_forward.4} parent=31 // pred_check
          %p186 = pneg %p42
        $region34: #{ctpn_forward.4} parent=31 // pred_check_branch
          %188 = sbr.rel (%p186) target = $region36
        $region35: #{ctpn_forward.4} parent=31 // pred_region
          %189 = dma.done %s182, 832
        $region36: #{ctpn_forward.4} parent=31 // pred_fallthru
          _
        // Predicated region
        $region37: #{ctpn_forward.4} parent=31 // pred_check
          %p190 = pneg %p63
        $region38: #{ctpn_forward.4} parent=31 // pred_check_branch
          %192 = sbr.rel (%p190) target = $region40
        $region39: #{ctpn_forward.4} parent=31 // pred_region
          %193 = dma.done [#allocation7], 9216
        $region40: #{ctpn_forward.4} parent=31 // pred_fallthru
          _
        // Predicated region
        $region41: #{ctpn_forward.4} parent=31 // pred_check
          %p194 = pneg %p84
        $region42: #{ctpn_forward.4} parent=31 // pred_check_branch
          %196 = sbr.rel (%p194) target = $region44
        $region43: #{ctpn_forward.4} parent=31 // pred_region
          %197 = dma.done [#allocation7], 16
        $region44: #{ctpn_forward.4} parent=31 // pred_fallthru
          _
        %s198 = sand.u32 %s29, 1
        %s199 = scalar_lea.sflag [#allocation4], %s198
        %s200 = sand.u32 %s29, 1
        %s201 = smul.addr %s200, 52
        %s202 = scalar_lea.vmem [#allocation3], %s201
        %p203 = pneg %p42
        %p204 = pneg %p39
        %p205 = pneg %p63
        %p206 = pneg %p60
        %p207 = pneg %p84
        %p208 = pneg %p81
        %p209 = pneg %p110
        %p210 = pneg %p107
        %s211 = sand.u32 %s97, 1
        %s212 = scalar_lea.sflag [#allocation5], %s211
        %s213 = sand.u32 %s97, 1
        %s214 = smul.addr %s213, 40
        %s215 = scalar_lea.vmem [#allocation9], %s214
        %v217 = vld [vmem:[#allocation8] sm:$0x1]
        %v218 = vld [vmem:[%s185] sm:$0xf]
        %v219 = vld [vmem:[%s185 + $0x4] sm:$0xf]
        %v220 = vld [vmem:[%s185 + $0x8] sm:$0xf]
        %v221 = vld [vmem:[%s185 + $0xc] sm:$0xf]
        %v222 = vld [vmem:[%s185 + $0x10] sm:$0xf]
        %v223 = vld [vmem:[%s185 + $0x14] sm:$0xf]
        %v224 = vld [vmem:[%s185 + $0x18] sm:$0xf]
        %v225 = vld [vmem:[%s185 + $0x1c] sm:$0xf]
        %v226 = vld [vmem:[%s185 + $0x20] sm:$0xf]
        %v227 = vld [vmem:[%s185 + $0x24] sm:$0xf]
        %v228 = vld [vmem:[#allocation6] sm:$0xf]
        %v229 = vld [vmem:[#allocation6 + $0x4] sm:$0xf]
        %v230 = vld [vmem:[#allocation6 + $0x8] sm:$0xf]
        %v231 = vld [vmem:[#allocation6 + $0xc] sm:$0xf]
        %v232 = vld [vmem:[#allocation6 + $0x10] sm:$0xf]
        %v233 = vld [vmem:[#allocation6 + $0x14] sm:$0xf]
        %v234 = vld [vmem:[#allocation6 + $0x18] sm:$0xf]
        %v235 = vld [vmem:[#allocation6 + $0x1c] sm:$0xf]
        %v236 = vld [vmem:[#allocation6 + $0x20] sm:$0xf]
        %v237 = vld [vmem:[#allocation6 + $0x24] sm:$0xf]
        %v238 = vld [vmem:[#allocation6 + $0x28] sm:$0xf]
        %v239 = vld [vmem:[#allocation6 + $0x2c] sm:$0xf]
        %v240 = vld [vmem:[#allocation6 + $0x30] sm:$0xf]
        %v241 = vld [vmem:[#allocation6 + $0x34] sm:$0xf]
        %v242 = vld [vmem:[#allocation6 + $0x38] sm:$0xf]
        %v243 = vld [vmem:[#allocation6 + $0x3c] sm:$0xf]
        %v254 = vunpack.c.l.b16 %v218
        %v255 = vunpack.c.l.b16 %v219
        %v256 = vunpack.c.l.b16 %v220
        %v257 = vunpack.c.l.b16 %v221
        %v258 = vunpack.c.l.b16 %v222
        %v259 = vunpack.c.l.b16 %v223
        %v260 = vunpack.c.l.b16 %v224
        %v261 = vunpack.c.l.b16 %v225
        %v262 = vunpack.c.l.b16 %v226
        %v263 = vunpack.c.l.b16 %v227
        %v264 = vpack.c.b16 %v255, %v254
        %v265 = vpack.c.b16 %v257, %v256
        %v266 = vpack.c.b16 %v259, %v258
        %v267 = vpack.c.b16 %v261, %v260
        %v268 = vpack.c.b16 %v263, %v262
        %v290 = vunpack.c.l.b16 %v228
        %v291 = vunpack.c.l.b16 %v229
        %v292 = vunpack.c.l.b16 %v230
        %v293 = vunpack.c.l.b16 %v231
        %v294 = vunpack.c.l.b16 %v232
        %v295 = vunpack.c.l.b16 %v233
        %v296 = vunpack.c.l.b16 %v234
        %v297 = vunpack.c.l.b16 %v235
        %v298 = vunpack.c.l.b16 %v236
        %v299 = vunpack.c.l.b16 %v237
        %v300 = vunpack.c.l.b16 %v238
        %v301 = vunpack.c.l.b16 %v239
        %v302 = vunpack.c.l.b16 %v240
        %v303 = vunpack.c.l.b16 %v241
        %v304 = vunpack.c.l.b16 %v242
        %v305 = vunpack.c.l.b16 %v243
        %v306 = vpack.c.b16 %v291, %v290
        %v307 = vpack.c.b16 %v293, %v292
        %v308 = vpack.c.b16 %v295, %v294
        %v309 = vpack.c.b16 %v297, %v296
        %v310 = vpack.c.b16 %v299, %v298
        %v311 = vpack.c.b16 %v301, %v300
        %v312 = vpack.c.b16 %v303, %v302
        %v313 = vpack.c.b16 %v305, %v304
        %322 = vmatprep.subr.bf16.mxu0 0
        %323 = vmatpush1.bf16.msra.mxu0 %v306
        %324 = vmatprep.subr.bf16.mxu0 0
        %325 = vmatpush1.bf16.msra.mxu0 %v307
        %326 = vmatprep.subr.bf16.mxu0 0
        %327 = vmatpush1.bf16.msra.mxu0 %v308
        %328 = vmatprep.subr.bf16.mxu0 0
        %329 = vmatpush1.bf16.msra.mxu0 %v309
        %330 = vmatprep.subr.bf16.mxu0 0
        %331 = vmatpush1.bf16.msra.mxu0 %v310
        %332 = vmatprep.subr.bf16.mxu0 0
        %333 = vmatpush1.bf16.msra.mxu0 %v311
        %334 = vmatprep.subr.bf16.mxu0 0
        %335 = vmatpush1.bf16.msra.mxu0 %v312
        %336 = vmatprep.subr.bf16.mxu0 0
        %337 = vmatpush1.bf16.msra.mxu0 %v313
        %338 = vmatprep.subr.bf16.mxu0 0
        %339 = vmatpush1.bf16.msra.mxu0 0
        %340 = vmatprep.subr.bf16.mxu0 0
        %341 = vmatpush1.bf16.msra.mxu0 0
        %342 = vmatprep.subr.bf16.mxu0 0
        %343 = vmatpush1.bf16.msra.mxu0 0
        %344 = vmatprep.subr.bf16.mxu0 0
        %345 = vmatpush1.bf16.msra.mxu0 0
        %346 = vmatprep.subr.bf16.mxu0 0
        %347 = vmatpush1.bf16.msra.mxu0 0
        %348 = vmatprep.subr.bf16.mxu0 0
        %349 = vmatpush1.bf16.msra.mxu0 0
        %350 = vmatprep.subr.bf16.mxu0 0
        %351 = vmatpush1.bf16.msra.mxu0 0
        %352 = vmatprep.subr.bf16.mxu0 0
        %353 = vmatpush1.bf16.msra.mxu0 0
        %354 = vmatprep.mubr.bf16.mxu0 0
        %355 = vmatmul.mubr.bf16.gmra.mrb[0].mxu0 %v264
        %v356 = vpop.f32.mrb[0].mxu0
        %v357 = vadd.f32 0.0, %v356
        %v358 = vpop.f32.mrb[0].mxu0
        %v359 = vpop.f32.mrb[0].mxu0
        %v360 = vadd.f32 0.0, %v359
        %v361 = vpop.f32.mrb[0].mxu0
        %362 = vmatprep.mubr.bf16.mxu0 0
        %363 = vmatmul.mubr.bf16.gmra.mrb[0].mxu0 %v265
        %v364 = vpop.f32.mrb[0].mxu0
        %v365 = vadd.f32 0.0, %v364
        %v366 = vpop.f32.mrb[0].mxu0
        %v367 = vpop.f32.mrb[0].mxu0
        %v368 = vadd.f32 0.0, %v367
        %v369 = vpop.f32.mrb[0].mxu0
        %370 = vmatprep.mubr.bf16.mxu0 0
        %371 = vmatmul.mubr.bf16.gmra.mrb[0].mxu0 %v266
        %v372 = vpop.f32.mrb[0].mxu0
        %v373 = vadd.f32 0.0, %v372
        %v374 = vpop.f32.mrb[0].mxu0
        %v375 = vpop.f32.mrb[0].mxu0
        %v376 = vadd.f32 0.0, %v375
        %v377 = vpop.f32.mrb[0].mxu0
        %378 = vmatprep.mubr.bf16.mxu0 0
        %379 = vmatmul.mubr.bf16.gmra.mrb[0].mxu0 %v267
        %v380 = vpop.f32.mrb[0].mxu0
        %v381 = vadd.f32 0.0, %v380
        %v382 = vpop.f32.mrb[0].mxu0
        %v383 = vpop.f32.mrb[0].mxu0
        %v384 = vadd.f32 0.0, %v383
        %v385 = vpop.f32.mrb[0].mxu0
        %386 = vmatprep.mubr.bf16.mxu0 0
        %387 = vmatmul.mubr.bf16.gmra.mrb[0].mxu0 %v268
        %v388 = vpop.f32.mrb[0].mxu0
        %v389 = vadd.f32 0.0, %v388
        %v390 = vpop.f32.mrb[0].mxu0
        %v391 = vpop.f32.mrb[0].mxu0
        %v392 = vadd.f32 0.0, %v391
        %v393 = vpop.f32.mrb[0].mxu0
        %394 = vdwg.mxu0
        %395 = vst [vmem:[#allocation2] sm:$0xff] %v357
        %396 = vst [vmem:[#allocation2 + $0x8] sm:$0xff] %v360
        %397 = vst [vmem:[#allocation2 + $0x10] sm:$0xff] %v365
        %398 = vst [vmem:[#allocation2 + $0x18] sm:$0xff] %v368
        %399 = vst [vmem:[#allocation2 + $0x20] sm:$0xff] %v373
        %400 = vst [vmem:[#allocation2 + $0x28] sm:$0xff] %v376
        %401 = vst [vmem:[#allocation2 + $0x30] sm:$0xff] %v381
        %402 = vst [vmem:[#allocation2 + $0x38] sm:$0xff] %v384
        %403 = vst [vmem:[#allocation2 + $0x40] sm:$0xff] %v389
        %404 = vst [vmem:[#allocation2 + $0x48] sm:$0xff] %v392
        %v405 = vld [vmem:[%s185] sm:$0xf]
        %v406 = vld [vmem:[%s185 + $0x4] sm:$0xf]
        %v407 = vld [vmem:[%s185 + $0x8] sm:$0xf]
        %v408 = vld [vmem:[%s185 + $0xc] sm:$0xf]
        %v409 = vld [vmem:[%s185 + $0x10] sm:$0xf]
        %v410 = vld [vmem:[%s185 + $0x14] sm:$0xf]
        %v411 = vld [vmem:[%s185 + $0x18] sm:$0xf]
        %v412 = vld [vmem:[%s185 + $0x1c] sm:$0xf]
        %v413 = vld [vmem:[%s185 + $0x20] sm:$0xf]
        %v414 = vld [vmem:[%s185 + $0x24] sm:$0xf]
        %v415 = vld [vmem:[%s185 + $0x28] sm:$0x1]
        %s416 = scalar_lea.vmem [#allocation6], 64
        %v417 = vld [vmem:[%s416] sm:$0xf]
        %v418 = vld [vmem:[%s416 + $0x4] sm:$0xf]
        %v419 = vld [vmem:[%s416 + $0x8] sm:$0xf]
        %v420 = vld [vmem:[%s416 + $0xc] sm:$0xf]
        %v421 = vld [vmem:[%s416 + $0x10] sm:$0xf]
        %v422 = vld [vmem:[%s416 + $0x14] sm:$0xf]
        %v423 = vld [vmem:[%s416 + $0x18] sm:$0xf]
        %v424 = vld [vmem:[%s416 + $0x1c] sm:$0xf]
        %v425 = vld [vmem:[%s416 + $0x20] sm:$0xf]
        %v426 = vld [vmem:[%s416 + $0x24] sm:$0xf]
        %v427 = vld [vmem:[%s416 + $0x28] sm:$0xf]
        %v428 = vld [vmem:[%s416 + $0x2c] sm:$0xf]
        %v429 = vld [vmem:[%s416 + $0x30] sm:$0xf]
        %v430 = vld [vmem:[%s416 + $0x34] sm:$0xf]
        %v431 = vld [vmem:[%s416 + $0x38] sm:$0xf]
        %v432 = vld [vmem:[%s416 + $0x3c] sm:$0xf]
        %v444 = vunpack.c.l.b16 %v405
        %v445 = vunpack.c.l.b16 %v406
        %v446 = vunpack.c.l.b16 %v407
        %v447 = vunpack.c.l.b16 %v408
        %v448 = vunpack.c.l.b16 %v409
        %v449 = vunpack.c.l.b16 %v410
        %v450 = vunpack.c.l.b16 %v411
        %v451 = vunpack.c.l.b16 %v412
        %v452 = vunpack.c.l.b16 %v413
        %v453 = vunpack.c.l.b16 %v414
        %v454 = vunpack.c.l.b16 %v415
        %v455 = vpack.c.b16 %v445, %v444
        %v456 = vpack.c.b16 %v447, %v446
        %v457 = vpack.c.b16 %v449, %v448
        %v458 = vpack.c.b16 %v451, %v450
        %v459 = vpack.c.b16 %v453, %v452
        %v460 = vpack.c.b16 %v454, %v454
        %vm461 = vsmask.f32 7424
        %v463 = vshrl.u32 %v455, 16
        %v465 = vshll.u32 %v455, 16
        %v467 = vrot.slane %v465, 1
        %v468 = vor.u32 %v463, %v467
        %v470 = vshll.u32 %v456, 16
        %v472 = vrot.slane %v470, 1
        %v473 = vsel %vm461, %v468, %v472
        %v474 = vshrl.u32 %v456, 16
        %v476 = vor.u32 %v474, %v472
        %v478 = vshll.u32 %v457, 16
        %v480 = vrot.slane %v478, 1
        %v481 = vsel %vm461, %v476, %v480
        %v482 = vshrl.u32 %v457, 16
        %v484 = vor.u32 %v482, %v480
        %v486 = vshll.u32 %v458, 16
        %v488 = vrot.slane %v486, 1
        %v489 = vsel %vm461, %v484, %v488
        %v490 = vshrl.u32 %v458, 16
        %v492 = vor.u32 %v490, %v488
        %v494 = vshll.u32 %v459, 16
        %v496 = vrot.slane %v494, 1
        %v497 = vsel %vm461, %v492, %v496
        %v498 = vshrl.u32 %v459, 16
        %v500 = vor.u32 %v498, %v496
        %v502 = vshll.u32 %v460, 16
        %v504 = vrot.slane %v502, 1
        %v505 = vsel %vm461, %v500, %v504
        %v527 = vunpack.c.l.b16 %v417
        %v528 = vunpack.c.l.b16 %v418
        %v529 = vunpack.c.l.b16 %v419
        %v530 = vunpack.c.l.b16 %v420
        %v531 = vunpack.c.l.b16 %v421
        %v532 = vunpack.c.l.b16 %v422
        %v533 = vunpack.c.l.b16 %v423
        %v534 = vunpack.c.l.b16 %v424
        %v535 = vunpack.c.l.b16 %v425
        %v536 = vunpack.c.l.b16 %v426
        %v537 = vunpack.c.l.b16 %v427
        %v538 = vunpack.c.l.b16 %v428
        %v539 = vunpack.c.l.b16 %v429
        %v540 = vunpack.c.l.b16 %v430
        %v541 = vunpack.c.l.b16 %v431
        %v542 = vunpack.c.l.b16 %v432
        %v543 = vpack.c.b16 %v528, %v527
        %v544 = vpack.c.b16 %v530, %v529
        %v545 = vpack.c.b16 %v532, %v531
        %v546 = vpack.c.b16 %v534, %v533
        %v547 = vpack.c.b16 %v536, %v535
        %v548 = vpack.c.b16 %v538, %v537
        %v549 = vpack.c.b16 %v540, %v539
        %v550 = vpack.c.b16 %v542, %v541
        %559 = vmatprep.subr.bf16.mxu0 0
        %560 = vmatpush1.bf16.msra.mxu0 %v543
        %561 = vmatprep.subr.bf16.mxu0 0
        %562 = vmatpush1.bf16.msra.mxu0 %v544
        %563 = vmatprep.subr.bf16.mxu0 0
        %564 = vmatpush1.bf16.msra.mxu0 %v545
        %565 = vmatprep.subr.bf16.mxu0 0
        %566 = vmatpush1.bf16.msra.mxu0 %v546
        %567 = vmatprep.subr.bf16.mxu0 0
        %568 = vmatpush1.bf16.msra.mxu0 %v547
        %569 = vmatprep.subr.bf16.mxu0 0
        %570 = vmatpush1.bf16.msra.mxu0 %v548
        %571 = vmatprep.subr.bf16.mxu0 0
        %572 = vmatpush1.bf16.msra.mxu0 %v549
        %573 = vmatprep.subr.bf16.mxu0 0
        %574 = vmatpush1.bf16.msra.mxu0 %v550
        %575 = vmatprep.subr.bf16.mxu0 0
        %576 = vmatpush1.bf16.msra.mxu0 0
        %577 = vmatprep.subr.bf16.mxu0 0
        %578 = vmatpush1.bf16.msra.mxu0 0
        %579 = vmatprep.subr.bf16.mxu0 0
        %580 = vmatpush1.bf16.msra.mxu0 0
        %581 = vmatprep.subr.bf16.mxu0 0
        %582 = vmatpush1.bf16.msra.mxu0 0
        %583 = vmatprep.subr.bf16.mxu0 0
        %584 = vmatpush1.bf16.msra.mxu0 0
        %585 = vmatprep.subr.bf16.mxu0 0
        %586 = vmatpush1.bf16.msra.mxu0 0
        %587 = vmatprep.subr.bf16.mxu0 0
        %588 = vmatpush1.bf16.msra.mxu0 0
        %589 = vmatprep.subr.bf16.mxu0 0
        %590 = vmatpush1.bf16.msra.mxu0 0
        %591 = vmatprep.mubr.bf16.mxu0 0
        %592 = vmatmul.mubr.bf16.gmra.mrb[0].mxu0 %v473
        %v593 = vpop.f32.mrb[0].mxu0
        %v594 = vadd.f32 0.0, %v593
        %v595 = vpop.f32.mrb[0].mxu0
        %v596 = vpop.f32.mrb[0].mxu0
        %v597 = vadd.f32 0.0, %v596
        %v598 = vpop.f32.mrb[0].mxu0
        %599 = vmatprep.mubr.bf16.mxu0 0
        %600 = vmatmul.mubr.bf16.gmra.mrb[0].mxu0 %v481
        %v601 = vpop.f32.mrb[0].mxu0
        %v602 = vadd.f32 0.0, %v601
        %v603 = vpop.f32.mrb[0].mxu0
        %v604 = vpop.f32.mrb[0].mxu0
        %v605 = vadd.f32 0.0, %v604
        %v606 = vpop.f32.mrb[0].mxu0
        %607 = vmatprep.mubr.bf16.mxu0 0
        %608 = vmatmul.mubr.bf16.gmra.mrb[0].mxu0 %v489
        %v609 = vpop.f32.mrb[0].mxu0
        %v610 = vadd.f32 0.0, %v609
        %v611 = vpop.f32.mrb[0].mxu0
        %v612 = vpop.f32.mrb[0].mxu0
        %v613 = vadd.f32 0.0, %v612
        %v614 = vpop.f32.mrb[0].mxu0
        %615 = vmatprep.mubr.bf16.mxu0 0
        %616 = vmatmul.mubr.bf16.gmra.mrb[0].mxu0 %v497
        %v617 = vpop.f32.mrb[0].mxu0
        %v618 = vadd.f32 0.0, %v617
        %v619 = vpop.f32.mrb[0].mxu0
        %v620 = vpop.f32.mrb[0].mxu0
        %v621 = vadd.f32 0.0, %v620
        %v622 = vpop.f32.mrb[0].mxu0
        %623 = vmatprep.mubr.bf16.mxu0 0
        %624 = vmatmul.mubr.bf16.gmra.mrb[0].mxu0 %v505
        %v625 = vpop.f32.mrb[0].mxu0
        %v626 = vadd.f32 0.0, %v625
        %v627 = vpop.f32.mrb[0].mxu0
        %v628 = vpop.f32.mrb[0].mxu0
        %v629 = vadd.f32 0.0, %v628
        %v630 = vpop.f32.mrb[0].mxu0
        %631 = vdwg.mxu0
        %v632 = vld [vmem:[#allocation2] sm:$0xff]
        %v633 = vld [vmem:[#allocation2 + $0x8] sm:$0xff]
        %v634 = vld [vmem:[#allocation2 + $0x10] sm:$0xff]
        %v635 = vld [vmem:[#allocation2 + $0x18] sm:$0xff]
        %v636 = vld [vmem:[#allocation2 + $0x20] sm:$0xff]
        %v637 = vld [vmem:[#allocation2 + $0x28] sm:$0xff]
        %v638 = vld [vmem:[#allocation2 + $0x30] sm:$0xff]
        %v639 = vld [vmem:[#allocation2 + $0x38] sm:$0xff]
        %v640 = vld [vmem:[#allocation2 + $0x40] sm:$0xff]
        %v641 = vld [vmem:[#allocation2 + $0x48] sm:$0xff]
        %v642 = vadd.f32 %v632, %v594
        %v643 = vadd.f32 %v633, %v597
        %v644 = vadd.f32 %v634, %v602
        %v645 = vadd.f32 %v635, %v605
        %v646 = vadd.f32 %v636, %v610
        %v647 = vadd.f32 %v637, %v613
        %v648 = vadd.f32 %v638, %v618
        %v649 = vadd.f32 %v639, %v621
        %v650 = vadd.f32 %v640, %v626
        %v651 = vadd.f32 %v641, %v629
        %652 = vst [vmem:[#allocation2] sm:$0xff] %v642
        %653 = vst [vmem:[#allocation2 + $0x8] sm:$0xff] %v643
        %654 = vst [vmem:[#allocation2 + $0x10] sm:$0xff] %v644
        %655 = vst [vmem:[#allocation2 + $0x18] sm:$0xff] %v645
        %656 = vst [vmem:[#allocation2 + $0x20] sm:$0xff] %v646
        %657 = vst [vmem:[#allocation2 + $0x28] sm:$0xff] %v647
        %658 = vst [vmem:[#allocation2 + $0x30] sm:$0xff] %v648
        %659 = vst [vmem:[#allocation2 + $0x38] sm:$0xff] %v649
        %660 = vst [vmem:[#allocation2 + $0x40] sm:$0xff] %v650
        %661 = vst [vmem:[#allocation2 + $0x48] sm:$0xff] %v651
        %v662 = vld [vmem:[%s185] sm:$0xe]
        %v663 = vld [vmem:[%s185 + $0x4] sm:$0xf]
        %v664 = vld [vmem:[%s185 + $0x8] sm:$0xf]
        %v665 = vld [vmem:[%s185 + $0xc] sm:$0xf]
        %v666 = vld [vmem:[%s185 + $0x10] sm:$0xf]
        %v667 = vld [vmem:[%s185 + $0x14] sm:$0xf]
        %v668 = vld [vmem:[%s185 + $0x18] sm:$0xf]
        %v669 = vld [vmem:[%s185 + $0x1c] sm:$0xf]
        %v670 = vld [vmem:[%s185 + $0x20] sm:$0xf]
        %v671 = vld [vmem:[%s185 + $0x24] sm:$0xf]
        %v672 = vld [vmem:[%s185 + $0x28] sm:$0x1]
        %s673 = scalar_lea.vmem [#allocation6], 128
        %v674 = vld [vmem:[%s673] sm:$0xf]
        %v675 = vld [vmem:[%s673 + $0x4] sm:$0xf]
        %v676 = vld [vmem:[%s673 + $0x8] sm:$0xf]
        %v677 = vld [vmem:[%s673 + $0xc] sm:$0xf]
        %v678 = vld [vmem:[%s673 + $0x10] sm:$0xf]
        %v679 = vld [vmem:[%s673 + $0x14] sm:$0xf]
        %v680 = vld [vmem:[%s673 + $0x18] sm:$0xf]
        %v681 = vld [vmem:[%s673 + $0x1c] sm:$0xf]
        %v682 = vld [vmem:[%s673 + $0x20] sm:$0xf]
        %v683 = vld [vmem:[%s673 + $0x24] sm:$0xf]
        %v684 = vld [vmem:[%s673 + $0x28] sm:$0xf]
        %v685 = vld [vmem:[%s673 + $0x2c] sm:$0xf]
        %v686 = vld [vmem:[%s673 + $0x30] sm:$0xf]
        %v687 = vld [vmem:[%s673 + $0x34] sm:$0xf]
        %v688 = vld [vmem:[%s673 + $0x38] sm:$0xf]
        %v689 = vld [vmem:[%s673 + $0x3c] sm:$0xf]
        %v701 = vunpack.c.l.b16 %v662
        %v702 = vunpack.c.l.b16 %v663
        %v703 = vunpack.c.l.b16 %v664
        %v704 = vunpack.c.l.b16 %v665
        %v705 = vunpack.c.l.b16 %v666
        %v706 = vunpack.c.l.b16 %v667
        %v707 = vunpack.c.l.b16 %v668
        %v708 = vunpack.c.l.b16 %v669
        %v709 = vunpack.c.l.b16 %v670
        %v710 = vunpack.c.l.b16 %v671
        %v711 = vunpack.c.l.b16 %v672
        %v712 = vpack.c.b16 %v702, %v701
        %v713 = vpack.c.b16 %v704, %v703
        %v714 = vpack.c.b16 %v706, %v705
        %v715 = vpack.c.b16 %v708, %v707
        %v716 = vpack.c.b16 %v710, %v709
        %v717 = vpack.c.b16 %v711, %v711
        %vm718 = vcmask 1046528
        %v719 = vrot.slane %v712, 1
        %v720 = vrot.slane %v713, 1
        %v721 = vsel %vm718, %v719, %v720
        %v722 = vrot.slane %v714, 1
        %v723 = vsel %vm718, %v720, %v722
        %v724 = vrot.slane %v715, 1
        %v725 = vsel %vm718, %v722, %v724
        %v726 = vrot.slane %v716, 1
        %v727 = vsel %vm718, %v724, %v726
        %v728 = vrot.slane %v717, 1
        %v729 = vsel %vm718, %v726, %v728
        %v751 = vunpack.c.l.b16 %v674
        %v752 = vunpack.c.l.b16 %v675
        %v753 = vunpack.c.l.b16 %v676
        %v754 = vunpack.c.l.b16 %v677
        %v755 = vunpack.c.l.b16 %v678
        %v756 = vunpack.c.l.b16 %v679
        %v757 = vunpack.c.l.b16 %v680
        %v758 = vunpack.c.l.b16 %v681
        %v759 = vunpack.c.l.b16 %v682
        %v760 = vunpack.c.l.b16 %v683
        %v761 = vunpack.c.l.b16 %v684
        %v762 = vunpack.c.l.b16 %v685
        %v763 = vunpack.c.l.b16 %v686
        %v764 = vunpack.c.l.b16 %v687
        %v765 = vunpack.c.l.b16 %v688
        %v766 = vunpack.c.l.b16 %v689
        %v767 = vpack.c.b16 %v752, %v751
        %v768 = vpack.c.b16 %v754, %v753
        %v769 = vpack.c.b16 %v756, %v755
        %v770 = vpack.c.b16 %v758, %v757
        %v771 = vpack.c.b16 %v760, %v759
        %v772 = vpack.c.b16 %v762, %v761
        %v773 = vpack.c.b16 %v764, %v763
        %v774 = vpack.c.b16 %v766, %v765
        %783 = vmatprep.subr.bf16.mxu0 0
        %784 = vmatpush1.bf16.msra.mxu0 %v767
        %785 = vmatprep.subr.bf16.mxu0 0
        %786 = vmatpush1.bf16.msra.mxu0 %v768
        %787 = vmatprep.subr.bf16.mxu0 0
        %788 = vmatpush1.bf16.msra.mxu0 %v769
        %789 = vmatprep.subr.bf16.mxu0 0
        %790 = vmatpush1.bf16.msra.mxu0 %v770
        %791 = vmatprep.subr.bf16.mxu0 0
        %792 = vmatpush1.bf16.msra.mxu0 %v771
        %793 = vmatprep.subr.bf16.mxu0 0
        %794 = vmatpush1.bf16.msra.mxu0 %v772
        %795 = vmatprep.subr.bf16.mxu0 0
        %796 = vmatpush1.bf16.msra.mxu0 %v773
        %797 = vmatprep.subr.bf16.mxu0 0
        %798 = vmatpush1.bf16.msra.mxu0 %v774
        %799 = vmatprep.subr.bf16.mxu0 0
        %800 = vmatpush1.bf16.msra.mxu0 0
        %801 = vmatprep.subr.bf16.mxu0 0
        %802 = vmatpush1.bf16.msra.mxu0 0
        %803 = vmatprep.subr.bf16.mxu0 0
        %804 = vmatpush1.bf16.msra.mxu0 0
        %805 = vmatprep.subr.bf16.mxu0 0
        %806 = vmatpush1.bf16.msra.mxu0 0
        %807 = vmatprep.subr.bf16.mxu0 0
        %808 = vmatpush1.bf16.msra.mxu0 0
        %809 = vmatprep.subr.bf16.mxu0 0
        %810 = vmatpush1.bf16.msra.mxu0 0
        %811 = vmatprep.subr.bf16.mxu0 0
        %812 = vmatpush1.bf16.msra.mxu0 0
        %813 = vmatprep.subr.bf16.mxu0 0
        %814 = vmatpush1.bf16.msra.mxu0 0
        %815 = vmatprep.mubr.bf16.mxu0 0
        %816 = vmatmul.mubr.bf16.gmra.mrb[0].mxu0 %v721
        %v817 = vpop.f32.mrb[0].mxu0
        %v818 = vadd.f32 0.0, %v817
        %v819 = vpop.f32.mrb[0].mxu0
        %v820 = vpop.f32.mrb[0].mxu0
        %v821 = vadd.f32 0.0, %v820
        %v822 = vpop.f32.mrb[0].mxu0
        %823 = vmatprep.mubr.bf16.mxu0 0
        %824 = vmatmul.mubr.bf16.gmra.mrb[0].mxu0 %v723
        %v825 = vpop.f32.mrb[0].mxu0
        %v826 = vadd.f32 0.0, %v825
        %v827 = vpop.f32.mrb[0].mxu0
        %v828 = vpop.f32.mrb[0].mxu0
        %v829 = vadd.f32 0.0, %v828
        %v830 = vpop.f32.mrb[0].mxu0
        %831 = vmatprep.mubr.bf16.mxu0 0
        %832 = vmatmul.mubr.bf16.gmra.mrb[0].mxu0 %v725
        %v833 = vpop.f32.mrb[0].mxu0
        %v834 = vadd.f32 0.0, %v833
        %v835 = vpop.f32.mrb[0].mxu0
        %v836 = vpop.f32.mrb[0].mxu0
        %v837 = vadd.f32 0.0, %v836
        %v838 = vpop.f32.mrb[0].mxu0
        %839 = vmatprep.mubr.bf16.mxu0 0
        %840 = vmatmul.mubr.bf16.gmra.mrb[0].mxu0 %v727
        %v841 = vpop.f32.mrb[0].mxu0
        %v842 = vadd.f32 0.0, %v841
        %v843 = vpop.f32.mrb[0].mxu0
        %v844 = vpop.f32.mrb[0].mxu0
        %v845 = vadd.f32 0.0, %v844
        %v846 = vpop.f32.mrb[0].mxu0
        %847 = vmatprep.mubr.bf16.mxu0 0
        %848 = vmatmul.mubr.bf16.gmra.mrb[0].mxu0 %v729
        %v849 = vpop.f32.mrb[0].mxu0
        %v850 = vadd.f32 0.0, %v849
        %v851 = vpop.f32.mrb[0].mxu0
        %v852 = vpop.f32.mrb[0].mxu0
        %v853 = vadd.f32 0.0, %v852
        %v854 = vpop.f32.mrb[0].mxu0
        %855 = vdwg.mxu0
        %v856 = vld [vmem:[#allocation2] sm:$0xff]
        %v857 = vld [vmem:[#allocation2 + $0x8] sm:$0xff]
        %v858 = vld [vmem:[#allocation2 + $0x10] sm:$0xff]
        %v859 = vld [vmem:[#allocation2 + $0x18] sm:$0xff]
        %v860 = vld [vmem:[#allocation2 + $0x20] sm:$0xff]
        %v861 = vld [vmem:[#allocation2 + $0x28] sm:$0xff]
        %v862 = vld [vmem:[#allocation2 + $0x30] sm:$0xff]
        %v863 = vld [vmem:[#allocation2 + $0x38] sm:$0xff]
        %v864 = vld [vmem:[#allocation2 + $0x40] sm:$0xff]
        %v865 = vld [vmem:[#allocation2 + $0x48] sm:$0xff]
        %v866 = vadd.f32 %v856, %v818
        %v867 = vadd.f32 %v857, %v821
        %v868 = vadd.f32 %v858, %v826
        %v869 = vadd.f32 %v859, %v829
        %v870 = vadd.f32 %v860, %v834
        %v871 = vadd.f32 %v861, %v837
        %v872 = vadd.f32 %v862, %v842
        %v873 = vadd.f32 %v863, %v845
        %v874 = vadd.f32 %v864, %v850
        %v875 = vadd.f32 %v865, %v853
        %876 = vst [vmem:[#allocation2] sm:$0xff] %v866
        %877 = vst [vmem:[#allocation2 + $0x8] sm:$0xff] %v867
        %878 = vst [vmem:[#allocation2 + $0x10] sm:$0xff] %v868
        %879 = vst [vmem:[#allocation2 + $0x18] sm:$0xff] %v869
        %880 = vst [vmem:[#allocation2 + $0x20] sm:$0xff] %v870
        %881 = vst [vmem:[#allocation2 + $0x28] sm:$0xff] %v871
        %882 = vst [vmem:[#allocation2 + $0x30] sm:$0xff] %v872
        %883 = vst [vmem:[#allocation2 + $0x38] sm:$0xff] %v873
        %884 = vst [vmem:[#allocation2 + $0x40] sm:$0xff] %v874
        %885 = vst [vmem:[#allocation2 + $0x48] sm:$0xff] %v875
        %v886 = vld [vmem:[%s185 + $0x4] sm:$0xe]
        %v887 = vld [vmem:[%s185 + $0x8] sm:$0xf]
        %v888 = vld [vmem:[%s185 + $0xc] sm:$0xf]
        %v889 = vld [vmem:[%s185 + $0x10] sm:$0xf]
        %v890 = vld [vmem:[%s185 + $0x14] sm:$0xf]
        %v891 = vld [vmem:[%s185 + $0x18] sm:$0xf]
        %v892 = vld [vmem:[%s185 + $0x1c] sm:$0xf]
        %v893 = vld [vmem:[%s185 + $0x20] sm:$0xf]
        %v894 = vld [vmem:[%s185 + $0x24] sm:$0xf]
        %v895 = vld [vmem:[%s185 + $0x28] sm:$0xf]
        %v896 = vld [vmem:[%s185 + $0x2c] sm:$0x1]
        %s897 = scalar_lea.vmem [#allocation6], 192
        %v898 = vld [vmem:[%s897] sm:$0xf]
        %v899 = vld [vmem:[%s897 + $0x4] sm:$0xf]
        %v900 = vld [vmem:[%s897 + $0x8] sm:$0xf]
        %v901 = vld [vmem:[%s897 + $0xc] sm:$0xf]
        %v902 = vld [vmem:[%s897 + $0x10] sm:$0xf]
        %v903 = vld [vmem:[%s897 + $0x14] sm:$0xf]
        %v904 = vld [vmem:[%s897 + $0x18] sm:$0xf]
        %v905 = vld [vmem:[%s897 + $0x1c] sm:$0xf]
        %v906 = vld [vmem:[%s897 + $0x20] sm:$0xf]
        %v907 = vld [vmem:[%s897 + $0x24] sm:$0xf]
        %v908 = vld [vmem:[%s897 + $0x28] sm:$0xf]
        %v909 = vld [vmem:[%s897 + $0x2c] sm:$0xf]
        %v910 = vld [vmem:[%s897 + $0x30] sm:$0xf]
        %v911 = vld [vmem:[%s897 + $0x34] sm:$0xf]
        %v912 = vld [vmem:[%s897 + $0x38] sm:$0xf]
        %v913 = vld [vmem:[%s897 + $0x3c] sm:$0xf]
        %v925 = vunpack.c.l.b16 %v886
        %v926 = vunpack.c.l.b16 %v887
        %v927 = vunpack.c.l.b16 %v888
        %v928 = vunpack.c.l.b16 %v889
        %v929 = vunpack.c.l.b16 %v890
        %v930 = vunpack.c.l.b16 %v891
        %v931 = vunpack.c.l.b16 %v892
        %v932 = vunpack.c.l.b16 %v893
        %v933 = vunpack.c.l.b16 %v894
        %v934 = vunpack.c.l.b16 %v895
        %v935 = vunpack.c.l.b16 %v896
        %v936 = vpack.c.b16 %v926, %v925
        %v937 = vpack.c.b16 %v928, %v927
        %v938 = vpack.c.b16 %v930, %v929
        %v939 = vpack.c.b16 %v932, %v931
        %v940 = vpack.c.b16 %v934, %v933
        %v941 = vpack.c.b16 %v935, %v935
        %v942 = vrot.slane %v936, 1
        %v943 = vrot.slane %v937, 1
        %v944 = vsel %vm718, %v942, %v943
        %v945 = vrot.slane %v938, 1
        %v946 = vsel %vm718, %v943, %v945
        %v947 = vrot.slane %v939, 1
        %v948 = vsel %vm718, %v945, %v947
        %v949 = vrot.slane %v940, 1
        %v950 = vsel %vm718, %v947, %v949
        %v951 = vrot.slane %v941, 1
        %v952 = vsel %vm718, %v949, %v951
        %v974 = vunpack.c.l.b16 %v898
        %v975 = vunpack.c.l.b16 %v899
        %v976 = vunpack.c.l.b16 %v900
        %v977 = vunpack.c.l.b16 %v901
        %v978 = vunpack.c.l.b16 %v902
        %v979 = vunpack.c.l.b16 %v903
        %v980 = vunpack.c.l.b16 %v904
        %v981 = vunpack.c.l.b16 %v905
        %v982 = vunpack.c.l.b16 %v906
        %v983 = vunpack.c.l.b16 %v907
        %v984 = vunpack.c.l.b16 %v908
        %v985 = vunpack.c.l.b16 %v909
        %v986 = vunpack.c.l.b16 %v910
        %v987 = vunpack.c.l.b16 %v911
        %v988 = vunpack.c.l.b16 %v912
        %v989 = vunpack.c.l.b16 %v913
        %v990 = vpack.c.b16 %v975, %v974
        %v991 = vpack.c.b16 %v977, %v976
        %v992 = vpack.c.b16 %v979, %v978
        %v993 = vpack.c.b16 %v981, %v980
        %v994 = vpack.c.b16 %v983, %v982
        %v995 = vpack.c.b16 %v985, %v984
        %v996 = vpack.c.b16 %v987, %v986
        %v997 = vpack.c.b16 %v989, %v988
        %1006 = vmatprep.subr.bf16.mxu0 0
        %1007 = vmatpush1.bf16.msra.mxu0 %v990
        %1008 = vmatprep.subr.bf16.mxu0 0
        %1009 = vmatpush1.bf16.msra.mxu0 %v991
        %1010 = vmatprep.subr.bf16.mxu0 0
        %1011 = vmatpush1.bf16.msra.mxu0 %v992
        %1012 = vmatprep.subr.bf16.mxu0 0
        %1013 = vmatpush1.bf16.msra.mxu0 %v993
        %1014 = vmatprep.subr.bf16.mxu0 0
        %1015 = vmatpush1.bf16.msra.mxu0 %v994
        %1016 = vmatprep.subr.bf16.mxu0 0
        %1017 = vmatpush1.bf16.msra.mxu0 %v995
        %1018 = vmatprep.subr.bf16.mxu0 0
        %1019 = vmatpush1.bf16.msra.mxu0 %v996
        %1020 = vmatprep.subr.bf16.mxu0 0
        %1021 = vmatpush1.bf16.msra.mxu0 %v997
        %1022 = vmatprep.subr.bf16.mxu0 0
        %1023 = vmatpush1.bf16.msra.mxu0 0
        %1024 = vmatprep.subr.bf16.mxu0 0
        %1025 = vmatpush1.bf16.msra.mxu0 0
        %1026 = vmatprep.subr.bf16.mxu0 0
        %1027 = vmatpush1.bf16.msra.mxu0 0
        %1028 = vmatprep.subr.bf16.mxu0 0
        %1029 = vmatpush1.bf16.msra.mxu0 0
        %1030 = vmatprep.subr.bf16.mxu0 0
        %1031 = vmatpush1.bf16.msra.mxu0 0
        %1032 = vmatprep.subr.bf16.mxu0 0
        %1033 = vmatpush1.bf16.msra.mxu0 0
        %1034 = vmatprep.subr.bf16.mxu0 0
        %1035 = vmatpush1.bf16.msra.mxu0 0
        %1036 = vmatprep.subr.bf16.mxu0 0
        %1037 = vmatpush1.bf16.msra.mxu0 0
        %1038 = vmatprep.mubr.bf16.mxu0 0
        %1039 = vmatmul.mubr.bf16.gmra.mrb[0].mxu0 %v944
        %v1040 = vpop.f32.mrb[0].mxu0
        %v1041 = vadd.f32 0.0, %v1040
        %v1042 = vpop.f32.mrb[0].mxu0
        %v1043 = vpop.f32.mrb[0].mxu0
        %v1044 = vadd.f32 0.0, %v1043
        %v1045 = vpop.f32.mrb[0].mxu0
        %1046 = vmatprep.mubr.bf16.mxu0 0
        %1047 = vmatmul.mubr.bf16.gmra.mrb[0].mxu0 %v946
        %v1048 = vpop.f32.mrb[0].mxu0
        %v1049 = vadd.f32 0.0, %v1048
        %v1050 = vpop.f32.mrb[0].mxu0
        %v1051 = vpop.f32.mrb[0].mxu0
        %v1052 = vadd.f32 0.0, %v1051
        %v1053 = vpop.f32.mrb[0].mxu0
        %1054 = vmatprep.mubr.bf16.mxu0 0
        %1055 = vmatmul.mubr.bf16.gmra.mrb[0].mxu0 %v948
        %v1056 = vpop.f32.mrb[0].mxu0
        %v1057 = vadd.f32 0.0, %v1056
        %v1058 = vpop.f32.mrb[0].mxu0
        %v1059 = vpop.f32.mrb[0].mxu0
        %v1060 = vadd.f32 0.0, %v1059
        %v1061 = vpop.f32.mrb[0].mxu0
        %1062 = vmatprep.mubr.bf16.mxu0 0
        %1063 = vmatmul.mubr.bf16.gmra.mrb[0].mxu0 %v950
        %v1064 = vpop.f32.mrb[0].mxu0
        %v1065 = vadd.f32 0.0, %v1064
        %v1066 = vpop.f32.mrb[0].mxu0
        %v1067 = vpop.f32.mrb[0].mxu0
        %v1068 = vadd.f32 0.0, %v1067
        %v1069 = vpop.f32.mrb[0].mxu0
        %1070 = vmatprep.mubr.bf16.mxu0 0
        %1071 = vmatmul.mubr.bf16.gmra.mrb[0].mxu0 %v952
        %v1072 = vpop.f32.mrb[0].mxu0
        %v1073 = vadd.f32 0.0, %v1072
        %v1074 = vpop.f32.mrb[0].mxu0
        %v1075 = vpop.f32.mrb[0].mxu0
        %v1076 = vadd.f32 0.0, %v1075
        %v1077 = vpop.f32.mrb[0].mxu0
        %1078 = vdwg.mxu0
        %v1079 = vld [vmem:[#allocation2] sm:$0xff]
        %v1080 = vld [vmem:[#allocation2 + $0x8] sm:$0xff]
        %v1081 = vld [vmem:[#allocation2 + $0x10] sm:$0xff]
        %v1082 = vld [vmem:[#allocation2 + $0x18] sm:$0xff]
        %v1083 = vld [vmem:[#allocation2 + $0x20] sm:$0xff]
        %v1084 = vld [vmem:[#allocation2 + $0x28] sm:$0xff]
        %v1085 = vld [vmem:[#allocation2 + $0x30] sm:$0xff]
        %v1086 = vld [vmem:[#allocation2 + $0x38] sm:$0xff]
        %v1087 = vld [vmem:[#allocation2 + $0x40] sm:$0xff]
        %v1088 = vld [vmem:[#allocation2 + $0x48] sm:$0xff]
        %v1089 = vadd.f32 %v1079, %v1041
        %v1090 = vadd.f32 %v1080, %v1044
        %v1091 = vadd.f32 %v1081, %v1049
        %v1092 = vadd.f32 %v1082, %v1052
        %v1093 = vadd.f32 %v1083, %v1057
        %v1094 = vadd.f32 %v1084, %v1060
        %v1095 = vadd.f32 %v1085, %v1065
        %v1096 = vadd.f32 %v1086, %v1068
        %v1097 = vadd.f32 %v1087, %v1073
        %v1098 = vadd.f32 %v1088, %v1076
        %1099 = vst [vmem:[#allocation2] sm:$0xff] %v1089
        %1100 = vst [vmem:[#allocation2 + $0x8] sm:$0xff] %v1090
        %1101 = vst [vmem:[#allocation2 + $0x10] sm:$0xff] %v1091
        %1102 = vst [vmem:[#allocation2 + $0x18] sm:$0xff] %v1092
        %1103 = vst [vmem:[#allocation2 + $0x20] sm:$0xff] %v1093
        %1104 = vst [vmem:[#allocation2 + $0x28] sm:$0xff] %v1094
        %1105 = vst [vmem:[#allocation2 + $0x30] sm:$0xff] %v1095
        %1106 = vst [vmem:[#allocation2 + $0x38] sm:$0xff] %v1096
        %1107 = vst [vmem:[#allocation2 + $0x40] sm:$0xff] %v1097
        %1108 = vst [vmem:[#allocation2 + $0x48] sm:$0xff] %v1098
        %v1109 = vld [vmem:[%s185 + $0x4] sm:$0xe]
        %v1110 = vld [vmem:[%s185 + $0x8] sm:$0xf]
        %v1111 = vld [vmem:[%s185 + $0xc] sm:$0xf]
        %v1112 = vld [vmem:[%s185 + $0x10] sm:$0xf]
        %v1113 = vld [vmem:[%s185 + $0x14] sm:$0xf]
        %v1114 = vld [vmem:[%s185 + $0x18] sm:$0xf]
        %v1115 = vld [vmem:[%s185 + $0x1c] sm:$0xf]
        %v1116 = vld [vmem:[%s185 + $0x20] sm:$0xf]
        %v1117 = vld [vmem:[%s185 + $0x24] sm:$0xf]
        %v1118 = vld [vmem:[%s185 + $0x28] sm:$0xf]
        %v1119 = vld [vmem:[%s185 + $0x2c] sm:$0x3]
        %s1120 = scalar_lea.vmem [#allocation6], 256
        %v1121 = vld [vmem:[%s1120] sm:$0xf]
        %v1122 = vld [vmem:[%s1120 + $0x4] sm:$0xf]
        %v1123 = vld [vmem:[%s1120 + $0x8] sm:$0xf]
        %v1124 = vld [vmem:[%s1120 + $0xc] sm:$0xf]
        %v1125 = vld [vmem:[%s1120 + $0x10] sm:$0xf]
        %v1126 = vld [vmem:[%s1120 + $0x14] sm:$0xf]
        %v1127 = vld [vmem:[%s1120 + $0x18] sm:$0xf]
        %v1128 = vld [vmem:[%s1120 + $0x1c] sm:$0xf]
        %v1129 = vld [vmem:[%s1120 + $0x20] sm:$0xf]
        %v1130 = vld [vmem:[%s1120 + $0x24] sm:$0xf]
        %v1131 = vld [vmem:[%s1120 + $0x28] sm:$0xf]
        %v1132 = vld [vmem:[%s1120 + $0x2c] sm:$0xf]
        %v1133 = vld [vmem:[%s1120 + $0x30] sm:$0xf]
        %v1134 = vld [vmem:[%s1120 + $0x34] sm:$0xf]
        %v1135 = vld [vmem:[%s1120 + $0x38] sm:$0xf]
        %v1136 = vld [vmem:[%s1120 + $0x3c] sm:$0xf]
        %v1148 = vunpack.c.l.b16 %v1109
        %v1149 = vunpack.c.l.b16 %v1110
        %v1150 = vunpack.c.l.b16 %v1111
        %v1151 = vunpack.c.l.b16 %v1112
        %v1152 = vunpack.c.l.b16 %v1113
        %v1153 = vunpack.c.l.b16 %v1114
        %v1154 = vunpack.c.l.b16 %v1115
        %v1155 = vunpack.c.l.b16 %v1116
        %v1156 = vunpack.c.l.b16 %v1117
        %v1157 = vunpack.c.l.b16 %v1118
        %v1158 = vunpack.c.l.b16 %v1119
        %v1159 = vpack.c.b16 %v1149, %v1148
        %v1160 = vpack.c.b16 %v1151, %v1150
        %v1161 = vpack.c.b16 %v1153, %v1152
        %v1162 = vpack.c.b16 %v1155, %v1154
        %v1163 = vpack.c.b16 %v1157, %v1156
        %v1164 = vpack.c.b16 %v1158, %v1158
        %vm1165 = vsmask.f32 6400
        %v1167 = vshrl.u32 %v1159, 16
        %v1169 = vrot.slane %v1167, 1
        %v1170 = vshll.u32 %v1159, 16
        %v1172 = vrot.slane %v1170, 2
        %v1173 = vor.u32 %v1169, %v1172
        %v1175 = vshrl.u32 %v1160, 16
        %v1177 = vrot.slane %v1175, 1
        %v1178 = vshll.u32 %v1160, 16
        %v1180 = vrot.slane %v1178, 2
        %v1181 = vor.u32 %v1177, %v1180
        %v1182 = vsel %vm1165, %v1173, %v1181
        %v1184 = vshrl.u32 %v1161, 16
        %v1186 = vrot.slane %v1184, 1
        %v1187 = vshll.u32 %v1161, 16
        %v1189 = vrot.slane %v1187, 2
        %v1190 = vor.u32 %v1186, %v1189
        %v1191 = vsel %vm1165, %v1181, %v1190
        %v1193 = vshrl.u32 %v1162, 16
        %v1195 = vrot.slane %v1193, 1
        %v1196 = vshll.u32 %v1162, 16
        %v1198 = vrot.slane %v1196, 2
        %v1199 = vor.u32 %v1195, %v1198
        %v1200 = vsel %vm1165, %v1190, %v1199
        %v1202 = vshrl.u32 %v1163, 16
        %v1204 = vrot.slane %v1202, 1
        %v1205 = vshll.u32 %v1163, 16
        %v1207 = vrot.slane %v1205, 2
        %v1208 = vor.u32 %v1204, %v1207
        %v1209 = vsel %vm1165, %v1199, %v1208
        %v1211 = vshrl.u32 %v1164, 16
        %v1213 = vrot.slane %v1211, 1
        %v1214 = vshll.u32 %v1164, 16
        %v1216 = vrot.slane %v1214, 2
        %v1217 = vor.u32 %v1213, %v1216
        %v1218 = vsel %vm1165, %v1208, %v1217
        %v1240 = vunpack.c.l.b16 %v1121
        %v1241 = vunpack.c.l.b16 %v1122
        %v1242 = vunpack.c.l.b16 %v1123
        %v1243 = vunpack.c.l.b16 %v1124
        %v1244 = vunpack.c.l.b16 %v1125
        %v1245 = vunpack.c.l.b16 %v1126
        %v1246 = vunpack.c.l.b16 %v1127
        %v1247 = vunpack.c.l.b16 %v1128
        %v1248 = vunpack.c.l.b16 %v1129
        %v1249 = vunpack.c.l.b16 %v1130
        %v1250 = vunpack.c.l.b16 %v1131
        %v1251 = vunpack.c.l.b16 %v1132
        %v1252 = vunpack.c.l.b16 %v1133
        %v1253 = vunpack.c.l.b16 %v1134
        %v1254 = vunpack.c.l.b16 %v1135
        %v1255 = vunpack.c.l.b16 %v1136
        %v1256 = vpack.c.b16 %v1241, %v1240
        %v1257 = vpack.c.b16 %v1243, %v1242
        %v1258 = vpack.c.b16 %v1245, %v1244
        %v1259 = vpack.c.b16 %v1247, %v1246
        %v1260 = vpack.c.b16 %v1249, %v1248
        %v1261 = vpack.c.b16 %v1251, %v1250
        %v1262 = vpack.c.b16 %v1253, %v1252
        %v1263 = vpack.c.b16 %v1255, %v1254
        %1272 = vmatprep.subr.bf16.mxu0 0
        %1273 = vmatpush1.bf16.msra.mxu0 %v1256
        %1274 = vmatprep.subr.bf16.mxu0 0
        %1275 = vmatpush1.bf16.msra.mxu0 %v1257
        %1276 = vmatprep.subr.bf16.mxu0 0
        %1277 = vmatpush1.bf16.msra.mxu0 %v1258
        %1278 = vmatprep.subr.bf16.mxu0 0
        %1279 = vmatpush1.bf16.msra.mxu0 %v1259
        %1280 = vmatprep.subr.bf16.mxu0 0
        %1281 = vmatpush1.bf16.msra.mxu0 %v1260
        %1282 = vmatprep.subr.bf16.mxu0 0
        %1283 = vmatpush1.bf16.msra.mxu0 %v1261
        %1284 = vmatprep.subr.bf16.mxu0 0
        %1285 = vmatpush1.bf16.msra.mxu0 %v1262
        %1286 = vmatprep.subr.bf16.mxu0 0
        %1287 = vmatpush1.bf16.msra.mxu0 %v1263
        %1288 = vmatprep.subr.bf16.mxu0 0
        %1289 = vmatpush1.bf16.msra.mxu0 0
        %1290 = vmatprep.subr.bf16.mxu0 0
        %1291 = vmatpush1.bf16.msra.mxu0 0
        %1292 = vmatprep.subr.bf16.mxu0 0
        %1293 = vmatpush1.bf16.msra.mxu0 0
        %1294 = vmatprep.subr.bf16.mxu0 0
        %1295 = vmatpush1.bf16.msra.mxu0 0
        %1296 = vmatprep.subr.bf16.mxu0 0
        %1297 = vmatpush1.bf16.msra.mxu0 0
        %1298 = vmatprep.subr.bf16.mxu0 0
        %1299 = vmatpush1.bf16.msra.mxu0 0
        %1300 = vmatprep.subr.bf16.mxu0 0
        %1301 = vmatpush1.bf16.msra.mxu0 0
        %1302 = vmatprep.subr.bf16.mxu0 0
        %1303 = vmatpush1.bf16.msra.mxu0 0
        %1304 = vmatprep.mubr.bf16.mxu0 0
        %1305 = vmatmul.mubr.bf16.gmra.mrb[0].mxu0 %v1182
        %v1306 = vpop.f32.mrb[0].mxu0
        %v1307 = vadd.f32 0.0, %v1306
        %v1308 = vpop.f32.mrb[0].mxu0
        %v1309 = vpop.f32.mrb[0].mxu0
        %v1310 = vadd.f32 0.0, %v1309
        %v1311 = vpop.f32.mrb[0].mxu0
        %1312 = vmatprep.mubr.bf16.mxu0 0
        %1313 = vmatmul.mubr.bf16.gmra.mrb[0].mxu0 %v1191
        %v1314 = vpop.f32.mrb[0].mxu0
        %v1315 = vadd.f32 0.0, %v1314
        %v1316 = vpop.f32.mrb[0].mxu0
        %v1317 = vpop.f32.mrb[0].mxu0
        %v1318 = vadd.f32 0.0, %v1317
        %v1319 = vpop.f32.mrb[0].mxu0
        %1320 = vmatprep.mubr.bf16.mxu0 0
        %1321 = vmatmul.mubr.bf16.gmra.mrb[0].mxu0 %v1200
        %v1322 = vpop.f32.mrb[0].mxu0
        %v1323 = vadd.f32 0.0, %v1322
        %v1324 = vpop.f32.mrb[0].mxu0
        %v1325 = vpop.f32.mrb[0].mxu0
        %v1326 = vadd.f32 0.0, %v1325
        %v1327 = vpop.f32.mrb[0].mxu0
        %1328 = vmatprep.mubr.bf16.mxu0 0
        %1329 = vmatmul.mubr.bf16.gmra.mrb[0].mxu0 %v1209
        %v1330 = vpop.f32.mrb[0].mxu0
        %v1331 = vadd.f32 0.0, %v1330
        %v1332 = vpop.f32.mrb[0].mxu0
        %v1333 = vpop.f32.mrb[0].mxu0
        %v1334 = vadd.f32 0.0, %v1333
        %v1335 = vpop.f32.mrb[0].mxu0
        %1336 = vmatprep.mubr.bf16.mxu0 0
        %1337 = vmatmul.mubr.bf16.gmra.mrb[0].mxu0 %v1218
        %v1338 = vpop.f32.mrb[0].mxu0
        %v1339 = vadd.f32 0.0, %v1338
        %v1340 = vpop.f32.mrb[0].mxu0
        %v1341 = vpop.f32.mrb[0].mxu0
        %v1342 = vadd.f32 0.0, %v1341
        %v1343 = vpop.f32.mrb[0].mxu0
        %1344 = vdwg.mxu0
        %v1345 = vld [vmem:[#allocation2] sm:$0xff]
        %v1346 = vld [vmem:[#allocation2 + $0x8] sm:$0xff]
        %v1347 = vld [vmem:[#allocation2 + $0x10] sm:$0xff]
        %v1348 = vld [vmem:[#allocation2 + $0x18] sm:$0xff]
        %v1349 = vld [vmem:[#allocation2 + $0x20] sm:$0xff]
        %v1350 = vld [vmem:[#allocation2 + $0x28] sm:$0xff]
        %v1351 = vld [vmem:[#allocation2 + $0x30] sm:$0xff]
        %v1352 = vld [vmem:[#allocation2 + $0x38] sm:$0xff]
        %v1353 = vld [vmem:[#allocation2 + $0x40] sm:$0xff]
        %v1354 = vld [vmem:[#allocation2 + $0x48] sm:$0xff]
        %v1355 = vadd.f32 %v1345, %v1307
        %v1356 = vadd.f32 %v1346, %v1310
        %v1357 = vadd.f32 %v1347, %v1315
        %v1358 = vadd.f32 %v1348, %v1318
        %v1359 = vadd.f32 %v1349, %v1323
        %v1360 = vadd.f32 %v1350, %v1326
        %v1361 = vadd.f32 %v1351, %v1331
        %v1362 = vadd.f32 %v1352, %v1334
        %v1363 = vadd.f32 %v1353, %v1339
        %v1364 = vadd.f32 %v1354, %v1342
        %1365 = vst [vmem:[#allocation2] sm:$0xff] %v1355
        %1366 = vst [vmem:[#allocation2 + $0x8] sm:$0xff] %v1356
        %1367 = vst [vmem:[#allocation2 + $0x10] sm:$0xff] %v1357
        %1368 = vst [vmem:[#allocation2 + $0x18] sm:$0xff] %v1358
        %1369 = vst [vmem:[#allocation2 + $0x20] sm:$0xff] %v1359
        %1370 = vst [vmem:[#allocation2 + $0x28] sm:$0xff] %v1360
        %1371 = vst [vmem:[#allocation2 + $0x30] sm:$0xff] %v1361
        %1372 = vst [vmem:[#allocation2 + $0x38] sm:$0xff] %v1362
        %1373 = vst [vmem:[#allocation2 + $0x40] sm:$0xff] %v1363
        %1374 = vst [vmem:[#allocation2 + $0x48] sm:$0xff] %v1364
        %v1375 = vld [vmem:[%s185 + $0x4] sm:$0xc]
        %v1376 = vld [vmem:[%s185 + $0x8] sm:$0xf]
        %v1377 = vld [vmem:[%s185 + $0xc] sm:$0xf]
        %v1378 = vld [vmem:[%s185 + $0x10] sm:$0xf]
        %v1379 = vld [vmem:[%s185 + $0x14] sm:$0xf]
        %v1380 = vld [vmem:[%s185 + $0x18] sm:$0xf]
        %v1381 = vld [vmem:[%s185 + $0x1c] sm:$0xf]
        %v1382 = vld [vmem:[%s185 + $0x20] sm:$0xf]
        %v1383 = vld [vmem:[%s185 + $0x24] sm:$0xf]
        %v1384 = vld [vmem:[%s185 + $0x28] sm:$0xf]
        %v1385 = vld [vmem:[%s185 + $0x2c] sm:$0x3]
        %s1386 = scalar_lea.vmem [#allocation6], 320
        %v1387 = vld [vmem:[%s1386] sm:$0xf]
        %v1388 = vld [vmem:[%s1386 + $0x4] sm:$0xf]
        %v1389 = vld [vmem:[%s1386 + $0x8] sm:$0xf]
        %v1390 = vld [vmem:[%s1386 + $0xc] sm:$0xf]
        %v1391 = vld [vmem:[%s1386 + $0x10] sm:$0xf]
        %v1392 = vld [vmem:[%s1386 + $0x14] sm:$0xf]
        %v1393 = vld [vmem:[%s1386 + $0x18] sm:$0xf]
        %v1394 = vld [vmem:[%s1386 + $0x1c] sm:$0xf]
        %v1395 = vld [vmem:[%s1386 + $0x20] sm:$0xf]
        %v1396 = vld [vmem:[%s1386 + $0x24] sm:$0xf]
        %v1397 = vld [vmem:[%s1386 + $0x28] sm:$0xf]
        %v1398 = vld [vmem:[%s1386 + $0x2c] sm:$0xf]
        %v1399 = vld [vmem:[%s1386 + $0x30] sm:$0xf]
        %v1400 = vld [vmem:[%s1386 + $0x34] sm:$0xf]
        %v1401 = vld [vmem:[%s1386 + $0x38] sm:$0xf]
        %v1402 = vld [vmem:[%s1386 + $0x3c] sm:$0xf]
        %v1414 = vunpack.c.l.b16 %v1375
        %v1415 = vunpack.c.l.b16 %v1376
        %v1416 = vunpack.c.l.b16 %v1377
        %v1417 = vunpack.c.l.b16 %v1378
        %v1418 = vunpack.c.l.b16 %v1379
        %v1419 = vunpack.c.l.b16 %v1380
        %v1420 = vunpack.c.l.b16 %v1381
        %v1421 = vunpack.c.l.b16 %v1382
        %v1422 = vunpack.c.l.b16 %v1383
        %v1423 = vunpack.c.l.b16 %v1384
        %v1424 = vunpack.c.l.b16 %v1385
        %v1425 = vpack.c.b16 %v1415, %v1414
        %v1426 = vpack.c.b16 %v1417, %v1416
        %v1427 = vpack.c.b16 %v1419, %v1418
        %v1428 = vpack.c.b16 %v1421, %v1420
        %v1429 = vpack.c.b16 %v1423, %v1422
        %v1430 = vpack.c.b16 %v1424, %v1424
        %vm1431 = vcmask 1045504
        %v1432 = vrot.slane %v1425, 2
        %v1433 = vrot.slane %v1426, 2
        %v1434 = vsel %vm1431, %v1432, %v1433
        %v1435 = vrot.slane %v1427, 2
        %v1436 = vsel %vm1431, %v1433, %v1435
        %v1437 = vrot.slane %v1428, 2
        %v1438 = vsel %vm1431, %v1435, %v1437
        %v1439 = vrot.slane %v1429, 2
        %v1440 = vsel %vm1431, %v1437, %v1439
        %v1441 = vrot.slane %v1430, 2
        %v1442 = vsel %vm1431, %v1439, %v1441
        %v1464 = vunpack.c.l.b16 %v1387
        %v1465 = vunpack.c.l.b16 %v1388
        %v1466 = vunpack.c.l.b16 %v1389
        %v1467 = vunpack.c.l.b16 %v1390
        %v1468 = vunpack.c.l.b16 %v1391
        %v1469 = vunpack.c.l.b16 %v1392
        %v1470 = vunpack.c.l.b16 %v1393
        %v1471 = vunpack.c.l.b16 %v1394
        %v1472 = vunpack.c.l.b16 %v1395
        %v1473 = vunpack.c.l.b16 %v1396
        %v1474 = vunpack.c.l.b16 %v1397
        %v1475 = vunpack.c.l.b16 %v1398
        %v1476 = vunpack.c.l.b16 %v1399
        %v1477 = vunpack.c.l.b16 %v1400
        %v1478 = vunpack.c.l.b16 %v1401
        %v1479 = vunpack.c.l.b16 %v1402
        %v1480 = vpack.c.b16 %v1465, %v1464
        %v1481 = vpack.c.b16 %v1467, %v1466
        %v1482 = vpack.c.b16 %v1469, %v1468
        %v1483 = vpack.c.b16 %v1471, %v1470
        %v1484 = vpack.c.b16 %v1473, %v1472
        %v1485 = vpack.c.b16 %v1475, %v1474
        %v1486 = vpack.c.b16 %v1477, %v1476
        %v1487 = vpack.c.b16 %v1479, %v1478
        %1496 = vmatprep.subr.bf16.mxu0 0
        %1497 = vmatpush1.bf16.msra.mxu0 %v1480
        %1498 = vmatprep.subr.bf16.mxu0 0
        %1499 = vmatpush1.bf16.msra.mxu0 %v1481
        %1500 = vmatprep.subr.bf16.mxu0 0
        %1501 = vmatpush1.bf16.msra.mxu0 %v1482
        %1502 = vmatprep.subr.bf16.mxu0 0
        %1503 = vmatpush1.bf16.msra.mxu0 %v1483
        %1504 = vmatprep.subr.bf16.mxu0 0
        %1505 = vmatpush1.bf16.msra.mxu0 %v1484
        %1506 = vmatprep.subr.bf16.mxu0 0
        %1507 = vmatpush1.bf16.msra.mxu0 %v1485
        %1508 = vmatprep.subr.bf16.mxu0 0
        %1509 = vmatpush1.bf16.msra.mxu0 %v1486
        %1510 = vmatprep.subr.bf16.mxu0 0
        %1511 = vmatpush1.bf16.msra.mxu0 %v1487
        %1512 = vmatprep.subr.bf16.mxu0 0
        %1513 = vmatpush1.bf16.msra.mxu0 0
        %1514 = vmatprep.subr.bf16.mxu0 0
        %1515 = vmatpush1.bf16.msra.mxu0 0
        %1516 = vmatprep.subr.bf16.mxu0 0
        %1517 = vmatpush1.bf16.msra.mxu0 0
        %1518 = vmatprep.subr.bf16.mxu0 0
        %1519 = vmatpush1.bf16.msra.mxu0 0
        %1520 = vmatprep.subr.bf16.mxu0 0
        %1521 = vmatpush1.bf16.msra.mxu0 0
        %1522 = vmatprep.subr.bf16.mxu0 0
        %1523 = vmatpush1.bf16.msra.mxu0 0
        %1524 = vmatprep.subr.bf16.mxu0 0
        %1525 = vmatpush1.bf16.msra.mxu0 0
        %1526 = vmatprep.subr.bf16.mxu0 0
        %1527 = vmatpush1.bf16.msra.mxu0 0
        %1528 = vmatprep.mubr.bf16.mxu0 0
        %1529 = vmatmul.mubr.bf16.gmra.mrb[0].mxu0 %v1434
        %v1530 = vpop.f32.mrb[0].mxu0
        %v1531 = vadd.f32 0.0, %v1530
        %v1532 = vpop.f32.mrb[0].mxu0
        %v1533 = vpop.f32.mrb[0].mxu0
        %v1534 = vadd.f32 0.0, %v1533
        %v1535 = vpop.f32.mrb[0].mxu0
        %1536 = vmatprep.mubr.bf16.mxu0 0
        %1537 = vmatmul.mubr.bf16.gmra.mrb[0].mxu0 %v1436
        %v1538 = vpop.f32.mrb[0].mxu0
        %v1539 = vadd.f32 0.0, %v1538
        %v1540 = vpop.f32.mrb[0].mxu0
        %v1541 = vpop.f32.mrb[0].mxu0
        %v1542 = vadd.f32 0.0, %v1541
        %v1543 = vpop.f32.mrb[0].mxu0
        %1544 = vmatprep.mubr.bf16.mxu0 0
        %1545 = vmatmul.mubr.bf16.gmra.mrb[0].mxu0 %v1438
        %v1546 = vpop.f32.mrb[0].mxu0
        %v1547 = vadd.f32 0.0, %v1546
        %v1548 = vpop.f32.mrb[0].mxu0
        %v1549 = vpop.f32.mrb[0].mxu0
        %v1550 = vadd.f32 0.0, %v1549
        %v1551 = vpop.f32.mrb[0].mxu0
        %1552 = vmatprep.mubr.bf16.mxu0 0
        %1553 = vmatmul.mubr.bf16.gmra.mrb[0].mxu0 %v1440
        %v1554 = vpop.f32.mrb[0].mxu0
        %v1555 = vadd.f32 0.0, %v1554
        %v1556 = vpop.f32.mrb[0].mxu0
        %v1557 = vpop.f32.mrb[0].mxu0
        %v1558 = vadd.f32 0.0, %v1557
        %v1559 = vpop.f32.mrb[0].mxu0
        %1560 = vmatprep.mubr.bf16.mxu0 0
        %1561 = vmatmul.mubr.bf16.gmra.mrb[0].mxu0 %v1442
        %v1562 = vpop.f32.mrb[0].mxu0
        %v1563 = vadd.f32 0.0, %v1562
        %v1564 = vpop.f32.mrb[0].mxu0
        %v1565 = vpop.f32.mrb[0].mxu0
        %v1566 = vadd.f32 0.0, %v1565
        %v1567 = vpop.f32.mrb[0].mxu0
        %1568 = vdwg.mxu0
        %v1569 = vld [vmem:[#allocation2] sm:$0xff]
        %v1570 = vld [vmem:[#allocation2 + $0x8] sm:$0xff]
        %v1571 = vld [vmem:[#allocation2 + $0x10] sm:$0xff]
        %v1572 = vld [vmem:[#allocation2 + $0x18] sm:$0xff]
        %v1573 = vld [vmem:[#allocation2 + $0x20] sm:$0xff]
        %v1574 = vld [vmem:[#allocation2 + $0x28] sm:$0xff]
        %v1575 = vld [vmem:[#allocation2 + $0x30] sm:$0xff]
        %v1576 = vld [vmem:[#allocation2 + $0x38] sm:$0xff]
        %v1577 = vld [vmem:[#allocation2 + $0x40] sm:$0xff]
        %v1578 = vld [vmem:[#allocation2 + $0x48] sm:$0xff]
        %v1579 = vadd.f32 %v1569, %v1531
        %v1580 = vadd.f32 %v1570, %v1534
        %v1581 = vadd.f32 %v1571, %v1539
        %v1582 = vadd.f32 %v1572, %v1542
        %v1583 = vadd.f32 %v1573, %v1547
        %v1584 = vadd.f32 %v1574, %v1550
        %v1585 = vadd.f32 %v1575, %v1555
        %v1586 = vadd.f32 %v1576, %v1558
        %v1587 = vadd.f32 %v1577, %v1563
        %v1588 = vadd.f32 %v1578, %v1566
        %1589 = vst [vmem:[#allocation2] sm:$0xff] %v1579
        %1590 = vst [vmem:[#allocation2 + $0x8] sm:$0xff] %v1580
        %1591 = vst [vmem:[#allocation2 + $0x10] sm:$0xff] %v1581
        %1592 = vst [vmem:[#allocation2 + $0x18] sm:$0xff] %v1582
        %1593 = vst [vmem:[#allocation2 + $0x20] sm:$0xff] %v1583
        %1594 = vst [vmem:[#allocation2 + $0x28] sm:$0xff] %v1584
        %1595 = vst [vmem:[#allocation2 + $0x30] sm:$0xff] %v1585
        %1596 = vst [vmem:[#allocation2 + $0x38] sm:$0xff] %v1586
        %1597 = vst [vmem:[#allocation2 + $0x40] sm:$0xff] %v1587
        %1598 = vst [vmem:[#allocation2 + $0x48] sm:$0xff] %v1588
        %v1599 = vld [vmem:[%s185 + $0x8] sm:$0xc]
        %v1600 = vld [vmem:[%s185 + $0xc] sm:$0xf]
        %v1601 = vld [vmem:[%s185 + $0x10] sm:$0xf]
        %v1602 = vld [vmem:[%s185 + $0x14] sm:$0xf]
        %v1603 = vld [vmem:[%s185 + $0x18] sm:$0xf]
        %v1604 = vld [vmem:[%s185 + $0x1c] sm:$0xf]
        %v1605 = vld [vmem:[%s185 + $0x20] sm:$0xf]
        %v1606 = vld [vmem:[%s185 + $0x24] sm:$0xf]
        %v1607 = vld [vmem:[%s185 + $0x28] sm:$0xf]
        %v1608 = vld [vmem:[%s185 + $0x2c] sm:$0xf]
        %v1609 = vld [vmem:[%s185 + $0x30] sm:$0x3]
        %s1610 = scalar_lea.vmem [#allocation6], 384
        %v1611 = vld [vmem:[%s1610] sm:$0xf]
        %v1612 = vld [vmem:[%s1610 + $0x4] sm:$0xf]
        %v1613 = vld [vmem:[%s1610 + $0x8] sm:$0xf]
        %v1614 = vld [vmem:[%s1610 + $0xc] sm:$0xf]
        %v1615 = vld [vmem:[%s1610 + $0x10] sm:$0xf]
        %v1616 = vld [vmem:[%s1610 + $0x14] sm:$0xf]
        %v1617 = vld [vmem:[%s1610 + $0x18] sm:$0xf]
        %v1618 = vld [vmem:[%s1610 + $0x1c] sm:$0xf]
        %v1619 = vld [vmem:[%s1610 + $0x20] sm:$0xf]
        %v1620 = vld [vmem:[%s1610 + $0x24] sm:$0xf]
        %v1621 = vld [vmem:[%s1610 + $0x28] sm:$0xf]
        %v1622 = vld [vmem:[%s1610 + $0x2c] sm:$0xf]
        %v1623 = vld [vmem:[%s1610 + $0x30] sm:$0xf]
        %v1624 = vld [vmem:[%s1610 + $0x34] sm:$0xf]
        %v1625 = vld [vmem:[%s1610 + $0x38] sm:$0xf]
        %v1626 = vld [vmem:[%s1610 + $0x3c] sm:$0xf]
        %v1638 = vunpack.c.l.b16 %v1599
        %v1639 = vunpack.c.l.b16 %v1600
        %v1640 = vunpack.c.l.b16 %v1601
        %v1641 = vunpack.c.l.b16 %v1602
        %v1642 = vunpack.c.l.b16 %v1603
        %v1643 = vunpack.c.l.b16 %v1604
        %v1644 = vunpack.c.l.b16 %v1605
        %v1645 = vunpack.c.l.b16 %v1606
        %v1646 = vunpack.c.l.b16 %v1607
        %v1647 = vunpack.c.l.b16 %v1608
        %v1648 = vunpack.c.l.b16 %v1609
        %v1649 = vpack.c.b16 %v1639, %v1638
        %v1650 = vpack.c.b16 %v1641, %v1640
        %v1651 = vpack.c.b16 %v1643, %v1642
        %v1652 = vpack.c.b16 %v1645, %v1644
        %v1653 = vpack.c.b16 %v1647, %v1646
        %v1654 = vpack.c.b16 %v1648, %v1648
        %v1655 = vrot.slane %v1649, 2
        %v1656 = vrot.slane %v1650, 2
        %v1657 = vsel %vm1431, %v1655, %v1656
        %v1658 = vrot.slane %v1651, 2
        %v1659 = vsel %vm1431, %v1656, %v1658
        %v1660 = vrot.slane %v1652, 2
        %v1661 = vsel %vm1431, %v1658, %v1660
        %v1662 = vrot.slane %v1653, 2
        %v1663 = vsel %vm1431, %v1660, %v1662
        %v1664 = vrot.slane %v1654, 2
        %v1665 = vsel %vm1431, %v1662, %v1664
        %v1687 = vunpack.c.l.b16 %v1611
        %v1688 = vunpack.c.l.b16 %v1612
        %v1689 = vunpack.c.l.b16 %v1613
        %v1690 = vunpack.c.l.b16 %v1614
        %v1691 = vunpack.c.l.b16 %v1615
        %v1692 = vunpack.c.l.b16 %v1616
        %v1693 = vunpack.c.l.b16 %v1617
        %v1694 = vunpack.c.l.b16 %v1618
        %v1695 = vunpack.c.l.b16 %v1619
        %v1696 = vunpack.c.l.b16 %v1620
        %v1697 = vunpack.c.l.b16 %v1621
        %v1698 = vunpack.c.l.b16 %v1622
        %v1699 = vunpack.c.l.b16 %v1623
        %v1700 = vunpack.c.l.b16 %v1624
        %v1701 = vunpack.c.l.b16 %v1625
        %v1702 = vunpack.c.l.b16 %v1626
        %v1703 = vpack.c.b16 %v1688, %v1687
        %v1704 = vpack.c.b16 %v1690, %v1689
        %v1705 = vpack.c.b16 %v1692, %v1691
        %v1706 = vpack.c.b16 %v1694, %v1693
        %v1707 = vpack.c.b16 %v1696, %v1695
        %v1708 = vpack.c.b16 %v1698, %v1697
        %v1709 = vpack.c.b16 %v1700, %v1699
        %v1710 = vpack.c.b16 %v1702, %v1701
        %1719 = vmatprep.subr.bf16.mxu0 0
        %1720 = vmatpush1.bf16.msra.mxu0 %v1703
        %1721 = vmatprep.subr.bf16.mxu0 0
        %1722 = vmatpush1.bf16.msra.mxu0 %v1704
        %1723 = vmatprep.subr.bf16.mxu0 0
        %1724 = vmatpush1.bf16.msra.mxu0 %v1705
        %1725 = vmatprep.subr.bf16.mxu0 0
        %1726 = vmatpush1.bf16.msra.mxu0 %v1706
        %1727 = vmatprep.subr.bf16.mxu0 0
        %1728 = vmatpush1.bf16.msra.mxu0 %v1707
        %1729 = vmatprep.subr.bf16.mxu0 0
        %1730 = vmatpush1.bf16.msra.mxu0 %v1708
        %1731 = vmatprep.subr.bf16.mxu0 0
        %1732 = vmatpush1.bf16.msra.mxu0 %v1709
        %1733 = vmatprep.subr.bf16.mxu0 0
        %1734 = vmatpush1.bf16.msra.mxu0 %v1710
        %1735 = vmatprep.subr.bf16.mxu0 0
        %1736 = vmatpush1.bf16.msra.mxu0 0
        %1737 = vmatprep.subr.bf16.mxu0 0
        %1738 = vmatpush1.bf16.msra.mxu0 0
        %1739 = vmatprep.subr.bf16.mxu0 0
        %1740 = vmatpush1.bf16.msra.mxu0 0
        %1741 = vmatprep.subr.bf16.mxu0 0
        %1742 = vmatpush1.bf16.msra.mxu0 0
        %1743 = vmatprep.subr.bf16.mxu0 0
        %1744 = vmatpush1.bf16.msra.mxu0 0
        %1745 = vmatprep.subr.bf16.mxu0 0
        %1746 = vmatpush1.bf16.msra.mxu0 0
        %1747 = vmatprep.subr.bf16.mxu0 0
        %1748 = vmatpush1.bf16.msra.mxu0 0
        %1749 = vmatprep.subr.bf16.mxu0 0
        %1750 = vmatpush1.bf16.msra.mxu0 0
        %1751 = vmatprep.mubr.bf16.mxu0 0
        %1752 = vmatmul.mubr.bf16.gmra.mrb[0].mxu0 %v1657
        %v1753 = vpop.f32.mrb[0].mxu0
        %v1754 = vadd.f32 0.0, %v1753
        %v1755 = vpop.f32.mrb[0].mxu0
        %v1756 = vpop.f32.mrb[0].mxu0
        %v1757 = vadd.f32 0.0, %v1756
        %v1758 = vpop.f32.mrb[0].mxu0
        %1759 = vmatprep.mubr.bf16.mxu0 0
        %1760 = vmatmul.mubr.bf16.gmra.mrb[0].mxu0 %v1659
        %v1761 = vpop.f32.mrb[0].mxu0
        %v1762 = vadd.f32 0.0, %v1761
        %v1763 = vpop.f32.mrb[0].mxu0
        %v1764 = vpop.f32.mrb[0].mxu0
        %v1765 = vadd.f32 0.0, %v1764
        %v1766 = vpop.f32.mrb[0].mxu0
        %1767 = vmatprep.mubr.bf16.mxu0 0
        %1768 = vmatmul.mubr.bf16.gmra.mrb[0].mxu0 %v1661
        %v1769 = vpop.f32.mrb[0].mxu0
        %v1770 = vadd.f32 0.0, %v1769
        %v1771 = vpop.f32.mrb[0].mxu0
        %v1772 = vpop.f32.mrb[0].mxu0
        %v1773 = vadd.f32 0.0, %v1772
        %v1774 = vpop.f32.mrb[0].mxu0
        %1775 = vmatprep.mubr.bf16.mxu0 0
        %1776 = vmatmul.mubr.bf16.gmra.mrb[0].mxu0 %v1663
        %v1777 = vpop.f32.mrb[0].mxu0
        %v1778 = vadd.f32 0.0, %v1777
        %v1779 = vpop.f32.mrb[0].mxu0
        %v1780 = vpop.f32.mrb[0].mxu0
        %v1781 = vadd.f32 0.0, %v1780
        %v1782 = vpop.f32.mrb[0].mxu0
        %1783 = vmatprep.mubr.bf16.mxu0 0
        %1784 = vmatmul.mubr.bf16.gmra.mrb[0].mxu0 %v1665
        %v1785 = vpop.f32.mrb[0].mxu0
        %v1786 = vadd.f32 0.0, %v1785
        %v1787 = vpop.f32.mrb[0].mxu0
        %v1788 = vpop.f32.mrb[0].mxu0
        %v1789 = vadd.f32 0.0, %v1788
        %v1790 = vpop.f32.mrb[0].mxu0
        %1791 = vdwg.mxu0
        %v1792 = vld [vmem:[#allocation2] sm:$0xff]
        %v1793 = vld [vmem:[#allocation2 + $0x8] sm:$0xff]
        %v1794 = vld [vmem:[#allocation2 + $0x10] sm:$0xff]
        %v1795 = vld [vmem:[#allocation2 + $0x18] sm:$0xff]
        %v1796 = vld [vmem:[#allocation2 + $0x20] sm:$0xff]
        %v1797 = vld [vmem:[#allocation2 + $0x28] sm:$0xff]
        %v1798 = vld [vmem:[#allocation2 + $0x30] sm:$0xff]
        %v1799 = vld [vmem:[#allocation2 + $0x38] sm:$0xff]
        %v1800 = vld [vmem:[#allocation2 + $0x40] sm:$0xff]
        %v1801 = vld [vmem:[#allocation2 + $0x48] sm:$0xff]
        %v1802 = vadd.f32 %v1792, %v1754
        %v1803 = vadd.f32 %v1793, %v1757
        %v1804 = vadd.f32 %v1794, %v1762
        %v1805 = vadd.f32 %v1795, %v1765
        %v1806 = vadd.f32 %v1796, %v1770
        %v1807 = vadd.f32 %v1797, %v1773
        %v1808 = vadd.f32 %v1798, %v1778
        %v1809 = vadd.f32 %v1799, %v1781
        %v1810 = vadd.f32 %v1800, %v1786
        %v1811 = vadd.f32 %v1801, %v1789
        %1812 = vst [vmem:[#allocation2] sm:$0xff] %v1802
        %1813 = vst [vmem:[#allocation2 + $0x8] sm:$0xff] %v1803
        %1814 = vst [vmem:[#allocation2 + $0x10] sm:$0xff] %v1804
        %1815 = vst [vmem:[#allocation2 + $0x18] sm:$0xff] %v1805
        %1816 = vst [vmem:[#allocation2 + $0x20] sm:$0xff] %v1806
        %1817 = vst [vmem:[#allocation2 + $0x28] sm:$0xff] %v1807
        %1818 = vst [vmem:[#allocation2 + $0x30] sm:$0xff] %v1808
        %1819 = vst [vmem:[#allocation2 + $0x38] sm:$0xff] %v1809
        %1820 = vst [vmem:[#allocation2 + $0x40] sm:$0xff] %v1810
        %1821 = vst [vmem:[#allocation2 + $0x48] sm:$0xff] %v1811
        %v1822 = vld [vmem:[%s185 + $0x8] sm:$0xc]
        %v1823 = vld [vmem:[%s185 + $0xc] sm:$0xf]
        %v1824 = vld [vmem:[%s185 + $0x10] sm:$0xf]
        %v1825 = vld [vmem:[%s185 + $0x14] sm:$0xf]
        %v1826 = vld [vmem:[%s185 + $0x18] sm:$0xf]
        %v1827 = vld [vmem:[%s185 + $0x1c] sm:$0xf]
        %v1828 = vld [vmem:[%s185 + $0x20] sm:$0xf]
        %v1829 = vld [vmem:[%s185 + $0x24] sm:$0xf]
        %v1830 = vld [vmem:[%s185 + $0x28] sm:$0xf]
        %v1831 = vld [vmem:[%s185 + $0x2c] sm:$0xf]
        %v1832 = vld [vmem:[%s185 + $0x30] sm:$0x7]
        %s1833 = scalar_lea.vmem [#allocation6], 448
        %v1834 = vld [vmem:[%s1833] sm:$0xf]
        %v1835 = vld [vmem:[%s1833 + $0x4] sm:$0xf]
        %v1836 = vld [vmem:[%s1833 + $0x8] sm:$0xf]
        %v1837 = vld [vmem:[%s1833 + $0xc] sm:$0xf]
        %v1838 = vld [vmem:[%s1833 + $0x10] sm:$0xf]
        %v1839 = vld [vmem:[%s1833 + $0x14] sm:$0xf]
        %v1840 = vld [vmem:[%s1833 + $0x18] sm:$0xf]
        %v1841 = vld [vmem:[%s1833 + $0x1c] sm:$0xf]
        %v1842 = vld [vmem:[%s1833 + $0x20] sm:$0xf]
        %v1843 = vld [vmem:[%s1833 + $0x24] sm:$0xf]
        %v1844 = vld [vmem:[%s1833 + $0x28] sm:$0xf]
        %v1845 = vld [vmem:[%s1833 + $0x2c] sm:$0xf]
        %v1846 = vld [vmem:[%s1833 + $0x30] sm:$0xf]
        %v1847 = vld [vmem:[%s1833 + $0x34] sm:$0xf]
        %v1848 = vld [vmem:[%s1833 + $0x38] sm:$0xf]
        %v1849 = vld [vmem:[%s1833 + $0x3c] sm:$0xf]
        %v1861 = vunpack.c.l.b16 %v1822
        %v1862 = vunpack.c.l.b16 %v1823
        %v1863 = vunpack.c.l.b16 %v1824
        %v1864 = vunpack.c.l.b16 %v1825
        %v1865 = vunpack.c.l.b16 %v1826
        %v1866 = vunpack.c.l.b16 %v1827
        %v1867 = vunpack.c.l.b16 %v1828
        %v1868 = vunpack.c.l.b16 %v1829
        %v1869 = vunpack.c.l.b16 %v1830
        %v1870 = vunpack.c.l.b16 %v1831
        %v1871 = vunpack.c.l.b16 %v1832
        %v1872 = vpack.c.b16 %v1862, %v1861
        %v1873 = vpack.c.b16 %v1864, %v1863
        %v1874 = vpack.c.b16 %v1866, %v1865
        %v1875 = vpack.c.b16 %v1868, %v1867
        %v1876 = vpack.c.b16 %v1870, %v1869
        %v1877 = vpack.c.b16 %v1871, %v1871
        %vm1878 = vsmask.f32 5376
        %v1880 = vshrl.u32 %v1872, 16
        %v1882 = vrot.slane %v1880, 2
        %v1883 = vshll.u32 %v1872, 16
        %v1885 = vrot.slane %v1883, 3
        %v1886 = vor.u32 %v1882, %v1885
        %v1888 = vshrl.u32 %v1873, 16
        %v1890 = vrot.slane %v1888, 2
        %v1891 = vshll.u32 %v1873, 16
        %v1893 = vrot.slane %v1891, 3
        %v1894 = vor.u32 %v1890, %v1893
        %v1895 = vsel %vm1878, %v1886, %v1894
        %v1897 = vshrl.u32 %v1874, 16
        %v1899 = vrot.slane %v1897, 2
        %v1900 = vshll.u32 %v1874, 16
        %v1902 = vrot.slane %v1900, 3
        %v1903 = vor.u32 %v1899, %v1902
        %v1904 = vsel %vm1878, %v1894, %v1903
        %v1906 = vshrl.u32 %v1875, 16
        %v1908 = vrot.slane %v1906, 2
        %v1909 = vshll.u32 %v1875, 16
        %v1911 = vrot.slane %v1909, 3
        %v1912 = vor.u32 %v1908, %v1911
        %v1913 = vsel %vm1878, %v1903, %v1912
        %v1915 = vshrl.u32 %v1876, 16
        %v1917 = vrot.slane %v1915, 2
        %v1918 = vshll.u32 %v1876, 16
        %v1920 = vrot.slane %v1918, 3
        %v1921 = vor.u32 %v1917, %v1920
        %v1922 = vsel %vm1878, %v1912, %v1921
        %v1924 = vshrl.u32 %v1877, 16
        %v1926 = vrot.slane %v1924, 2
        %v1927 = vshll.u32 %v1877, 16
        %v1929 = vrot.slane %v1927, 3
        %v1930 = vor.u32 %v1926, %v1929
        %v1931 = vsel %vm1878, %v1921, %v1930
        %v1953 = vunpack.c.l.b16 %v1834
        %v1954 = vunpack.c.l.b16 %v1835
        %v1955 = vunpack.c.l.b16 %v1836
        %v1956 = vunpack.c.l.b16 %v1837
        %v1957 = vunpack.c.l.b16 %v1838
        %v1958 = vunpack.c.l.b16 %v1839
        %v1959 = vunpack.c.l.b16 %v1840
        %v1960 = vunpack.c.l.b16 %v1841
        %v1961 = vunpack.c.l.b16 %v1842
        %v1962 = vunpack.c.l.b16 %v1843
        %v1963 = vunpack.c.l.b16 %v1844
        %v1964 = vunpack.c.l.b16 %v1845
        %v1965 = vunpack.c.l.b16 %v1846
        %v1966 = vunpack.c.l.b16 %v1847
        %v1967 = vunpack.c.l.b16 %v1848
        %v1968 = vunpack.c.l.b16 %v1849
        %v1969 = vpack.c.b16 %v1954, %v1953
        %v1970 = vpack.c.b16 %v1956, %v1955
        %v1971 = vpack.c.b16 %v1958, %v1957
        %v1972 = vpack.c.b16 %v1960, %v1959
        %v1973 = vpack.c.b16 %v1962, %v1961
        %v1974 = vpack.c.b16 %v1964, %v1963
        %v1975 = vpack.c.b16 %v1966, %v1965
        %v1976 = vpack.c.b16 %v1968, %v1967
        %1985 = vmatprep.subr.bf16.mxu0 0
        %1986 = vmatpush1.bf16.msra.mxu0 %v1969
        %1987 = vmatprep.subr.bf16.mxu0 0
        %1988 = vmatpush1.bf16.msra.mxu0 %v1970
        %1989 = vmatprep.subr.bf16.mxu0 0
        %1990 = vmatpush1.bf16.msra.mxu0 %v1971
        %1991 = vmatprep.subr.bf16.mxu0 0
        %1992 = vmatpush1.bf16.msra.mxu0 %v1972
        %1993 = vmatprep.subr.bf16.mxu0 0
        %1994 = vmatpush1.bf16.msra.mxu0 %v1973
        %1995 = vmatprep.subr.bf16.mxu0 0
        %1996 = vmatpush1.bf16.msra.mxu0 %v1974
        %1997 = vmatprep.subr.bf16.mxu0 0
        %1998 = vmatpush1.bf16.msra.mxu0 %v1975
        %1999 = vmatprep.subr.bf16.mxu0 0
        %2000 = vmatpush1.bf16.msra.mxu0 %v1976
        %2001 = vmatprep.subr.bf16.mxu0 0
        %2002 = vmatpush1.bf16.msra.mxu0 0
        %2003 = vmatprep.subr.bf16.mxu0 0
        %2004 = vmatpush1.bf16.msra.mxu0 0
        %2005 = vmatprep.subr.bf16.mxu0 0
        %2006 = vmatpush1.bf16.msra.mxu0 0
        %2007 = vmatprep.subr.bf16.mxu0 0
        %2008 = vmatpush1.bf16.msra.mxu0 0
        %2009 = vmatprep.subr.bf16.mxu0 0
        %2010 = vmatpush1.bf16.msra.mxu0 0
        %2011 = vmatprep.subr.bf16.mxu0 0
        %2012 = vmatpush1.bf16.msra.mxu0 0
        %2013 = vmatprep.subr.bf16.mxu0 0
        %2014 = vmatpush1.bf16.msra.mxu0 0
        %2015 = vmatprep.subr.bf16.mxu0 0
        %2016 = vmatpush1.bf16.msra.mxu0 0
        %2017 = vmatprep.mubr.bf16.mxu0 0
        %2018 = vmatmul.mubr.bf16.gmra.mrb[0].mxu0 %v1895
        %v2019 = vpop.f32.mrb[0].mxu0
        %v2020 = vadd.f32 0.0, %v2019
        %v2021 = vpop.f32.mrb[0].mxu0
        %v2022 = vpop.f32.mrb[0].mxu0
        %v2023 = vadd.f32 0.0, %v2022
        %v2024 = vpop.f32.mrb[0].mxu0
        %2025 = vmatprep.mubr.bf16.mxu0 0
        %2026 = vmatmul.mubr.bf16.gmra.mrb[0].mxu0 %v1904
        %v2027 = vpop.f32.mrb[0].mxu0
        %v2028 = vadd.f32 0.0, %v2027
        %v2029 = vpop.f32.mrb[0].mxu0
        %v2030 = vpop.f32.mrb[0].mxu0
        %v2031 = vadd.f32 0.0, %v2030
        %v2032 = vpop.f32.mrb[0].mxu0
        %2033 = vmatprep.mubr.bf16.mxu0 0
        %2034 = vmatmul.mubr.bf16.gmra.mrb[0].mxu0 %v1913
        %v2035 = vpop.f32.mrb[0].mxu0
        %v2036 = vadd.f32 0.0, %v2035
        %v2037 = vpop.f32.mrb[0].mxu0
        %v2038 = vpop.f32.mrb[0].mxu0
        %v2039 = vadd.f32 0.0, %v2038
        %v2040 = vpop.f32.mrb[0].mxu0
        %2041 = vmatprep.mubr.bf16.mxu0 0
        %2042 = vmatmul.mubr.bf16.gmra.mrb[0].mxu0 %v1922
        %v2043 = vpop.f32.mrb[0].mxu0
        %v2044 = vadd.f32 0.0, %v2043
        %v2045 = vpop.f32.mrb[0].mxu0
        %v2046 = vpop.f32.mrb[0].mxu0
        %v2047 = vadd.f32 0.0, %v2046
        %v2048 = vpop.f32.mrb[0].mxu0
        %2049 = vmatprep.mubr.bf16.mxu0 0
        %2050 = vmatmul.mubr.bf16.gmra.mrb[0].mxu0 %v1931
        %v2051 = vpop.f32.mrb[0].mxu0
        %v2052 = vadd.f32 0.0, %v2051
        %v2053 = vpop.f32.mrb[0].mxu0
        %v2054 = vpop.f32.mrb[0].mxu0
        %v2055 = vadd.f32 0.0, %v2054
        %v2056 = vpop.f32.mrb[0].mxu0
        %2057 = vdwg.mxu0
        %v2058 = vld [vmem:[#allocation2] sm:$0xff]
        %v2059 = vld [vmem:[#allocation2 + $0x8] sm:$0xff]
        %v2060 = vld [vmem:[#allocation2 + $0x10] sm:$0xff]
        %v2061 = vld [vmem:[#allocation2 + $0x18] sm:$0xff]
        %v2062 = vld [vmem:[#allocation2 + $0x20] sm:$0xff]
        %v2063 = vld [vmem:[#allocation2 + $0x28] sm:$0xff]
        %v2064 = vld [vmem:[#allocation2 + $0x30] sm:$0xff]
        %v2065 = vld [vmem:[#allocation2 + $0x38] sm:$0xff]
        %v2066 = vld [vmem:[#allocation2 + $0x40] sm:$0xff]
        %v2067 = vld [vmem:[#allocation2 + $0x48] sm:$0xff]
        %v2068 = vadd.f32 %v2058, %v2020
        %v2069 = vadd.f32 %v2059, %v2023
        %v2070 = vadd.f32 %v2060, %v2028
        %v2071 = vadd.f32 %v2061, %v2031
        %v2072 = vadd.f32 %v2062, %v2036
        %v2073 = vadd.f32 %v2063, %v2039
        %v2074 = vadd.f32 %v2064, %v2044
        %v2075 = vadd.f32 %v2065, %v2047
        %v2076 = vadd.f32 %v2066, %v2052
        %v2077 = vadd.f32 %v2067, %v2055
        %2078 = vst [vmem:[#allocation2] sm:$0xff] %v2068
        %2079 = vst [vmem:[#allocation2 + $0x8] sm:$0xff] %v2069
        %2080 = vst [vmem:[#allocation2 + $0x10] sm:$0xff] %v2070
        %2081 = vst [vmem:[#allocation2 + $0x18] sm:$0xff] %v2071
        %2082 = vst [vmem:[#allocation2 + $0x20] sm:$0xff] %v2072
        %2083 = vst [vmem:[#allocation2 + $0x28] sm:$0xff] %v2073
        %2084 = vst [vmem:[#allocation2 + $0x30] sm:$0xff] %v2074
        %2085 = vst [vmem:[#allocation2 + $0x38] sm:$0xff] %v2075
        %2086 = vst [vmem:[#allocation2 + $0x40] sm:$0xff] %v2076
        %2087 = vst [vmem:[#allocation2 + $0x48] sm:$0xff] %v2077
        %v2088 = vld [vmem:[%s185 + $0x8] sm:$0x8]
        %v2089 = vld [vmem:[%s185 + $0xc] sm:$0xf]
        %v2090 = vld [vmem:[%s185 + $0x10] sm:$0xf]
        %v2091 = vld [vmem:[%s185 + $0x14] sm:$0xf]
        %v2092 = vld [vmem:[%s185 + $0x18] sm:$0xf]
        %v2093 = vld [vmem:[%s185 + $0x1c] sm:$0xf]
        %v2094 = vld [vmem:[%s185 + $0x20] sm:$0xf]
        %v2095 = vld [vmem:[%s185 + $0x24] sm:$0xf]
        %v2096 = vld [vmem:[%s185 + $0x28] sm:$0xf]
        %v2097 = vld [vmem:[%s185 + $0x2c] sm:$0xf]
        %v2098 = vld [vmem:[%s185 + $0x30] sm:$0x7]
        %s2099 = scalar_lea.vmem [#allocation6], 512
        %v2100 = vld [vmem:[%s2099] sm:$0xf]
        %v2101 = vld [vmem:[%s2099 + $0x4] sm:$0xf]
        %v2102 = vld [vmem:[%s2099 + $0x8] sm:$0xf]
        %v2103 = vld [vmem:[%s2099 + $0xc] sm:$0xf]
        %v2104 = vld [vmem:[%s2099 + $0x10] sm:$0xf]
        %v2105 = vld [vmem:[%s2099 + $0x14] sm:$0xf]
        %v2106 = vld [vmem:[%s2099 + $0x18] sm:$0xf]
        %v2107 = vld [vmem:[%s2099 + $0x1c] sm:$0xf]
        %v2108 = vld [vmem:[%s2099 + $0x20] sm:$0xf]
        %v2109 = vld [vmem:[%s2099 + $0x24] sm:$0xf]
        %v2110 = vld [vmem:[%s2099 + $0x28] sm:$0xf]
        %v2111 = vld [vmem:[%s2099 + $0x2c] sm:$0xf]
        %v2112 = vld [vmem:[%s2099 + $0x30] sm:$0xf]
        %v2113 = vld [vmem:[%s2099 + $0x34] sm:$0xf]
        %v2114 = vld [vmem:[%s2099 + $0x38] sm:$0xf]
        %v2115 = vld [vmem:[%s2099 + $0x3c] sm:$0xf]
        %v2127 = vunpack.c.l.b16 %v2088
        %v2128 = vunpack.c.l.b16 %v2089
        %v2129 = vunpack.c.l.b16 %v2090
        %v2130 = vunpack.c.l.b16 %v2091
        %v2131 = vunpack.c.l.b16 %v2092
        %v2132 = vunpack.c.l.b16 %v2093
        %v2133 = vunpack.c.l.b16 %v2094
        %v2134 = vunpack.c.l.b16 %v2095
        %v2135 = vunpack.c.l.b16 %v2096
        %v2136 = vunpack.c.l.b16 %v2097
        %v2137 = vunpack.c.l.b16 %v2098
        %v2138 = vpack.c.b16 %v2128, %v2127
        %v2139 = vpack.c.b16 %v2130, %v2129
        %v2140 = vpack.c.b16 %v2132, %v2131
        %v2141 = vpack.c.b16 %v2134, %v2133
        %v2142 = vpack.c.b16 %v2136, %v2135
        %v2143 = vpack.c.b16 %v2137, %v2137
        %vm2144 = vcmask 1044480
        %v2145 = vrot.slane %v2138, 3
        %v2146 = vrot.slane %v2139, 3
        %v2147 = vsel %vm2144, %v2145, %v2146
        %v2148 = vrot.slane %v2140, 3
        %v2149 = vsel %vm2144, %v2146, %v2148
        %v2150 = vrot.slane %v2141, 3
        %v2151 = vsel %vm2144, %v2148, %v2150
        %v2152 = vrot.slane %v2142, 3
        %v2153 = vsel %vm2144, %v2150, %v2152
        %v2154 = vrot.slane %v2143, 3
        %v2155 = vsel %vm2144, %v2152, %v2154
        %v2177 = vunpack.c.l.b16 %v2100
        %v2178 = vunpack.c.l.b16 %v2101
        %v2179 = vunpack.c.l.b16 %v2102
        %v2180 = vunpack.c.l.b16 %v2103
        %v2181 = vunpack.c.l.b16 %v2104
        %v2182 = vunpack.c.l.b16 %v2105
        %v2183 = vunpack.c.l.b16 %v2106
        %v2184 = vunpack.c.l.b16 %v2107
        %v2185 = vunpack.c.l.b16 %v2108
        %v2186 = vunpack.c.l.b16 %v2109
        %v2187 = vunpack.c.l.b16 %v2110
        %v2188 = vunpack.c.l.b16 %v2111
        %v2189 = vunpack.c.l.b16 %v2112
        %v2190 = vunpack.c.l.b16 %v2113
        %v2191 = vunpack.c.l.b16 %v2114
        %v2192 = vunpack.c.l.b16 %v2115
        %v2193 = vpack.c.b16 %v2178, %v2177
        %v2194 = vpack.c.b16 %v2180, %v2179
        %v2195 = vpack.c.b16 %v2182, %v2181
        %v2196 = vpack.c.b16 %v2184, %v2183
        %v2197 = vpack.c.b16 %v2186, %v2185
        %v2198 = vpack.c.b16 %v2188, %v2187
        %v2199 = vpack.c.b16 %v2190, %v2189
        %v2200 = vpack.c.b16 %v2192, %v2191
        %2209 = vmatprep.subr.bf16.mxu0 0
        %2210 = vmatpush1.bf16.msra.mxu0 %v2193
        %2211 = vmatprep.subr.bf16.mxu0 0
        %2212 = vmatpush1.bf16.msra.mxu0 %v2194
        %2213 = vmatprep.subr.bf16.mxu0 0
        %2214 = vmatpush1.bf16.msra.mxu0 %v2195
        %2215 = vmatprep.subr.bf16.mxu0 0
        %2216 = vmatpush1.bf16.msra.mxu0 %v2196
        %2217 = vmatprep.subr.bf16.mxu0 0
        %2218 = vmatpush1.bf16.msra.mxu0 %v2197
        %2219 = vmatprep.subr.bf16.mxu0 0
        %2220 = vmatpush1.bf16.msra.mxu0 %v2198
        %2221 = vmatprep.subr.bf16.mxu0 0
        %2222 = vmatpush1.bf16.msra.mxu0 %v2199
        %2223 = vmatprep.subr.bf16.mxu0 0
        %2224 = vmatpush1.bf16.msra.mxu0 %v2200
        %2225 = vmatprep.subr.bf16.mxu0 0
        %2226 = vmatpush1.bf16.msra.mxu0 0
        %2227 = vmatprep.subr.bf16.mxu0 0
        %2228 = vmatpush1.bf16.msra.mxu0 0
        %2229 = vmatprep.subr.bf16.mxu0 0
        %2230 = vmatpush1.bf16.msra.mxu0 0
        %2231 = vmatprep.subr.bf16.mxu0 0
        %2232 = vmatpush1.bf16.msra.mxu0 0
        %2233 = vmatprep.subr.bf16.mxu0 0
        %2234 = vmatpush1.bf16.msra.mxu0 0
        %2235 = vmatprep.subr.bf16.mxu0 0
        %2236 = vmatpush1.bf16.msra.mxu0 0
        %2237 = vmatprep.subr.bf16.mxu0 0
        %2238 = vmatpush1.bf16.msra.mxu0 0
        %2239 = vmatprep.subr.bf16.mxu0 0
        %2240 = vmatpush1.bf16.msra.mxu0 0
        %2241 = vmatprep.mubr.bf16.mxu0 0
        %2242 = vmatmul.mubr.bf16.gmra.mrb[0].mxu0 %v2147
        %v2243 = vpop.f32.mrb[0].mxu0
        %v2244 = vadd.f32 0.0, %v2243
        %v2245 = vpop.f32.mrb[0].mxu0
        %v2246 = vpop.f32.mrb[0].mxu0
        %v2247 = vadd.f32 0.0, %v2246
        %v2248 = vpop.f32.mrb[0].mxu0
        %2249 = vmatprep.mubr.bf16.mxu0 0
        %2250 = vmatmul.mubr.bf16.gmra.mrb[0].mxu0 %v2149
        %v2251 = vpop.f32.mrb[0].mxu0
        %v2252 = vadd.f32 0.0, %v2251
        %v2253 = vpop.f32.mrb[0].mxu0
        %v2254 = vpop.f32.mrb[0].mxu0
        %v2255 = vadd.f32 0.0, %v2254
        %v2256 = vpop.f32.mrb[0].mxu0
        %2257 = vmatprep.mubr.bf16.mxu0 0
        %2258 = vmatmul.mubr.bf16.gmra.mrb[0].mxu0 %v2151
        %v2259 = vpop.f32.mrb[0].mxu0
        %v2260 = vadd.f32 0.0, %v2259
        %v2261 = vpop.f32.mrb[0].mxu0
        %v2262 = vpop.f32.mrb[0].mxu0
        %v2263 = vadd.f32 0.0, %v2262
        %v2264 = vpop.f32.mrb[0].mxu0
        %2265 = vmatprep.mubr.bf16.mxu0 0
        %2266 = vmatmul.mubr.bf16.gmra.mrb[0].mxu0 %v2153
        %v2267 = vpop.f32.mrb[0].mxu0
        %v2268 = vadd.f32 0.0, %v2267
        %v2269 = vpop.f32.mrb[0].mxu0
        %v2270 = vpop.f32.mrb[0].mxu0
        %v2271 = vadd.f32 0.0, %v2270
        %v2272 = vpop.f32.mrb[0].mxu0
        %2273 = vmatprep.mubr.bf16.mxu0 0
        %2274 = vmatmul.mubr.bf16.gmra.mrb[0].mxu0 %v2155
        %v2275 = vpop.f32.mrb[0].mxu0
        %v2276 = vadd.f32 0.0, %v2275
        %v2277 = vpop.f32.mrb[0].mxu0
        %v2278 = vpop.f32.mrb[0].mxu0
        %v2279 = vadd.f32 0.0, %v2278
        %v2280 = vpop.f32.mrb[0].mxu0
        %2281 = vdwg.mxu0
        %v2282 = vld [vmem:[#allocation2] sm:$0xff]
        %v2283 = vld [vmem:[#allocation2 + $0x8] sm:$0xff]
        %v2284 = vld [vmem:[#allocation2 + $0x10] sm:$0xff]
        %v2285 = vld [vmem:[#allocation2 + $0x18] sm:$0xff]
        %v2286 = vld [vmem:[#allocation2 + $0x20] sm:$0xff]
        %v2287 = vld [vmem:[#allocation2 + $0x28] sm:$0xff]
        %v2288 = vld [vmem:[#allocation2 + $0x30] sm:$0xff]
        %v2289 = vld [vmem:[#allocation2 + $0x38] sm:$0xff]
        %v2290 = vld [vmem:[#allocation2 + $0x40] sm:$0xff]
        %v2291 = vld [vmem:[#allocation2 + $0x48] sm:$0xff]
        %v2292 = vadd.f32 %v2282, %v2244
        %v2293 = vadd.f32 %v2283, %v2247
        %v2294 = vadd.f32 %v2284, %v2252
        %v2295 = vadd.f32 %v2285, %v2255
        %v2296 = vadd.f32 %v2286, %v2260
        %v2297 = vadd.f32 %v2287, %v2263
        %v2298 = vadd.f32 %v2288, %v2268
        %v2299 = vadd.f32 %v2289, %v2271
        %v2300 = vadd.f32 %v2290, %v2276
        %v2301 = vadd.f32 %v2291, %v2279
        %2302 = vst [vmem:[#allocation2] sm:$0xff] %v2292
        %2303 = vst [vmem:[#allocation2 + $0x8] sm:$0xff] %v2293
        %2304 = vst [vmem:[#allocation2 + $0x10] sm:$0xff] %v2294
        %2305 = vst [vmem:[#allocation2 + $0x18] sm:$0xff] %v2295
        %2306 = vst [vmem:[#allocation2 + $0x20] sm:$0xff] %v2296
        %2307 = vst [vmem:[#allocation2 + $0x28] sm:$0xff] %v2297
        %2308 = vst [vmem:[#allocation2 + $0x30] sm:$0xff] %v2298
        %2309 = vst [vmem:[#allocation2 + $0x38] sm:$0xff] %v2299
        %2310 = vst [vmem:[#allocation2 + $0x40] sm:$0xff] %v2300
        %2311 = vst [vmem:[#allocation2 + $0x48] sm:$0xff] %v2301
        %v2312 = vld [vmem:[#allocation2] sm:$0xff]
        %v2313 = vld [vmem:[#allocation2 + $0x8] sm:$0xff]
        %v2314 = vld [vmem:[#allocation2 + $0x10] sm:$0xff]
        %v2315 = vld [vmem:[#allocation2 + $0x18] sm:$0xff]
        %v2316 = vld [vmem:[#allocation2 + $0x20] sm:$0xff]
        %v2317 = vld [vmem:[#allocation2 + $0x28] sm:$0xff]
        %v2318 = vld [vmem:[#allocation2 + $0x30] sm:$0xff]
        %v2319 = vld [vmem:[#allocation2 + $0x38] sm:$0xff]
        %v2320 = vld [vmem:[#allocation2 + $0x40] sm:$0xff]
        %v2321 = vld [vmem:[#allocation2 + $0x48] sm:$0xff]
        %v2323 = vlaneseq
        %v2324 = vshrl.u32 %v2323, 7
        %v2325 = vsub.s32 0, %v2324
        %v2326 = vrot.slane %v217, %v2325
        %v2328 = vadd.f32 %v2312, %v2326
        %v2329 = vadd.f32 %v2313, %v2326
        %v2330 = vadd.f32 %v2314, %v2326
        %v2331 = vadd.f32 %v2315, %v2326
        %v2332 = vadd.f32 %v2316, %v2326
        %v2333 = vadd.f32 %v2317, %v2326
        %v2334 = vadd.f32 %v2318, %v2326
        %v2335 = vadd.f32 %v2319, %v2326
        %v2336 = vadd.f32 %v2320, %v2326
        %v2337 = vadd.f32 %v2321, %v2326
        %v2338 = vmax.f32 %v2328, 0.0
        %v2339 = vmax.f32 %v2329, 0.0
        %v2340 = vmax.f32 %v2330, 0.0
        %v2341 = vmax.f32 %v2331, 0.0
        %v2342 = vmax.f32 %v2332, 0.0
        %v2343 = vmax.f32 %v2333, 0.0
        %v2344 = vmax.f32 %v2334, 0.0
        %v2345 = vmax.f32 %v2335, 0.0
        %v2346 = vmax.f32 %v2336, 0.0
        %v2347 = vmax.f32 %v2337, 0.0
        %v2348 = vpack.c.bf16 %v2339, %v2338
        %v2349 = vpack.c.bf16 %v2341, %v2340
        %v2350 = vpack.c.bf16 %v2343, %v2342
        %v2351 = vpack.c.bf16 %v2345, %v2344
        %v2352 = vpack.c.bf16 %v2347, %v2346
        %v2358 = vunpack.c.l.b16 %v2348
        %v2359 = vunpack.c.h.b16 %v2348
        %v2360 = vunpack.c.l.b16 %v2349
        %v2361 = vunpack.c.h.b16 %v2349
        %v2362 = vunpack.c.l.b16 %v2350
        %v2363 = vunpack.c.h.b16 %v2350
        %v2364 = vunpack.c.l.b16 %v2351
        %v2365 = vunpack.c.h.b16 %v2351
        %v2366 = vunpack.c.l.b16 %v2352
        %v2367 = vunpack.c.h.b16 %v2352
        %v2368 = vpack.c.b16 %v2358, %v2358
        %v2369 = vpack.c.b16 %v2359, %v2359
        %v2370 = vpack.c.b16 %v2360, %v2360
        %v2371 = vpack.c.b16 %v2361, %v2361
        %v2372 = vpack.c.b16 %v2362, %v2362
        %v2373 = vpack.c.b16 %v2363, %v2363
        %v2374 = vpack.c.b16 %v2364, %v2364
        %v2375 = vpack.c.b16 %v2365, %v2365
        %v2376 = vpack.c.b16 %v2366, %v2366
        %v2377 = vpack.c.b16 %v2367, %v2367
        %2388 = vst [vmem:[%s215] sm:$0xf] %v2368
        %2389 = vst [vmem:[%s215 + $0x4] sm:$0xf] %v2369
        %2390 = vst [vmem:[%s215 + $0x8] sm:$0xf] %v2370
        %2391 = vst [vmem:[%s215 + $0xc] sm:$0xf] %v2371
        %2392 = vst [vmem:[%s215 + $0x10] sm:$0xf] %v2372
        %2393 = vst [vmem:[%s215 + $0x14] sm:$0xf] %v2373
        %2394 = vst [vmem:[%s215 + $0x18] sm:$0xf] %v2374
        %2395 = vst [vmem:[%s215 + $0x1c] sm:$0xf] %v2375
        %2396 = vst [vmem:[%s215 + $0x20] sm:$0xf] %v2376
        %2397 = vst [vmem:[%s215 + $0x24] sm:$0xf] %v2377
        %s2398 = sand.u32 %s97, 1
        %s2399 = scalar_lea.sflag [#allocation5], %s2398
        %s2400 = sand.u32 %s97, 1
        %s2401 = smul.addr %s2400, 40
        %s2402 = scalar_lea.vmem [#allocation9], %s2401
        // Predicated region
        $region45: #{ctpn_forward.4} parent=31 // pred_check
          %p2403 = pneg %p107
        $region46: #{ctpn_forward.4} parent=31 // pred_check_branch
          %2405 = sbr.rel (%p2403) target = $region48
        $region47: #{ctpn_forward.4} parent=31 // pred_region
          %s2407 = ssub.s32 640, 640
          %2408 = vsyncadd %s2399, %s2407
          %s2409 = smul.addr %s21, 10
          %s2410 = smul.addr %s2409, 64
          %s2411 = scalar_lea.hbm %s3, %s2410
          %s2412 = sshll.u32 %s2402, 4
          %s2413 = int_to_ptr.vmem [resolvable:$true] %s2412
          %2418 = dma.vmem_to_hbm [thread:$0]  %s2413, 640, %s2411, %s2399, 64, 64, 4
        $region48: #{ctpn_forward.4} parent=31 // pred_fallthru
          _
      $region32: #{ctpn_forward.4} parent=5 // pred_fallthru
        _
      %p2419 = scmp.le.s32.totalorder 2, %s16
      // Predicated region
      $region49: #{ctpn_forward.4} parent=5 // pred_check
        %p2420 = pneg %p2419
      $region50: #{ctpn_forward.4} parent=5 // pred_check_branch
        %2422 = sbr.rel (%p2420) target = $region52
      $region51: #{ctpn_forward.4} parent=5 // pred_region
        %s2423 = ssub.s32 %s16, 2
        // Predicated region
        $region53: #{ctpn_forward.4} parent=51 // pred_check
          %p2424 = pneg %p113
        $region54: #{ctpn_forward.4} parent=51 // pred_check_branch
          %2426 = sbr.rel (%p2424) target = $region56
        $region55: #{ctpn_forward.4} parent=51 // pred_region
          %s2427 = sand.u32 %s98, 1
          %s2428 = scalar_lea.sflag [#allocation5], %s2427
          %s2429 = sand.u32 %s98, 1
          %s2430 = smul.addr %s2429, 40
          %s2431 = scalar_lea.vmem [#allocation9], %s2430
          %2432 = dma.done %s2428, 640
        $region56: #{ctpn_forward.4} parent=51 // pred_fallthru
          _
      $region52: #{ctpn_forward.4} parent=5 // pred_fallthru
        _
    $region6: #{ctpn_forward.4} parent=1 // loop_footer
      %s20 = sadd.s32 1, %s16
    $region7: #{ctpn_forward.4} parent=1 // loop_footer_branch
      %15 = sbr.rel target = $region3
    $region8: #{ctpn_forward.4} parent=1 // loop_exit
      _
    %2433 = vsyncpa [#allocation4], 1
    %s2434 = scalar_lea.sflag [#allocation4], 1
    %2435 = vsyncpa %s2434, 1
    %2436 = vsyncpa [#allocation7], 1
    %2437 = vsyncpa [#allocation5], 1
    %s2438 = scalar_lea.sflag [#allocation5], 1
    %2439 = vsyncpa %s2438, 1

</llo_original>
